<compile_context>
chip_gen: v6e
topology: v6e:2x2x1
jax: 0.10.0
libtpu: 0.0.40
codegen_flags: <defaults>
</compile_context>

<pallas_src>
import functools
import math

import jax
import jax.numpy as jnp
from jax import lax
from jax.experimental import pallas as pl
from jax.experimental.pallas import tpu as pltpu


# ----------------------------------------------------------------------------
# helpers
# ----------------------------------------------------------------------------
def _round_up(v, m):
    return ((v + m - 1) // m) * m


_BN_SCALE = 1.0 / math.sqrt(1.0 + 1e-5)     # eval-mode BatchNorm2d, fresh stats
_VMEM_LIMIT = 48 * 1024 * 1024              # <= physical VMEM on v5e/v6e/v7x


def _pick_spatial_tile(sp, target=512):
    """Largest 128-multiple tile <= target dividing sp, preferring >= 2 tiles
    (keeps both v7x TensorCores busy at small batch)."""
    for t in range(min(target, sp), 127, -128):
        if sp % t == 0 and sp // t >= 2:
            return t
    return 128 if sp % 128 == 0 else sp


def _spec(shape, index_map, constant=False):
    """BlockSpec; single-buffer grid-constant operands when supported."""
    if constant:
        try:
            return pl.BlockSpec(shape, index_map, pipeline_mode=pl.Buffered(1))
        except Exception:   # older jax without pipeline_mode / Buffered
            pass
    return pl.BlockSpec(shape, index_map)


# ----------------------------------------------------------------------------
# Pallas kernel 1: fully fused "head".
# One grid step = one batch image.  Activations live as values (VMEM), convs
# are in-kernel im2col (9 shifted slices of a margin-extended padded-flat map)
# folded into a single MXU matmul per layer; sibling branches are merged.
# TODO(synk): for very large H*W the whole-image-per-step head should be tiled
# spatially with a 3-pixel halo; fine at typical ARConv feature-map sizes.
# ----------------------------------------------------------------------------
def _head_kernel(xe_ref, mask_ref,
                 w1_ref, b1_ref, w2_ref, b2_ref, wp2_ref, bp2_ref,
                 w3_ref, b3_ref, wlw_ref, blw_ref, lwsc_ref, lwsh_ref,
                 mb_ref, lw_ref, *, sp, margin, wpad, oc8, hw1):
    shifts = tuple((di - 1) * wpad + (dj - 1)
                   for di in range(3) for dj in range(3))
    dshifts = tuple(2 * ((di - 1) * wpad + (dj - 1))
                    for di in range(3) for dj in range(3))
    mask = mask_ref[...]                                   # (1, sp) interior mask

    def leaky(v):
        return jnp.where(v >= 0.0, v, 0.01 * v)

    def extend(v):                                         # add zero margins
        zm = jnp.zeros((v.shape[0], margin), jnp.float32)
        return jnp.concatenate([zm, v, zm], axis=1)

    def patches(ext, shift_list, dtype):                   # in-kernel im2col
        cols = [ext[:, margin + s: margin + s + sp] for s in shift_list]
        return jnp.concatenate(cols, axis=0).astype(dtype)

    # ---- layer 1: [m1 ; b1 ; p1] all read x (p1's 100x & BN folded into W) --
    xe = xe_ref[0]                                         # (c8, sext) f32
    y1 = jnp.dot(w1_ref[...], patches(xe, shifts, jnp.bfloat16),
                 preferred_element_type=jnp.float32) + b1_ref[...]
    y1 = leaky(y1) * mask
    mb1 = y1[:2 * oc8]
    p1 = y1[2 * oc8:]

    # ---- layer 2: [m2 ; b2] (block-diagonal weights) -----------------------
    y2 = jnp.dot(w2_ref[...], patches(extend(mb1), shifts, jnp.bfloat16),
                 preferred_element_type=jnp.float32) + b2_ref[...]
    mb2 = leaky(y2) * mask

    # ---- p2: stride-2 conv == stride-1 conv, even-phase positions used later
    yp2 = jnp.dot(wp2_ref[...], patches(extend(p1), shifts, jnp.bfloat16),
                  preferred_element_type=jnp.float32) + bp2_ref[...]
    p2f = leaky(yp2) * mask

    # ---- layer 3: m3 (tanh) / b3 (identity) --------------------------------
    y3 = jnp.dot(w3_ref[...], patches(extend(mb2), shifts, jnp.bfloat16),
                 preferred_element_type=jnp.float32) + b3_ref[...]
    mb_ref[0] = jnp.concatenate([jnp.tanh(y3[:oc8]), y3[oc8:]], axis=0)

    # ---- l/w branch: 3x3 conv on the half-res map == dilation-2 conv on the
    # ring-masked full-res p2 map (only stride-2 phase positions are consumed).
    ylw = jnp.dot(wlw_ref[...], patches(extend(p2f), dshifts, jnp.float32),
                  preferred_element_type=jnp.float32) + blw_ref[...]
    ylw = leaky(ylw)
    ylw = ylw * lwsc_ref[...] + lwsh_ref[...]              # 1x1 conv + BN folded
    ylw = 1.0 / (1.0 + jnp.exp(-ylw))                      # sigmoid
    lw_ref[0] = ylw * float(hw1 - 1) + 1.0


# ----------------------------------------------------------------------------
# Pallas kernel 2: fused separable bilinear sampling + rectangular conv +
# `* m + bias` modulation.  One grid step = (one batch image, one lane tile).
# ----------------------------------------------------------------------------
def _ar_sample_kernel(xct_ref, pix_ref, sgrp_ref, r_ref, cw_ref, cb_ref,
                      mb_ref, o_ref, *, ax, ay, hp, wp):
    # xct : (1, WpC8, Hp8)  padded image; row = s*C + c, lane = row index r
    # pix : (1, 8, T)       rows 0..3: base row, base col, l/N_X, w/N_Y
    # sgrp: (WpC8, 1)       column index s for row s*C+c  (-1 in padding rows)
    # r   : (C8, WpC8)      0/1 channel segment-reduction matrix (bf16)
    # cw  : (Nx, OC8, Ny*C8) rect-conv weights packed per row tap (bf16)
    # cb  : (OC8, 1)        rect-conv bias
    # mb  : (1, 2*OC8, T)   [modulation m ; additive bias]
    T = pix_ref.shape[2]
    hp8 = xct_ref.shape[2]
    oc8 = cb_ref.shape[0]

    xct = xct_ref[0]                                       # (wpc8, hp8) f32
    pix = pix_ref[0]
    i0 = pix[0:1, :]
    j0 = pix[1:2, :]
    lsc = pix[2:3, :]
    wsc = pix[3:4, :]
    sgrp = sgrp_ref[...]                                   # (wpc8, 1)
    riota = lax.broadcasted_iota(jnp.int32, (hp8, T), 0).astype(jnp.float32)

    # Width-direction bilinear corners/weights: only 4 (1,T) rows per column
    # tap are kept alive across the nx loop (masks are rebuilt on the fly).
    colp = []
    for a in ay:
        py = j0 + wsc * a
        py0 = jnp.floor(py)
        qy0 = jnp.clip(py0, 0.0, wp - 1.0)
        qy1 = jnp.clip(py0 + 1.0, 0.0, wp - 1.0)
        pyc = jnp.clip(py, 0.0, wp - 1.0)
        colp.append((qy0, qy1, 1.0 + (qy0 - pyc), 1.0 - (qy1 - pyc)))

    acc = jnp.zeros((oc8, T), jnp.float32)
    for inx, a in enumerate(ax):
        # Height-direction one-hot bilinear weights for this row tap.
        px = i0 + lsc * a
        px0 = jnp.floor(px)
        qx0 = jnp.clip(px0, 0.0, hp - 1.0)
        qx1 = jnp.clip(px0 + 1.0, 0.0, hp - 1.0)
        pxc = jnp.clip(px, 0.0, hp - 1.0)
        gx0 = 1.0 + (qx0 - pxc)
        gx1 = 1.0 - (qx1 - pxc)
        rxt = (jnp.where(riota == qx0, gx0, 0.0)
               + jnp.where(riota == qx1, gx1, 0.0))        # (hp8, T) f32
        # Row gather for all columns & channels at once (MXU).
        zt = jnp.dot(xct, rxt, preferred_element_type=jnp.float32)   # (wpc8, T)

        reds = []
        for (qy0, qy1, gy0, gy1) in colp:
            cmask = (jnp.where(sgrp == qy0, gy0, 0.0)
                     + jnp.where(sgrp == qy1, gy1, 0.0))   # transient (wpc8, T)
            reds.append(jnp.dot(r_ref[...], (zt * cmask).astype(jnp.bfloat16),
                                preferred_element_type=jnp.float32))  # (c8, T)
        # One weight matmul per row tap (K fused over the column taps).
        red_cat = jnp.concatenate(reds, axis=0).astype(jnp.bfloat16)
        acc = acc + jnp.dot(cw_ref[inx], red_cat,
                            preferred_element_type=jnp.float32)       # (oc8, T)

    y = acc + cb_ref[...]
    mbv = mb_ref[0]                                        # (2*oc8, T)
    o_ref[0] = y * mbv[:oc8] + mbv[oc8:]


# ----------------------------------------------------------------------------
# host-side weight packing helpers (tap-major matmul layout)
# ----------------------------------------------------------------------------
def _to_mm(canvas):
    # canvas (R, S, 3, 3) -> (R, 9*S), column = (di*3+dj)*S + s
    r, s = canvas.shape[0], canvas.shape[1]
    w = jnp.transpose(canvas, (2, 3, 0, 1)).reshape(9, r, s)
    return jnp.transpose(w, (1, 0, 2)).reshape(r, 9 * s)


def _embed(canvas, w, ro, co, scale=1.0):
    oc, ic = w.shape[0], w.shape[1]
    return canvas.at[ro:ro + oc, co:co + ic].set(w * scale)


# ----------------------------------------------------------------------------
# fused head (m/b/p/l/w branches)  — one pallas_call
# ----------------------------------------------------------------------------
@functools.partial(jax.jit, static_argnames=("hw1",))
def _arconv_head(params, x, hw1):
    f32, bf16 = jnp.float32, jnp.bfloat16
    B, inc, H, W = x.shape
    outc = params['m1'][0].shape[0]
    C8 = _round_up(inc, 8)
    OC8 = _round_up(outc, 8)
    Hp, Wp = H + 2, W + 2
    HPWP = Hp * Wp
    SP = _round_up(HPWP, 128)
    margin = 2 * Wp + 2                       # covers the dilation-2 shifts
    SExt = SP + 2 * margin

    # extended, padded-flat, channel-major input image (zero ring already there)
    xpad = jnp.pad(x, ((0, 0), (0, 0), (1, 1), (1, 1))).astype(f32)
    xe = jnp.pad(xpad.reshape(B, inc, HPWP),
                 ((0, 0), (0, C8 - inc), (margin, SExt - margin - HPWP)))

    # interior mask over the padded-flat grid (zeros the ring + lane tail)
    kk = jnp.arange(SP)
    row = kk // Wp
    col = kk % Wp
    mask = ((kk < HPWP) & (row >= 1) & (row <= H)
            & (col >= 1) & (col <= W)).astype(f32).reshape(1, SP)

    wm1, bm1 = params['m1']; wm2, bm2 = params['m2']; wm3, bm3 = params['m3']
    wb1, bb1 = params['b1']; wb2, bb2 = params['b2']; wb3, bb3 = params['b3']
    wp1, bp1 = params['p1']; wp2, bp2 = params['p2']
    wl1, bl1 = params['l1']; wl2, bl2 = params['l2']
    ww1, bw1 = params['w1']; ww2, bw2 = params['w2']

    R1 = 2 * OC8 + C8
    c1 = jnp.zeros((R1, C8, 3, 3), f32)
    c1 = _embed(c1, wm1, 0, 0)
    c1 = _embed(c1, wb1, OC8, 0)
    c1 = _embed(c1, wp1, 2 * OC8, 0, scale=100.0 * _BN_SCALE)   # x*100 + BN folded
    w1 = _to_mm(c1).astype(bf16)
    bias1 = jnp.zeros((R1, 1), f32)
    bias1 = bias1.at[0:outc, 0].set(bm1).at[OC8:OC8 + outc, 0].set(bb1)
    bias1 = bias1.at[2 * OC8:2 * OC8 + inc, 0].set(bp1 * _BN_SCALE)

    c2 = jnp.zeros((2 * OC8, 2 * OC8, 3, 3), f32)
    c2 = _embed(c2, wm2, 0, 0)
    c2 = _embed(c2, wb2, OC8, OC8)
    w2 = _to_mm(c2).astype(bf16)
    bias2 = jnp.zeros((2 * OC8, 1), f32)
    bias2 = bias2.at[0:outc, 0].set(bm2).at[OC8:OC8 + outc, 0].set(bb2)

    cp = jnp.zeros((C8, C8, 3, 3), f32)
    cp = _embed(cp, wp2, 0, 0, scale=_BN_SCALE)
    wp2m = _to_mm(cp).astype(bf16)
    biasp2 = jnp.zeros((C8, 1), f32).at[0:inc, 0].set(bp2 * _BN_SCALE)

    c3 = jnp.zeros((2 * OC8, 2 * OC8, 3, 3), f32)
    c3 = _embed(c3, wm3, 0, 0)
    c3 = _embed(c3, wb3, OC8, OC8)
    w3 = _to_mm(c3).astype(bf16)
    bias3 = jnp.zeros((2 * OC8, 1), f32)
    bias3 = bias3.at[0:outc, 0].set(bm3).at[OC8:OC8 + outc, 0].set(bb3)

    clw = jnp.zeros((8, C8, 3, 3), f32)
    clw = _embed(clw, wl1, 0, 0, scale=_BN_SCALE)
    clw = _embed(clw, ww1, 1, 0, scale=_BN_SCALE)
    wlw = _to_mm(clw)                                   # keep f32 (tiny)
    biaslw = (jnp.zeros((8, 1), f32)
              .at[0, 0].set(bl1[0] * _BN_SCALE).at[1, 0].set(bw1[0] * _BN_SCALE))
    lwsc = (jnp.zeros((8, 1), f32)
            .at[0, 0].set(wl2.reshape(()) * _BN_SCALE)
            .at[1, 0].set(ww2.reshape(()) * _BN_SCALE))
    lwsh = (jnp.zeros((8, 1), f32)
            .at[0, 0].set(bl2[0] * _BN_SCALE).at[1, 0].set(bw2[0] * _BN_SCALE))

    kern = functools.partial(_head_kernel, sp=SP, margin=margin, wpad=Wp,
                             oc8=OC8, hw1=int(hw1))
    mb_out, lw_out = pl.pallas_call(
        kern,
        out_shape=(jax.ShapeDtypeStruct((B, 2 * OC8, SP), f32),
                   jax.ShapeDtypeStruct((B, 8, SP), f32)),
        grid=(B,),
        in_specs=[
            pl.BlockSpec((1, C8, SExt), lambda b: (b, 0, 0)),
            _spec((1, SP), lambda b: (0, 0), constant=True),
            _spec((R1, 9 * C8), lambda b: (0, 0), constant=True),
            _spec((R1, 1), lambda b: (0, 0), constant=True),
            _spec((2 * OC8, 9 * 2 * OC8), lambda b: (0, 0), constant=True),
            _spec((2 * OC8, 1), lambda b: (0, 0), constant=True),
            _spec((C8, 9 * C8), lambda b: (0, 0), constant=True),
            _spec((C8, 1), lambda b: (0, 0), constant=True),
            _spec((2 * OC8, 9 * 2 * OC8), lambda b: (0, 0), constant=True),
            _spec((2 * OC8, 1), lambda b: (0, 0), constant=True),
            _spec((8, 9 * C8), lambda b: (0, 0), constant=True),
            _spec((8, 1), lambda b: (0, 0), constant=True),
            _spec((8, 1), lambda b: (0, 0), constant=True),
            _spec((8, 1), lambda b: (0, 0), constant=True),
        ],
        out_specs=(pl.BlockSpec((1, 2 * OC8, SP), lambda b: (b, 0, 0)),
                   pl.BlockSpec((1, 8, SP), lambda b: (b, 0, 0))),
        compiler_params=pltpu.CompilerParams(
            dimension_semantics=("parallel",),
            vmem_limit_bytes=_VMEM_LIMIT),
    )(xe, mask, w1, bias1, w2, bias2, wp2m, biasp2, w3, bias3,
      wlw, biaslw, lwsc, lwsh)

    # stride-2 phase extraction of l / w (half resolution) + their means
    lwg = lw_out[:, :2, :HPWP].reshape(B, 2, Hp, Wp)
    lw_half = lwg[:, :, 1:H + 1:2, 1:W + 1:2]
    means = jnp.stack([jnp.mean(lw_half[:, 0]), jnp.mean(lw_half[:, 1])])
    return mb_out, lw_half, means


# ----------------------------------------------------------------------------
# sampling + rect-conv + modulation tail  — one pallas_call
# ----------------------------------------------------------------------------
@functools.partial(jax.jit, static_argnames=("n_x", "n_y"))
def _arconv_tail(params, x, mb, lw_half, n_x, n_y):
    f32, bf16 = jnp.float32, jnp.bfloat16
    B, inc, H, W = x.shape
    outc = params['m1'][0].shape[0]
    C8 = _round_up(inc, 8)
    OC8 = _round_up(outc, 8)
    Hp, Wp = H + 2, W + 2
    HPWP = Hp * Wp
    SP = _round_up(HPWP, 128)

    # padded image, transposed: row = s*C + c (column-group major), lane = row r
    # TODO(synk): at very small H the Hp lane axis of xct is padded to 128 in
    # VMEM (wasted lanes); pack multiple column groups per lane tile if needed.
    wpc = Wp * inc
    wpc8 = _round_up(wpc, 8)
    hp8 = _round_up(Hp, 8)
    xpad = jnp.pad(x, ((0, 0), (0, 0), (1, 1), (1, 1))).astype(f32)
    xct = jnp.transpose(xpad, (0, 3, 1, 2)).reshape(B, wpc, Hp)
    xct = jnp.pad(xct, ((0, 0), (0, wpc8 - wpc), (0, hp8 - Hp)))

    # TODO(synk): the reference keeps l/w at the stride-2 resolution, which
    # makes the final `x_offset * m + bias` shape-inconsistent as written; a
    # 2x nearest upsample keeps the forward well defined at full resolution
    # (same deviation as the previously accepted version).
    l_up = jnp.repeat(jnp.repeat(lw_half[:, 0:1], 2, axis=2), 2, axis=3)[:, :, :H, :W]
    w_up = jnp.repeat(jnp.repeat(lw_half[:, 1:2], 2, axis=2), 2, axis=3)[:, :, :H, :W]
    lsc = jnp.pad(l_up / float(n_x), ((0, 0), (0, 0), (1, 1), (1, 1))).reshape(B, 1, HPWP)
    wsc = jnp.pad(w_up / float(n_y), ((0, 0), (0, 0), (1, 1), (1, 1))).reshape(B, 1, HPWP)
    ri = jnp.broadcast_to(jnp.arange(Hp, dtype=f32)[:, None], (Hp, Wp)).reshape(1, 1, HPWP)
    ci = jnp.broadcast_to(jnp.arange(Wp, dtype=f32)[None, :], (Hp, Wp)).reshape(1, 1, HPWP)
    pix = jnp.concatenate([
        jnp.broadcast_to(ri, (B, 1, HPWP)),
        jnp.broadcast_to(ci, (B, 1, HPWP)),
        lsc, wsc,
        jnp.zeros((B, 4, HPWP), f32),
    ], axis=1)
    pix = jnp.pad(pix, ((0, 0), (0, 0), (0, SP - HPWP)))

    # column index per xct row (mask builder); -1 in padding rows never matches
    sgrp = jnp.pad(jnp.repeat(jnp.arange(Wp, dtype=f32), inc),
                   (0, wpc8 - wpc), constant_values=-1.0).reshape(wpc8, 1)

    # channel segment-reduction matrix: (wpc8, T) masked gather -> (C8, T)
    rows = jnp.arange(C8)
    cols = jnp.arange(wpc8)
    rmat = ((cols[None, :] % max(inc, 1) == rows[:, None])
            & (cols[None, :] < wpc) & (rows[:, None] < inc)).astype(bf16)

    # rectangular-conv weights packed per row tap: (n_x, OC8, n_y*C8)
    cw, cb = params['convs'][n_x * 10 + n_y]          # (outc, inc, n_x, n_y)
    cwk = jnp.transpose(cw, (2, 0, 3, 1))             # (n_x, outc, n_y, inc)
    cwk = jnp.pad(cwk, ((0, 0), (0, OC8 - outc), (0, 0), (0, C8 - inc)))
    cwk = cwk.reshape(n_x, OC8, n_y * C8).astype(bf16)
    cb2 = jnp.pad(cb, (0, OC8 - outc)).reshape(OC8, 1).astype(f32)

    ax = tuple(float(v) for v in range(-(n_x - 1) // 2, (n_x - 1) // 2 + 1))
    ay = tuple(float(v) for v in range(-(n_y - 1) // 2, (n_y - 1) // 2 + 1))

    t = _pick_spatial_tile(SP)
    kern = functools.partial(_ar_sample_kernel, ax=ax, ay=ay,
                             hp=float(Hp), wp=float(Wp))
    out = pl.pallas_call(
        kern,
        out_shape=jax.ShapeDtypeStruct((B, OC8, SP), f32),
        grid=(B, SP // t),
        in_specs=[
            _spec((1, wpc8, hp8), lambda b, ti: (b, 0, 0), constant=True),
            pl.BlockSpec((1, 8, t), lambda b, ti: (b, 0, ti)),
            _spec((wpc8, 1), lambda b, ti: (0, 0), constant=True),
            _spec((C8, wpc8), lambda b, ti: (0, 0), constant=True),
            _spec((n_x, OC8, n_y * C8), lambda b, ti: (0, 0, 0), constant=True),
            _spec((OC8, 1), lambda b, ti: (0, 0), constant=True),
            pl.BlockSpec((1, 2 * OC8, t), lambda b, ti: (b, 0, ti)),
        ],
        out_specs=pl.BlockSpec((1, OC8, t), lambda b, ti: (b, 0, ti)),
        compiler_params=pltpu.CompilerParams(
            dimension_semantics=("parallel", "parallel"),
            vmem_limit_bytes=_VMEM_LIMIT),
    )(xct, pix, sgrp, rmat, cwk, cb2, mb)

    out = out[:, :outc, :HPWP].reshape(B, outc, Hp, Wp)
    return out[:, :, 1:H + 1, 1:W + 1]


# ----------------------------------------------------------------------------
# parameter init (PyTorch default conv init), matching the reference module
# ----------------------------------------------------------------------------
I_LIST = [33, 35, 53, 37, 73, 55, 57, 75, 77]


def _conv_init(key, cout, cin, kh, kw):
    k1, k2 = jax.random.split(key)
    fan_in = cin * kh * kw
    bound = 1.0 / (fan_in ** 0.5)
    w = jax.random.uniform(k1, (cout, cin, kh, kw), jnp.float32, -bound, bound)
    b = jax.random.uniform(k2, (cout,), jnp.float32, -bound, bound)
    return w, b


def init_params(key, inc, outc):
    keys = list(jax.random.split(key, 32))
    it = iter(keys)
    p = {}
    p['m1'] = _conv_init(next(it), outc, inc, 3, 3)
    p['m2'] = _conv_init(next(it), outc, outc, 3, 3)
    p['m3'] = _conv_init(next(it), outc, outc, 3, 3)
    p['b1'] = _conv_init(next(it), outc, inc, 3, 3)
    p['b2'] = _conv_init(next(it), outc, outc, 3, 3)
    p['b3'] = _conv_init(next(it), outc, outc, 3, 3)
    p['p1'] = _conv_init(next(it), inc, inc, 3, 3)
    p['p2'] = _conv_init(next(it), inc, inc, 3, 3)
    p['l1'] = _conv_init(next(it), 1, inc, 3, 3)
    p['l2'] = _conv_init(next(it), 1, 1, 1, 1)
    p['w1'] = _conv_init(next(it), 1, inc, 3, 3)
    p['w2'] = _conv_init(next(it), 1, 1, 1, 1)
    p['convs'] = {}
    for i in I_LIST:
        kh, kw = i // 10, i % 10
        p['convs'][i] = _conv_init(next(it), outc, inc, kh, kw)
    p['reserved_NXY'] = (3, 3)
    return p


# ----------------------------------------------------------------------------
# forward driver
# ----------------------------------------------------------------------------
def arconv_forward(params, x, epoch, hw_range):
    assert isinstance(hw_range, list) and len(hw_range) == 2
    scale = hw_range[1] // 9
    if hw_range[0] == 1 and hw_range[1] == 3:
        scale = 1

    mb, lw_half, means = _arconv_head(params, x, hw1=int(hw_range[1]))

    if epoch <= 100:
        # Data-dependent kernel-size selection (single device->host sync, as
        # implied by the reference's int(mean // scale)).
        # TODO(synk): under full jit, lax.switch over the 9 precompiled
        # (N_X, N_Y) variants would remove this sync point.
        mean_l, mean_w = (float(v) for v in jax.device_get(means))
        n_x = int(mean_l // scale)
        n_y = int(mean_w // scale)

        def phi(v):
            if v % 2 == 0:
                v -= 1
            return v

        n_x, n_y = phi(n_x), phi(n_y)
        n_x, n_y = max(n_x, 3), max(n_y, 3)
        n_x, n_y = min(n_x, 7), min(n_y, 7)
    else:
        n_x, n_y = params['reserved_NXY']

    return _arconv_tail(params, x, mb, lw_half, n_x=n_x, n_y=n_y)


if __name__ == "__main__":
    key = jax.random.PRNGKey(0)
    kx, kp = jax.random.split(key)
    B, inc, H, W = 2, 4, 16, 16
    outc = 8
    x = jax.random.normal(kx, (B, inc, H, W), jnp.float32)
    params = init_params(kp, inc, outc)

    out = arconv_forward(params, x, epoch=50, hw_range=[0, 9])
    out = jax.block_until_ready(out)

    assert out.shape == (B, outc, H, W), out.shape
    assert bool(jnp.all(jnp.isfinite(out)))
    print("KERNEL_OK")
</pallas_src>

<mosaic_0001>
module attributes {stable_mosaic.version = 11 : i64} {
  func.func @_head_kernel(%arg0: i32, %arg1: memref<1x8x460xf32, #tpu.memory_space<vmem>>, %arg2: memref<1x384xf32, #tpu.memory_space<vmem>>, %arg3: memref<24x72xbf16, #tpu.memory_space<vmem>>, %arg4: memref<24x1xf32, #tpu.memory_space<vmem>>, %arg5: memref<16x144xbf16, #tpu.memory_space<vmem>>, %arg6: memref<16x1xf32, #tpu.memory_space<vmem>>, %arg7: memref<8x72xbf16, #tpu.memory_space<vmem>>, %arg8: memref<8x1xf32, #tpu.memory_space<vmem>>, %arg9: memref<16x144xbf16, #tpu.memory_space<vmem>>, %arg10: memref<16x1xf32, #tpu.memory_space<vmem>>, %arg11: memref<8x72xf32, #tpu.memory_space<vmem>>, %arg12: memref<8x1xf32, #tpu.memory_space<vmem>>, %arg13: memref<8x1xf32, #tpu.memory_space<vmem>>, %arg14: memref<8x1xf32, #tpu.memory_space<vmem>>, %arg15: memref<1x16x384xf32, #tpu.memory_space<vmem>>, %arg16: memref<1x8x384xf32, #tpu.memory_space<vmem>>) attributes {dimension_semantics = [#tpu.dimension_semantics<parallel>], iteration_bounds = array<i64: 2>, scalar_prefetch = 0 : i64, scratch_operands = 0 : i64, tpu.core_type = #tpu.core_type<tc>, window_params = [{transform_indices = @transform_0, window_bounds = array<i64: 1, 8, 460>}, {pipeline_mode = #tpu.pipeline_mode<synchronous>, transform_indices = @transform_1, window_bounds = array<i64: 1, 384>}, {pipeline_mode = #tpu.pipeline_mode<synchronous>, transform_indices = @transform_2, window_bounds = array<i64: 24, 72>}, {pipeline_mode = #tpu.pipeline_mode<synchronous>, transform_indices = @transform_3, window_bounds = array<i64: 24, 1>}, {pipeline_mode = #tpu.pipeline_mode<synchronous>, transform_indices = @transform_4, window_bounds = array<i64: 16, 144>}, {pipeline_mode = #tpu.pipeline_mode<synchronous>, transform_indices = @transform_5, window_bounds = array<i64: 16, 1>}, {pipeline_mode = #tpu.pipeline_mode<synchronous>, transform_indices = @transform_6, window_bounds = array<i64: 8, 72>}, {pipeline_mode = #tpu.pipeline_mode<synchronous>, transform_indices = @transform_7, window_bounds = array<i64: 8, 1>}, {pipeline_mode = #tpu.pipeline_mode<synchronous>, transform_indices = @transform_8, window_bounds = array<i64: 16, 144>}, {pipeline_mode = #tpu.pipeline_mode<synchronous>, transform_indices = @transform_9, window_bounds = array<i64: 16, 1>}, {pipeline_mode = #tpu.pipeline_mode<synchronous>, transform_indices = @transform_10, window_bounds = array<i64: 8, 72>}, {pipeline_mode = #tpu.pipeline_mode<synchronous>, transform_indices = @transform_11, window_bounds = array<i64: 8, 1>}, {pipeline_mode = #tpu.pipeline_mode<synchronous>, transform_indices = @transform_12, window_bounds = array<i64: 8, 1>}, {pipeline_mode = #tpu.pipeline_mode<synchronous>, transform_indices = @transform_13, window_bounds = array<i64: 8, 1>}, {transform_indices = @transform_14, window_bounds = array<i64: 1, 16, 384>}, {transform_indices = @transform_15, window_bounds = array<i64: 1, 8, 384>}]} {
    %c0 = arith.constant 0 : index
    %c0_0 = arith.constant 0 : index
    %0 = vector.load %arg2[%c0, %c0_0] : memref<1x384xf32, #tpu.memory_space<vmem>>, vector<1x384xf32>
    %c0_1 = arith.constant 0 : index
    %c0_2 = arith.constant 0 : index
    %c0_3 = arith.constant 0 : index
    %1 = vector.load %arg1[%c0_1, %c0_2, %c0_3] : memref<1x8x460xf32, #tpu.memory_space<vmem>>, vector<1x8x460xf32>
    %2 = vector.shape_cast %1 : vector<1x8x460xf32> to vector<8x460xf32>
    %c0_4 = arith.constant 0 : index
    %c0_5 = arith.constant 0 : index
    %3 = vector.load %arg3[%c0_4, %c0_5] : memref<24x72xbf16, #tpu.memory_space<vmem>>, vector<24x72xbf16>
    %4 = vector.extract_strided_slice %2 {offsets = [0, 19], sizes = [8, 384], strides = [1, 1]} : vector<8x460xf32> to vector<8x384xf32>
    %5 = vector.extract_strided_slice %2 {offsets = [0, 20], sizes = [8, 384], strides = [1, 1]} : vector<8x460xf32> to vector<8x384xf32>
    %6 = vector.extract_strided_slice %2 {offsets = [0, 21], sizes = [8, 384], strides = [1, 1]} : vector<8x460xf32> to vector<8x384xf32>
    %7 = vector.extract_strided_slice %2 {offsets = [0, 37], sizes = [8, 384], strides = [1, 1]} : vector<8x460xf32> to vector<8x384xf32>
    %8 = vector.extract_strided_slice %2 {offsets = [0, 38], sizes = [8, 384], strides = [1, 1]} : vector<8x460xf32> to vector<8x384xf32>
    %9 = vector.extract_strided_slice %2 {offsets = [0, 39], sizes = [8, 384], strides = [1, 1]} : vector<8x460xf32> to vector<8x384xf32>
    %10 = vector.extract_strided_slice %2 {offsets = [0, 55], sizes = [8, 384], strides = [1, 1]} : vector<8x460xf32> to vector<8x384xf32>
    %11 = vector.extract_strided_slice %2 {offsets = [0, 56], sizes = [8, 384], strides = [1, 1]} : vector<8x460xf32> to vector<8x384xf32>
    %12 = vector.extract_strided_slice %2 {offsets = [0, 57], sizes = [8, 384], strides = [1, 1]} : vector<8x460xf32> to vector<8x384xf32>
    %13 = tpu.concatenate %4, %5, %6, %7, %8, %9, %10, %11, %12 in 0 : vector<8x384xf32>, vector<8x384xf32>, vector<8x384xf32>, vector<8x384xf32>, vector<8x384xf32>, vector<8x384xf32>, vector<8x384xf32>, vector<8x384xf32>, vector<8x384xf32> -> vector<72x384xf32>
    %14 = arith.truncf %13 : vector<72x384xf32> to vector<72x384xbf16>
    %cst = arith.constant dense<0.000000e+00> : vector<24x384xf32>
    %15 = tpu.matmul %3, %14, %cst {dimension_numbers = #tpu.dot_dimension_numbers<[1], [0], [0], [1], [0, 0, 1, 1], [], []>} : vector<24x72xbf16>, vector<72x384xbf16>, vector<24x384xf32> -> vector<24x384xf32>
    %c0_6 = arith.constant 0 : index
    %c0_7 = arith.constant 0 : index
    %16 = vector.load %arg4[%c0_6, %c0_7] : memref<24x1xf32, #tpu.memory_space<vmem>>, vector<24x1xf32>
    %17 = vector.broadcast %16 : vector<24x1xf32> to vector<24x384xf32>
    %18 = arith.addf %15, %17 : vector<24x384xf32>
    %cst_8 = arith.constant 0.000000e+00 : f32
    %19 = vector.broadcast %cst_8 : f32 to vector<24x384xf32>
    %20 = arith.cmpf oge, %18, %19 : vector<24x384xf32>
    %cst_9 = arith.constant 0.00999999977 : f32
    %21 = vector.broadcast %cst_9 : f32 to vector<24x384xf32>
    %22 = arith.mulf %21, %18 : vector<24x384xf32>
    %23 = arith.select %20, %18, %22 : vector<24x384xi1>, vector<24x384xf32>
    %24 = vector.broadcast %0 : vector<1x384xf32> to vector<24x384xf32>
    %25 = arith.mulf %23, %24 : vector<24x384xf32>
    %26 = vector.extract_strided_slice %25 {offsets = [0, 0], sizes = [16, 384], strides = [1, 1]} : vector<24x384xf32> to vector<16x384xf32>
    %27 = vector.extract_strided_slice %25 {offsets = [16, 0], sizes = [8, 384], strides = [1, 1]} : vector<24x384xf32> to vector<8x384xf32>
    %c0_10 = arith.constant 0 : index
    %c0_11 = arith.constant 0 : index
    %28 = vector.load %arg5[%c0_10, %c0_11] : memref<16x144xbf16, #tpu.memory_space<vmem>>, vector<16x144xbf16>
    %cst_12 = arith.constant 0.000000e+00 : f32
    %29 = vector.broadcast %cst_12 : f32 to vector<16x38xf32>
    %30 = tpu.concatenate %29, %26, %29 in 1 : vector<16x38xf32>, vector<16x384xf32>, vector<16x38xf32> -> vector<16x460xf32>
    %31 = vector.extract_strided_slice %30 {offsets = [0, 19], sizes = [16, 384], strides = [1, 1]} : vector<16x460xf32> to vector<16x384xf32>
    %32 = vector.extract_strided_slice %30 {offsets = [0, 20], sizes = [16, 384], strides = [1, 1]} : vector<16x460xf32> to vector<16x384xf32>
    %33 = vector.extract_strided_slice %30 {offsets = [0, 21], sizes = [16, 384], strides = [1, 1]} : vector<16x460xf32> to vector<16x384xf32>
    %34 = vector.extract_strided_slice %30 {offsets = [0, 37], sizes = [16, 384], strides = [1, 1]} : vector<16x460xf32> to vector<16x384xf32>
    %35 = vector.extract_strided_slice %30 {offsets = [0, 38], sizes = [16, 384], strides = [1, 1]} : vector<16x460xf32> to vector<16x384xf32>
    %36 = vector.extract_strided_slice %30 {offsets = [0, 39], sizes = [16, 384], strides = [1, 1]} : vector<16x460xf32> to vector<16x384xf32>
    %37 = vector.extract_strided_slice %30 {offsets = [0, 55], sizes = [16, 384], strides = [1, 1]} : vector<16x460xf32> to vector<16x384xf32>
    %38 = vector.extract_strided_slice %30 {offsets = [0, 56], sizes = [16, 384], strides = [1, 1]} : vector<16x460xf32> to vector<16x384xf32>
    %39 = vector.extract_strided_slice %30 {offsets = [0, 57], sizes = [16, 384], strides = [1, 1]} : vector<16x460xf32> to vector<16x384xf32>
    %40 = tpu.concatenate %31, %32, %33, %34, %35, %36, %37, %38, %39 in 0 : vector<16x384xf32>, vector<16x384xf32>, vector<16x384xf32>, vector<16x384xf32>, vector<16x384xf32>, vector<16x384xf32>, vector<16x384xf32>, vector<16x384xf32>, vector<16x384xf32> -> vector<144x384xf32>
    %41 = arith.truncf %40 : vector<144x384xf32> to vector<144x384xbf16>
    %cst_13 = arith.constant dense<0.000000e+00> : vector<16x384xf32>
    %42 = tpu.matmul %28, %41, %cst_13 {dimension_numbers = #tpu.dot_dimension_numbers<[1], [0], [0], [1], [0, 0, 1, 1], [], []>} : vector<16x144xbf16>, vector<144x384xbf16>, vector<16x384xf32> -> vector<16x384xf32>
    %c0_14 = arith.constant 0 : index
    %c0_15 = arith.constant 0 : index
    %43 = vector.load %arg6[%c0_14, %c0_15] : memref<16x1xf32, #tpu.memory_space<vmem>>, vector<16x1xf32>
    %44 = vector.broadcast %43 : vector<16x1xf32> to vector<16x384xf32>
    %45 = arith.addf %42, %44 : vector<16x384xf32>
    %cst_16 = arith.constant 0.000000e+00 : f32
    %46 = vector.broadcast %cst_16 : f32 to vector<16x384xf32>
    %47 = arith.cmpf oge, %45, %46 : vector<16x384xf32>
    %cst_17 = arith.constant 0.00999999977 : f32
    %48 = vector.broadcast %cst_17 : f32 to vector<16x384xf32>
    %49 = arith.mulf %48, %45 : vector<16x384xf32>
    %50 = arith.select %47, %45, %49 : vector<16x384xi1>, vector<16x384xf32>
    %51 = vector.broadcast %0 : vector<1x384xf32> to vector<16x384xf32>
    %52 = arith.mulf %50, %51 : vector<16x384xf32>
    %c0_18 = arith.constant 0 : index
    %c0_19 = arith.constant 0 : index
    %53 = vector.load %arg7[%c0_18, %c0_19] : memref<8x72xbf16, #tpu.memory_space<vmem>>, vector<8x72xbf16>
    %cst_20 = arith.constant 0.000000e+00 : f32
    %54 = vector.broadcast %cst_20 : f32 to vector<8x38xf32>
    %55 = tpu.concatenate %54, %27, %54 in 1 : vector<8x38xf32>, vector<8x384xf32>, vector<8x38xf32> -> vector<8x460xf32>
    %56 = vector.extract_strided_slice %55 {offsets = [0, 19], sizes = [8, 384], strides = [1, 1]} : vector<8x460xf32> to vector<8x384xf32>
    %57 = vector.extract_strided_slice %55 {offsets = [0, 20], sizes = [8, 384], strides = [1, 1]} : vector<8x460xf32> to vector<8x384xf32>
    %58 = vector.extract_strided_slice %55 {offsets = [0, 21], sizes = [8, 384], strides = [1, 1]} : vector<8x460xf32> to vector<8x384xf32>
    %59 = vector.extract_strided_slice %55 {offsets = [0, 37], sizes = [8, 384], strides = [1, 1]} : vector<8x460xf32> to vector<8x384xf32>
    %60 = vector.extract_strided_slice %55 {offsets = [0, 38], sizes = [8, 384], strides = [1, 1]} : vector<8x460xf32> to vector<8x384xf32>
    %61 = vector.extract_strided_slice %55 {offsets = [0, 39], sizes = [8, 384], strides = [1, 1]} : vector<8x460xf32> to vector<8x384xf32>
    %62 = vector.extract_strided_slice %55 {offsets = [0, 55], sizes = [8, 384], strides = [1, 1]} : vector<8x460xf32> to vector<8x384xf32>
    %63 = vector.extract_strided_slice %55 {offsets = [0, 56], sizes = [8, 384], strides = [1, 1]} : vector<8x460xf32> to vector<8x384xf32>
    %64 = vector.extract_strided_slice %55 {offsets = [0, 57], sizes = [8, 384], strides = [1, 1]} : vector<8x460xf32> to vector<8x384xf32>
    %65 = tpu.concatenate %56, %57, %58, %59, %60, %61, %62, %63, %64 in 0 : vector<8x384xf32>, vector<8x384xf32>, vector<8x384xf32>, vector<8x384xf32>, vector<8x384xf32>, vector<8x384xf32>, vector<8x384xf32>, vector<8x384xf32>, vector<8x384xf32> -> vector<72x384xf32>
    %66 = arith.truncf %65 : vector<72x384xf32> to vector<72x384xbf16>
    %cst_21 = arith.constant dense<0.000000e+00> : vector<8x384xf32>
    %67 = tpu.matmul %53, %66, %cst_21 {dimension_numbers = #tpu.dot_dimension_numbers<[1], [0], [0], [1], [0, 0, 1, 1], [], []>} : vector<8x72xbf16>, vector<72x384xbf16>, vector<8x384xf32> -> vector<8x384xf32>
    %c0_22 = arith.constant 0 : index
    %c0_23 = arith.constant 0 : index
    %68 = vector.load %arg8[%c0_22, %c0_23] : memref<8x1xf32, #tpu.memory_space<vmem>>, vector<8x1xf32>
    %69 = vector.broadcast %68 : vector<8x1xf32> to vector<8x384xf32>
    %70 = arith.addf %67, %69 : vector<8x384xf32>
    %cst_24 = arith.constant 0.000000e+00 : f32
    %71 = vector.broadcast %cst_24 : f32 to vector<8x384xf32>
    %72 = arith.cmpf oge, %70, %71 : vector<8x384xf32>
    %cst_25 = arith.constant 0.00999999977 : f32
    %73 = vector.broadcast %cst_25 : f32 to vector<8x384xf32>
    %74 = arith.mulf %73, %70 : vector<8x384xf32>
    %75 = arith.select %72, %70, %74 : vector<8x384xi1>, vector<8x384xf32>
    %76 = vector.broadcast %0 : vector<1x384xf32> to vector<8x384xf32>
    %77 = arith.mulf %75, %76 : vector<8x384xf32>
    %c0_26 = arith.constant 0 : index
    %c0_27 = arith.constant 0 : index
    %78 = vector.load %arg9[%c0_26, %c0_27] : memref<16x144xbf16, #tpu.memory_space<vmem>>, vector<16x144xbf16>
    %cst_28 = arith.constant 0.000000e+00 : f32
    %79 = vector.broadcast %cst_28 : f32 to vector<16x38xf32>
    %80 = tpu.concatenate %79, %52, %79 in 1 : vector<16x38xf32>, vector<16x384xf32>, vector<16x38xf32> -> vector<16x460xf32>
    %81 = vector.extract_strided_slice %80 {offsets = [0, 19], sizes = [16, 384], strides = [1, 1]} : vector<16x460xf32> to vector<16x384xf32>
    %82 = vector.extract_strided_slice %80 {offsets = [0, 20], sizes = [16, 384], strides = [1, 1]} : vector<16x460xf32> to vector<16x384xf32>
    %83 = vector.extract_strided_slice %80 {offsets = [0, 21], sizes = [16, 384], strides = [1, 1]} : vector<16x460xf32> to vector<16x384xf32>
    %84 = vector.extract_strided_slice %80 {offsets = [0, 37], sizes = [16, 384], strides = [1, 1]} : vector<16x460xf32> to vector<16x384xf32>
    %85 = vector.extract_strided_slice %80 {offsets = [0, 38], sizes = [16, 384], strides = [1, 1]} : vector<16x460xf32> to vector<16x384xf32>
    %86 = vector.extract_strided_slice %80 {offsets = [0, 39], sizes = [16, 384], strides = [1, 1]} : vector<16x460xf32> to vector<16x384xf32>
    %87 = vector.extract_strided_slice %80 {offsets = [0, 55], sizes = [16, 384], strides = [1, 1]} : vector<16x460xf32> to vector<16x384xf32>
    %88 = vector.extract_strided_slice %80 {offsets = [0, 56], sizes = [16, 384], strides = [1, 1]} : vector<16x460xf32> to vector<16x384xf32>
    %89 = vector.extract_strided_slice %80 {offsets = [0, 57], sizes = [16, 384], strides = [1, 1]} : vector<16x460xf32> to vector<16x384xf32>
    %90 = tpu.concatenate %81, %82, %83, %84, %85, %86, %87, %88, %89 in 0 : vector<16x384xf32>, vector<16x384xf32>, vector<16x384xf32>, vector<16x384xf32>, vector<16x384xf32>, vector<16x384xf32>, vector<16x384xf32>, vector<16x384xf32>, vector<16x384xf32> -> vector<144x384xf32>
    %91 = arith.truncf %90 : vector<144x384xf32> to vector<144x384xbf16>
    %cst_29 = arith.constant dense<0.000000e+00> : vector<16x384xf32>
    %92 = tpu.matmul %78, %91, %cst_29 {dimension_numbers = #tpu.dot_dimension_numbers<[1], [0], [0], [1], [0, 0, 1, 1], [], []>} : vector<16x144xbf16>, vector<144x384xbf16>, vector<16x384xf32> -> vector<16x384xf32>
    %c0_30 = arith.constant 0 : index
    %c0_31 = arith.constant 0 : index
    %93 = vector.load %arg10[%c0_30, %c0_31] : memref<16x1xf32, #tpu.memory_space<vmem>>, vector<16x1xf32>
    %94 = vector.broadcast %93 : vector<16x1xf32> to vector<16x384xf32>
    %95 = arith.addf %92, %94 : vector<16x384xf32>
    %96 = vector.extract_strided_slice %95 {offsets = [0, 0], sizes = [8, 384], strides = [1, 1]} : vector<16x384xf32> to vector<8x384xf32>
    %97 = math.tanh %96 : vector<8x384xf32>
    %98 = vector.extract_strided_slice %95 {offsets = [8, 0], sizes = [8, 384], strides = [1, 1]} : vector<16x384xf32> to vector<8x384xf32>
    %99 = tpu.concatenate %97, %98 in 0 : vector<8x384xf32>, vector<8x384xf32> -> vector<16x384xf32>
    %c0_32 = arith.constant 0 : index
    %c0_33 = arith.constant 0 : index
    %c0_34 = arith.constant 0 : index
    %100 = vector.load %arg15[%c0_32, %c0_33, %c0_34] : memref<1x16x384xf32, #tpu.memory_space<vmem>>, vector<1x16x384xf32>
    %101 = vector.shape_cast %100 : vector<1x16x384xf32> to vector<16x384xf32>
    %102 = vector.shape_cast %99 : vector<16x384xf32> to vector<1x16x384xf32>
    tpu.vector_store %arg15[%c0_32, %c0_33, %c0_34], %102 {strides = array<i32>} : memref<1x16x384xf32, #tpu.memory_space<vmem>>, vector<1x16x384xf32>,
    %c0_35 = arith.constant 0 : index
    %c0_36 = arith.constant 0 : index
    %103 = vector.load %arg11[%c0_35, %c0_36] : memref<8x72xf32, #tpu.memory_space<vmem>>, vector<8x72xf32>
    %cst_37 = arith.constant 0.000000e+00 : f32
    %104 = vector.broadcast %cst_37 : f32 to vector<8x38xf32>
    %105 = tpu.concatenate %104, %77, %104 in 1 : vector<8x38xf32>, vector<8x384xf32>, vector<8x38xf32> -> vector<8x460xf32>
    %106 = vector.extract_strided_slice %105 {offsets = [0, 0], sizes = [8, 384], strides = [1, 1]} : vector<8x460xf32> to vector<8x384xf32>
    %107 = vector.extract_strided_slice %105 {offsets = [0, 2], sizes = [8, 384], strides = [1, 1]} : vector<8x460xf32> to vector<8x384xf32>
    %108 = vector.extract_strided_slice %105 {offsets = [0, 4], sizes = [8, 384], strides = [1, 1]} : vector<8x460xf32> to vector<8x384xf32>
    %109 = vector.extract_strided_slice %105 {offsets = [0, 36], sizes = [8, 384], strides = [1, 1]} : vector<8x460xf32> to vector<8x384xf32>
    %110 = vector.extract_strided_slice %105 {offsets = [0, 38], sizes = [8, 384], strides = [1, 1]} : vector<8x460xf32> to vector<8x384xf32>
    %111 = vector.extract_strided_slice %105 {offsets = [0, 40], sizes = [8, 384], strides = [1, 1]} : vector<8x460xf32> to vector<8x384xf32>
    %112 = vector.extract_strided_slice %105 {offsets = [0, 72], sizes = [8, 384], strides = [1, 1]} : vector<8x460xf32> to vector<8x384xf32>
    %113 = vector.extract_strided_slice %105 {offsets = [0, 74], sizes = [8, 384], strides = [1, 1]} : vector<8x460xf32> to vector<8x384xf32>
    %114 = vector.extract_strided_slice %105 {offsets = [0, 76], sizes = [8, 384], strides = [1, 1]} : vector<8x460xf32> to vector<8x384xf32>
    %115 = tpu.concatenate %106, %107, %108, %109, %110, %111, %112, %113, %114 in 0 : vector<8x384xf32>, vector<8x384xf32>, vector<8x384xf32>, vector<8x384xf32>, vector<8x384xf32>, vector<8x384xf32>, vector<8x384xf32>, vector<8x384xf32>, vector<8x384xf32> -> vector<72x384xf32>
    %cst_38 = arith.constant dense<0.000000e+00> : vector<8x384xf32>
    %116 = tpu.matmul %103, %115, %cst_38 {dimension_numbers = #tpu.dot_dimension_numbers<[1], [0], [0], [1], [0, 0, 1, 1], [], []>} : vector<8x72xf32>, vector<72x384xf32>, vector<8x384xf32> -> vector<8x384xf32>
    %c0_39 = arith.constant 0 : index
    %c0_40 = arith.constant 0 : index
    %117 = vector.load %arg12[%c0_39, %c0_40] : memref<8x1xf32, #tpu.memory_space<vmem>>, vector<8x1xf32>
    %118 = vector.broadcast %117 : vector<8x1xf32> to vector<8x384xf32>
    %119 = arith.addf %116, %118 : vector<8x384xf32>
    %cst_41 = arith.constant 0.000000e+00 : f32
    %120 = vector.broadcast %cst_41 : f32 to vector<8x384xf32>
    %121 = arith.cmpf oge, %119, %120 : vector<8x384xf32>
    %cst_42 = arith.constant 0.00999999977 : f32
    %122 = vector.broadcast %cst_42 : f32 to vector<8x384xf32>
    %123 = arith.mulf %122, %119 : vector<8x384xf32>
    %124 = arith.select %121, %119, %123 : vector<8x384xi1>, vector<8x384xf32>
    %c0_43 = arith.constant 0 : index
    %c0_44 = arith.constant 0 : index
    %125 = vector.load %arg13[%c0_43, %c0_44] : memref<8x1xf32, #tpu.memory_space<vmem>>, vector<8x1xf32>
    %126 = vector.broadcast %125 : vector<8x1xf32> to vector<8x384xf32>
    %127 = arith.mulf %124, %126 : vector<8x384xf32>
    %c0_45 = arith.constant 0 : index
    %c0_46 = arith.constant 0 : index
    %128 = vector.load %arg14[%c0_45, %c0_46] : memref<8x1xf32, #tpu.memory_space<vmem>>, vector<8x1xf32>
    %129 = vector.broadcast %128 : vector<8x1xf32> to vector<8x384xf32>
    %130 = arith.addf %127, %129 : vector<8x384xf32>
    %cst_47 = arith.constant 0.000000e+00 : f32
    %131 = vector.broadcast %cst_47 : f32 to vector<8x384xf32>
    %132 = arith.subf %131, %130 : vector<8x384xf32>
    %133 = math.exp %132 : vector<8x384xf32>
    %cst_48 = arith.constant 1.000000e+00 : f32
    %134 = vector.broadcast %cst_48 : f32 to vector<8x384xf32>
    %135 = arith.addf %134, %133 : vector<8x384xf32>
    %cst_49 = arith.constant 1.000000e+00 : f32
    %136 = vector.broadcast %cst_49 : f32 to vector<8x384xf32>
    %137 = arith.divf %136, %135 : vector<8x384xf32>
    %cst_50 = arith.constant 8.000000e+00 : f32
    %138 = vector.broadcast %cst_50 : f32 to vector<8x384xf32>
    %139 = arith.mulf %137, %138 : vector<8x384xf32>
    %cst_51 = arith.constant 1.000000e+00 : f32
    %140 = vector.broadcast %cst_51 : f32 to vector<8x384xf32>
    %141 = arith.addf %139, %140 : vector<8x384xf32>
    %c0_52 = arith.constant 0 : index
    %c0_53 = arith.constant 0 : index
    %c0_54 = arith.constant 0 : index
    %142 = vector.load %arg16[%c0_52, %c0_53, %c0_54] : memref<1x8x384xf32, #tpu.memory_space<vmem>>, vector<1x8x384xf32>
    %143 = vector.shape_cast %142 : vector<1x8x384xf32> to vector<8x384xf32>
    %144 = vector.shape_cast %141 : vector<8x384xf32> to vector<1x8x384xf32>
    tpu.vector_store %arg16[%c0_52, %c0_53, %c0_54], %144 {strides = array<i32>} : memref<1x8x384xf32, #tpu.memory_space<vmem>>, vector<1x8x384xf32>,
    return
  }
  func.func @transform_0(%arg0: i32) -> (i32, i32, i32) {
    %c0_i32 = arith.constant 0 : i32
    %c0_i32_0 = arith.constant 0 : i32
    %c0_i32_1 = arith.constant 0 : i32
    return %arg0, %c0_i32, %c0_i32_0 : i32, i32, i32
  }
  func.func @transform_1(%arg0: i32) -> (i32, i32) {
    %c0_i32 = arith.constant 0 : i32
    %c0_i32_0 = arith.constant 0 : i32
    %c0_i32_1 = arith.constant 0 : i32
    return %c0_i32, %c0_i32_0 : i32, i32
  }
  func.func @transform_2(%arg0: i32) -> (i32, i32) {
    %c0_i32 = arith.constant 0 : i32
    %c0_i32_0 = arith.constant 0 : i32
    %c0_i32_1 = arith.constant 0 : i32
    return %c0_i32, %c0_i32_0 : i32, i32
  }
  func.func @transform_3(%arg0: i32) -> (i32, i32) {
    %c0_i32 = arith.constant 0 : i32
    %c0_i32_0 = arith.constant 0 : i32
    %c0_i32_1 = arith.constant 0 : i32
    return %c0_i32, %c0_i32_0 : i32, i32
  }
  func.func @transform_4(%arg0: i32) -> (i32, i32) {
    %c0_i32 = arith.constant 0 : i32
    %c0_i32_0 = arith.constant 0 : i32
    %c0_i32_1 = arith.constant 0 : i32
    return %c0_i32, %c0_i32_0 : i32, i32
  }
  func.func @transform_5(%arg0: i32) -> (i32, i32) {
    %c0_i32 = arith.constant 0 : i32
    %c0_i32_0 = arith.constant 0 : i32
    %c0_i32_1 = arith.constant 0 : i32
    return %c0_i32, %c0_i32_0 : i32, i32
  }
  func.func @transform_6(%arg0: i32) -> (i32, i32) {
    %c0_i32 = arith.constant 0 : i32
    %c0_i32_0 = arith.constant 0 : i32
    %c0_i32_1 = arith.constant 0 : i32
    return %c0_i32, %c0_i32_0 : i32, i32
  }
  func.func @transform_7(%arg0: i32) -> (i32, i32) {
    %c0_i32 = arith.constant 0 : i32
    %c0_i32_0 = arith.constant 0 : i32
    %c0_i32_1 = arith.constant 0 : i32
    return %c0_i32, %c0_i32_0 : i32, i32
  }
  func.func @transform_8(%arg0: i32) -> (i32, i32) {
    %c0_i32 = arith.constant 0 : i32
    %c0_i32_0 = arith.constant 0 : i32
    %c0_i32_1 = arith.constant 0 : i32
    return %c0_i32, %c0_i32_0 : i32, i32
  }
  func.func @transform_9(%arg0: i32) -> (i32, i32) {
    %c0_i32 = arith.constant 0 : i32
    %c0_i32_0 = arith.constant 0 : i32
    %c0_i32_1 = arith.constant 0 : i32
    return %c0_i32, %c0_i32_0 : i32, i32
  }
  func.func @transform_10(%arg0: i32) -> (i32, i32) {
    %c0_i32 = arith.constant 0 : i32
    %c0_i32_0 = arith.constant 0 : i32
    %c0_i32_1 = arith.constant 0 : i32
    return %c0_i32, %c0_i32_0 : i32, i32
  }
  func.func @transform_11(%arg0: i32) -> (i32, i32) {
    %c0_i32 = arith.constant 0 : i32
    %c0_i32_0 = arith.constant 0 : i32
    %c0_i32_1 = arith.constant 0 : i32
    return %c0_i32, %c0_i32_0 : i32, i32
  }
  func.func @transform_12(%arg0: i32) -> (i32, i32) {
    %c0_i32 = arith.constant 0 : i32
    %c0_i32_0 = arith.constant 0 : i32
    %c0_i32_1 = arith.constant 0 : i32
    return %c0_i32, %c0_i32_0 : i32, i32
  }
  func.func @transform_13(%arg0: i32) -> (i32, i32) {
    %c0_i32 = arith.constant 0 : i32
    %c0_i32_0 = arith.constant 0 : i32
    %c0_i32_1 = arith.constant 0 : i32
    return %c0_i32, %c0_i32_0 : i32, i32
  }
  func.func @transform_14(%arg0: i32) -> (i32, i32, i32) {
    %c0_i32 = arith.constant 0 : i32
    %c0_i32_0 = arith.constant 0 : i32
    %c0_i32_1 = arith.constant 0 : i32
    return %arg0, %c0_i32, %c0_i32_0 : i32, i32, i32
  }
  func.func @transform_15(%arg0: i32) -> (i32, i32, i32) {
    %c0_i32 = arith.constant 0 : i32
    %c0_i32_0 = arith.constant 0 : i32
    %c0_i32_1 = arith.constant 0 : i32
    return %arg0, %c0_i32, %c0_i32_0 : i32, i32, i32
  }
}

</mosaic_0001>

<llo_original>
// kernel: _arconv_head.1
$region0: #{_arconv_head.1}
  #allocation0 [shape = 'u32[]', space=smem, size = 0x4, offset = 0x4, fixed_abs, tag = 'smem constant byte address 0x4 - core index']
  #allocation1 [shape = 'u32[144,128]{1,0:T(1,128)}', space=vmem, size = 0x12000, scoped, tag = 'internal scratch']
  %s0 = inlined_call_operand.vmem [shape: f32[2,8,460], index: 0, kind: input, shape index: {}]
  %s1 = inlined_call_operand.vmem [shape: f32[1,384], index: 1, kind: input, shape index: {}]
  %s2 = inlined_call_operand.vmem [shape: bf16[24,72], index: 2, kind: input, shape index: {}]
  %s3 = inlined_call_operand.vmem [shape: f32[24,1], index: 3, kind: input, shape index: {}]
  %s4 = inlined_call_operand.vmem [shape: bf16[16,144], index: 4, kind: input, shape index: {}]
  %s5 = inlined_call_operand.vmem [shape: f32[16,1], index: 5, kind: input, shape index: {}]
  %s6 = inlined_call_operand.vmem [shape: bf16[8,72], index: 6, kind: input, shape index: {}]
  %s7 = inlined_call_operand.vmem [shape: f32[8,1], index: 7, kind: input, shape index: {}]
  %s8 = inlined_call_operand.vmem [shape: bf16[16,144], index: 8, kind: input, shape index: {}]
  %s9 = inlined_call_operand.vmem [shape: f32[16,1], index: 9, kind: input, shape index: {}]
  %s10 = inlined_call_operand.vmem [shape: f32[8,72], index: 10, kind: input, shape index: {}]
  %s11 = inlined_call_operand.vmem [shape: f32[8,1], index: 11, kind: input, shape index: {}]
  %s12 = inlined_call_operand.vmem [shape: f32[8,1], index: 12, kind: input, shape index: {}]
  %s13 = inlined_call_operand.vmem [shape: f32[8,1], index: 13, kind: input, shape index: {}]
  %s14 = inlined_call_operand.hbm [shape: f32[2,16,384], index: 14, kind: output, shape index: {0}]
  %s15 = inlined_call_operand.vmem [shape: f32[2,8,384], index: 15, kind: output, shape index: {1}]
  %16 = xla_tuple %s14, %s15
  %s17 = sld [smem:[#allocation0]]
  $region97: #{_arconv_head.1} parent=0
    _
  %s19 = ssub.s32 1, %s17
  %s20 = scalar_select 0, %s19, %s17
  $region1: #{_arconv_head.1} parent=0
    #allocation2 [shape = 'u8[49152]{0}', space=vmem, size = 0xc000, scoped, tag = 'output window, operand 0']
    #allocation3 [shape = 's32[2]{0}', space=sflag, size = 0x8, scoped, tag = 'scoped memory for _arconv_head.1']
    %21 = vsyncpa [#allocation3], 0
    %s22 = scalar_lea.sflag [#allocation3], 1
    %23 = vsyncpa %s22, 0
    loop: start=0, step=1, limit=4
    $region2: #{_arconv_head.1} parent=1 // loop_pre_header
      _
    $region3: #{_arconv_head.1} parent=1 // loop_header
      %s25 = sphi 0, %s29
      %p26 = scmp.ge.s32.totalorder %s25, 4
      %s35 = sphi 0, %s37
      %s38 = sphi 0, %s35
      %s39 = sphi 0, %s38
      %s55 = sphi 0, %s39
      %s59 = sphi 0, %s59
      %s61 = sphi 0, %s59
      %s62 = sphi 0, %s61
      %s76 = sphi 0, %s62
      %s80 = sphi 0, %s80
      %s82 = sphi 0, %s80
      %s83 = sphi 0, %s82
      %s97 = sphi 0, %s83
      %s101 = sphi 0, %s101
      %s103 = sphi 0, %s101
      %s104 = sphi 0, %s103
      %s118 = sphi 0, %s104
      %s122 = sphi 0, %s122
      %s124 = sphi 0, %s122
      %s125 = sphi 0, %s124
      %s139 = sphi 0, %s125
      %s143 = sphi 0, %s143
      %s145 = sphi 0, %s143
      %s146 = sphi 0, %s145
      %s160 = sphi 0, %s146
      %s164 = sphi 0, %s164
      %s166 = sphi 0, %s164
      %s167 = sphi 0, %s166
      %s181 = sphi 0, %s167
      %s185 = sphi 0, %s185
      %s187 = sphi 0, %s185
      %s188 = sphi 0, %s187
      %s202 = sphi 0, %s188
      %s206 = sphi 0, %s206
      %s208 = sphi 0, %s206
      %s209 = sphi 0, %s208
      %s223 = sphi 0, %s209
      %s227 = sphi 0, %s227
      %s229 = sphi 0, %s227
      %s230 = sphi 0, %s229
      %s244 = sphi 0, %s230
      %s248 = sphi 0, %s248
      %s250 = sphi 0, %s248
      %s251 = sphi 0, %s250
      %s265 = sphi 0, %s251
      %s269 = sphi 0, %s269
      %s271 = sphi 0, %s269
      %s272 = sphi 0, %s271
      %s286 = sphi 0, %s272
      %s290 = sphi 0, %s290
      %s292 = sphi 0, %s290
      %s293 = sphi 0, %s292
      %s307 = sphi 0, %s293
      %s311 = sphi 0, %s311
      %s313 = sphi 0, %s311
      %s314 = sphi 0, %s313
      %s328 = sphi 0, %s314
      %s334 = sphi 0, %s336
      %s337 = sphi 0, %s334
      %s338 = sphi 0, %s337
      %s354 = sphi 0, %s338
      %s360 = sphi 0, %s362
      %s363 = sphi 0, %s360
      %s364 = sphi 0, %s363
      %s380 = sphi 0, %s364
    $region4: #{_arconv_head.1} parent=1 // loop_header_branch
      %28 = sbr.rel (%p26) target = $region8
    $region5: #{_arconv_head.1} parent=1 // loop_body
      %s30 = ssub.s32 %s25, 1
      %s31 = ssub.s32 %s25, 2
      %s32 = sadd.s32 %s25, 1
      %s33 = ssub.s32 %s25, %s32
      %p34 = scmp.eq.s32.totalorder %s33, 0
      %s36 = sadd.s32 %s35, 1
      %s37 = scalar_select %p34, %s35, %s36
      %p40 = pneg %p34
      %p41 = scmp.eq.s32.totalorder %s25, 1
      %p42 = por %p40, %p41
      %p43 = scmp.ne.s32.totalorder %s35, %s38
      %p44 = scmp.eq.s32.totalorder %s25, 0
      %p45 = por %p43, %p44
      %p46 = scmp.ne.s32.totalorder %s35, %s38
      %p47 = scmp.eq.s32.totalorder %s30, 1
      %p48 = por %p46, %p47
      %p49 = scmp.ne.s32.totalorder %s38, %s39
      %p50 = scmp.eq.s32.totalorder %s30, 0
      %p51 = por %p49, %p50
      %p52 = scmp.ne.s32.totalorder %s38, %s39
      %p53 = scmp.eq.s32.totalorder %s31, 1
      %p54 = por %p52, %p53
      %p56 = scmp.ne.s32.totalorder %s39, %s55
      %p57 = scmp.eq.s32.totalorder %s31, 0
      %p58 = por %p56, %p57
      %s60 = sadd.s32 %s59, 1
      %p63 = scmp.eq.s32.totalorder %s25, 1
      %p64 = scmp.ne.s32.totalorder %s59, %s61
      %p65 = scmp.eq.s32.totalorder %s25, 0
      %p66 = por %p64, %p65
      %p67 = scmp.ne.s32.totalorder %s59, %s61
      %p68 = scmp.eq.s32.totalorder %s30, 1
      %p69 = por %p67, %p68
      %p70 = scmp.ne.s32.totalorder %s61, %s62
      %p71 = scmp.eq.s32.totalorder %s30, 0
      %p72 = por %p70, %p71
      %p73 = scmp.ne.s32.totalorder %s61, %s62
      %p74 = scmp.eq.s32.totalorder %s31, 1
      %p75 = por %p73, %p74
      %p77 = scmp.ne.s32.totalorder %s62, %s76
      %p78 = scmp.eq.s32.totalorder %s31, 0
      %p79 = por %p77, %p78
      %s81 = sadd.s32 %s80, 1
      %p84 = scmp.eq.s32.totalorder %s25, 1
      %p85 = scmp.ne.s32.totalorder %s80, %s82
      %p86 = scmp.eq.s32.totalorder %s25, 0
      %p87 = por %p85, %p86
      %p88 = scmp.ne.s32.totalorder %s80, %s82
      %p89 = scmp.eq.s32.totalorder %s30, 1
      %p90 = por %p88, %p89
      %p91 = scmp.ne.s32.totalorder %s82, %s83
      %p92 = scmp.eq.s32.totalorder %s30, 0
      %p93 = por %p91, %p92
      %p94 = scmp.ne.s32.totalorder %s82, %s83
      %p95 = scmp.eq.s32.totalorder %s31, 1
      %p96 = por %p94, %p95
      %p98 = scmp.ne.s32.totalorder %s83, %s97
      %p99 = scmp.eq.s32.totalorder %s31, 0
      %p100 = por %p98, %p99
      %s102 = sadd.s32 %s101, 1
      %p105 = scmp.eq.s32.totalorder %s25, 1
      %p106 = scmp.ne.s32.totalorder %s101, %s103
      %p107 = scmp.eq.s32.totalorder %s25, 0
      %p108 = por %p106, %p107
      %p109 = scmp.ne.s32.totalorder %s101, %s103
      %p110 = scmp.eq.s32.totalorder %s30, 1
      %p111 = por %p109, %p110
      %p112 = scmp.ne.s32.totalorder %s103, %s104
      %p113 = scmp.eq.s32.totalorder %s30, 0
      %p114 = por %p112, %p113
      %p115 = scmp.ne.s32.totalorder %s103, %s104
      %p116 = scmp.eq.s32.totalorder %s31, 1
      %p117 = por %p115, %p116
      %p119 = scmp.ne.s32.totalorder %s104, %s118
      %p120 = scmp.eq.s32.totalorder %s31, 0
      %p121 = por %p119, %p120
      %s123 = sadd.s32 %s122, 1
      %p126 = scmp.eq.s32.totalorder %s25, 1
      %p127 = scmp.ne.s32.totalorder %s122, %s124
      %p128 = scmp.eq.s32.totalorder %s25, 0
      %p129 = por %p127, %p128
      %p130 = scmp.ne.s32.totalorder %s122, %s124
      %p131 = scmp.eq.s32.totalorder %s30, 1
      %p132 = por %p130, %p131
      %p133 = scmp.ne.s32.totalorder %s124, %s125
      %p134 = scmp.eq.s32.totalorder %s30, 0
      %p135 = por %p133, %p134
      %p136 = scmp.ne.s32.totalorder %s124, %s125
      %p137 = scmp.eq.s32.totalorder %s31, 1
      %p138 = por %p136, %p137
      %p140 = scmp.ne.s32.totalorder %s125, %s139
      %p141 = scmp.eq.s32.totalorder %s31, 0
      %p142 = por %p140, %p141
      %s144 = sadd.s32 %s143, 1
      %p147 = scmp.eq.s32.totalorder %s25, 1
      %p148 = scmp.ne.s32.totalorder %s143, %s145
      %p149 = scmp.eq.s32.totalorder %s25, 0
      %p150 = por %p148, %p149
      %p151 = scmp.ne.s32.totalorder %s143, %s145
      %p152 = scmp.eq.s32.totalorder %s30, 1
      %p153 = por %p151, %p152
      %p154 = scmp.ne.s32.totalorder %s145, %s146
      %p155 = scmp.eq.s32.totalorder %s30, 0
      %p156 = por %p154, %p155
      %p157 = scmp.ne.s32.totalorder %s145, %s146
      %p158 = scmp.eq.s32.totalorder %s31, 1
      %p159 = por %p157, %p158
      %p161 = scmp.ne.s32.totalorder %s146, %s160
      %p162 = scmp.eq.s32.totalorder %s31, 0
      %p163 = por %p161, %p162
      %s165 = sadd.s32 %s164, 1
      %p168 = scmp.eq.s32.totalorder %s25, 1
      %p169 = scmp.ne.s32.totalorder %s164, %s166
      %p170 = scmp.eq.s32.totalorder %s25, 0
      %p171 = por %p169, %p170
      %p172 = scmp.ne.s32.totalorder %s164, %s166
      %p173 = scmp.eq.s32.totalorder %s30, 1
      %p174 = por %p172, %p173
      %p175 = scmp.ne.s32.totalorder %s166, %s167
      %p176 = scmp.eq.s32.totalorder %s30, 0
      %p177 = por %p175, %p176
      %p178 = scmp.ne.s32.totalorder %s166, %s167
      %p179 = scmp.eq.s32.totalorder %s31, 1
      %p180 = por %p178, %p179
      %p182 = scmp.ne.s32.totalorder %s167, %s181
      %p183 = scmp.eq.s32.totalorder %s31, 0
      %p184 = por %p182, %p183
      %s186 = sadd.s32 %s185, 1
      %p189 = scmp.eq.s32.totalorder %s25, 1
      %p190 = scmp.ne.s32.totalorder %s185, %s187
      %p191 = scmp.eq.s32.totalorder %s25, 0
      %p192 = por %p190, %p191
      %p193 = scmp.ne.s32.totalorder %s185, %s187
      %p194 = scmp.eq.s32.totalorder %s30, 1
      %p195 = por %p193, %p194
      %p196 = scmp.ne.s32.totalorder %s187, %s188
      %p197 = scmp.eq.s32.totalorder %s30, 0
      %p198 = por %p196, %p197
      %p199 = scmp.ne.s32.totalorder %s187, %s188
      %p200 = scmp.eq.s32.totalorder %s31, 1
      %p201 = por %p199, %p200
      %p203 = scmp.ne.s32.totalorder %s188, %s202
      %p204 = scmp.eq.s32.totalorder %s31, 0
      %p205 = por %p203, %p204
      %s207 = sadd.s32 %s206, 1
      %p210 = scmp.eq.s32.totalorder %s25, 1
      %p211 = scmp.ne.s32.totalorder %s206, %s208
      %p212 = scmp.eq.s32.totalorder %s25, 0
      %p213 = por %p211, %p212
      %p214 = scmp.ne.s32.totalorder %s206, %s208
      %p215 = scmp.eq.s32.totalorder %s30, 1
      %p216 = por %p214, %p215
      %p217 = scmp.ne.s32.totalorder %s208, %s209
      %p218 = scmp.eq.s32.totalorder %s30, 0
      %p219 = por %p217, %p218
      %p220 = scmp.ne.s32.totalorder %s208, %s209
      %p221 = scmp.eq.s32.totalorder %s31, 1
      %p222 = por %p220, %p221
      %p224 = scmp.ne.s32.totalorder %s209, %s223
      %p225 = scmp.eq.s32.totalorder %s31, 0
      %p226 = por %p224, %p225
      %s228 = sadd.s32 %s227, 1
      %p231 = scmp.eq.s32.totalorder %s25, 1
      %p232 = scmp.ne.s32.totalorder %s227, %s229
      %p233 = scmp.eq.s32.totalorder %s25, 0
      %p234 = por %p232, %p233
      %p235 = scmp.ne.s32.totalorder %s227, %s229
      %p236 = scmp.eq.s32.totalorder %s30, 1
      %p237 = por %p235, %p236
      %p238 = scmp.ne.s32.totalorder %s229, %s230
      %p239 = scmp.eq.s32.totalorder %s30, 0
      %p240 = por %p238, %p239
      %p241 = scmp.ne.s32.totalorder %s229, %s230
      %p242 = scmp.eq.s32.totalorder %s31, 1
      %p243 = por %p241, %p242
      %p245 = scmp.ne.s32.totalorder %s230, %s244
      %p246 = scmp.eq.s32.totalorder %s31, 0
      %p247 = por %p245, %p246
      %s249 = sadd.s32 %s248, 1
      %p252 = scmp.eq.s32.totalorder %s25, 1
      %p253 = scmp.ne.s32.totalorder %s248, %s250
      %p254 = scmp.eq.s32.totalorder %s25, 0
      %p255 = por %p253, %p254
      %p256 = scmp.ne.s32.totalorder %s248, %s250
      %p257 = scmp.eq.s32.totalorder %s30, 1
      %p258 = por %p256, %p257
      %p259 = scmp.ne.s32.totalorder %s250, %s251
      %p260 = scmp.eq.s32.totalorder %s30, 0
      %p261 = por %p259, %p260
      %p262 = scmp.ne.s32.totalorder %s250, %s251
      %p263 = scmp.eq.s32.totalorder %s31, 1
      %p264 = por %p262, %p263
      %p266 = scmp.ne.s32.totalorder %s251, %s265
      %p267 = scmp.eq.s32.totalorder %s31, 0
      %p268 = por %p266, %p267
      %s270 = sadd.s32 %s269, 1
      %p273 = scmp.eq.s32.totalorder %s25, 1
      %p274 = scmp.ne.s32.totalorder %s269, %s271
      %p275 = scmp.eq.s32.totalorder %s25, 0
      %p276 = por %p274, %p275
      %p277 = scmp.ne.s32.totalorder %s269, %s271
      %p278 = scmp.eq.s32.totalorder %s30, 1
      %p279 = por %p277, %p278
      %p280 = scmp.ne.s32.totalorder %s271, %s272
      %p281 = scmp.eq.s32.totalorder %s30, 0
      %p282 = por %p280, %p281
      %p283 = scmp.ne.s32.totalorder %s271, %s272
      %p284 = scmp.eq.s32.totalorder %s31, 1
      %p285 = por %p283, %p284
      %p287 = scmp.ne.s32.totalorder %s272, %s286
      %p288 = scmp.eq.s32.totalorder %s31, 0
      %p289 = por %p287, %p288
      %s291 = sadd.s32 %s290, 1
      %p294 = scmp.eq.s32.totalorder %s25, 1
      %p295 = scmp.ne.s32.totalorder %s290, %s292
      %p296 = scmp.eq.s32.totalorder %s25, 0
      %p297 = por %p295, %p296
      %p298 = scmp.ne.s32.totalorder %s290, %s292
      %p299 = scmp.eq.s32.totalorder %s30, 1
      %p300 = por %p298, %p299
      %p301 = scmp.ne.s32.totalorder %s292, %s293
      %p302 = scmp.eq.s32.totalorder %s30, 0
      %p303 = por %p301, %p302
      %p304 = scmp.ne.s32.totalorder %s292, %s293
      %p305 = scmp.eq.s32.totalorder %s31, 1
      %p306 = por %p304, %p305
      %p308 = scmp.ne.s32.totalorder %s293, %s307
      %p309 = scmp.eq.s32.totalorder %s31, 0
      %p310 = por %p308, %p309
      %s312 = sadd.s32 %s311, 1
      %p315 = scmp.eq.s32.totalorder %s25, 1
      %p316 = scmp.ne.s32.totalorder %s311, %s313
      %p317 = scmp.eq.s32.totalorder %s25, 0
      %p318 = por %p316, %p317
      %p319 = scmp.ne.s32.totalorder %s311, %s313
      %p320 = scmp.eq.s32.totalorder %s30, 1
      %p321 = por %p319, %p320
      %p322 = scmp.ne.s32.totalorder %s313, %s314
      %p323 = scmp.eq.s32.totalorder %s30, 0
      %p324 = por %p322, %p323
      %p325 = scmp.ne.s32.totalorder %s313, %s314
      %p326 = scmp.eq.s32.totalorder %s31, 1
      %p327 = por %p325, %p326
      %p329 = scmp.ne.s32.totalorder %s314, %s328
      %p330 = scmp.eq.s32.totalorder %s31, 0
      %p331 = por %p329, %p330
      %s332 = ssub.s32 %s25, %s32
      %p333 = scmp.eq.s32.totalorder %s332, 0
      %s335 = sadd.s32 %s334, 1
      %s336 = scalar_select %p333, %s334, %s335
      %p339 = pneg %p333
      %p340 = scmp.eq.s32.totalorder %s25, 1
      %p341 = por %p339, %p340
      %p342 = scmp.ne.s32.totalorder %s334, %s337
      %p343 = scmp.eq.s32.totalorder %s25, 0
      %p344 = por %p342, %p343
      %p345 = scmp.ne.s32.totalorder %s334, %s337
      %p346 = scmp.eq.s32.totalorder %s30, 1
      %p347 = por %p345, %p346
      %p348 = scmp.ne.s32.totalorder %s337, %s338
      %p349 = scmp.eq.s32.totalorder %s30, 0
      %p350 = por %p348, %p349
      %p351 = scmp.ne.s32.totalorder %s337, %s338
      %p352 = scmp.eq.s32.totalorder %s31, 1
      %p353 = por %p351, %p352
      %p355 = scmp.ne.s32.totalorder %s338, %s354
      %p356 = scmp.eq.s32.totalorder %s31, 0
      %p357 = por %p355, %p356
      %s358 = ssub.s32 %s25, %s32
      %p359 = scmp.eq.s32.totalorder %s358, 0
      %s361 = sadd.s32 %s360, 1
      %s362 = scalar_select %p359, %s360, %s361
      %p365 = pneg %p359
      %p366 = scmp.eq.s32.totalorder %s25, 1
      %p367 = por %p365, %p366
      %p368 = scmp.ne.s32.totalorder %s360, %s363
      %p369 = scmp.eq.s32.totalorder %s25, 0
      %p370 = por %p368, %p369
      %p371 = scmp.ne.s32.totalorder %s360, %s363
      %p372 = scmp.eq.s32.totalorder %s30, 1
      %p373 = por %p371, %p372
      %p374 = scmp.ne.s32.totalorder %s363, %s364
      %p375 = scmp.eq.s32.totalorder %s30, 0
      %p376 = por %p374, %p375
      %p377 = scmp.ne.s32.totalorder %s363, %s364
      %p378 = scmp.eq.s32.totalorder %s31, 1
      %p379 = por %p377, %p378
      %p381 = scmp.ne.s32.totalorder %s364, %s380
      %p382 = scmp.eq.s32.totalorder %s31, 0
      %p383 = por %p381, %p382
      %p384 = scmp.le.s32.totalorder 1, %s25
      %p385 = scmp.lt.s32.totalorder %s25, 3
      %p386 = pnand %p384, %p385
      %p387 = pneg %p386
      // Predicated region
      $region9: #{_arconv_head.1} parent=5 // pred_check
        _
      $region10: #{_arconv_head.1} parent=5 // pred_check_branch
        %389 = sbr.rel (%p386) target = $region12
      $region11: #{_arconv_head.1} parent=5 // pred_region
        %s390 = ssub.s32 %s25, 1
        // Predicated region
        $region13: #{_arconv_head.1} parent=11 // pred_check
          %p391 = pneg %p72
        $region14: #{_arconv_head.1} parent=11 // pred_check_branch
          %393 = sbr.rel (%p391) target = $region16
        $region15: #{_arconv_head.1} parent=11 // pred_region
          _
        $region16: #{_arconv_head.1} parent=11 // pred_fallthru
          _
        // Predicated region
        $region17: #{_arconv_head.1} parent=11 // pred_check
          %p394 = pneg %p93
        $region18: #{_arconv_head.1} parent=11 // pred_check_branch
          %396 = sbr.rel (%p394) target = $region20
        $region19: #{_arconv_head.1} parent=11 // pred_region
          _
        $region20: #{_arconv_head.1} parent=11 // pred_fallthru
          _
        // Predicated region
        $region21: #{_arconv_head.1} parent=11 // pred_check
          %p397 = pneg %p114
        $region22: #{_arconv_head.1} parent=11 // pred_check_branch
          %399 = sbr.rel (%p397) target = $region24
        $region23: #{_arconv_head.1} parent=11 // pred_region
          _
        $region24: #{_arconv_head.1} parent=11 // pred_fallthru
          _
        // Predicated region
        $region25: #{_arconv_head.1} parent=11 // pred_check
          %p400 = pneg %p135
        $region26: #{_arconv_head.1} parent=11 // pred_check_branch
          %402 = sbr.rel (%p400) target = $region28
        $region27: #{_arconv_head.1} parent=11 // pred_region
          _
        $region28: #{_arconv_head.1} parent=11 // pred_fallthru
          _
        // Predicated region
        $region29: #{_arconv_head.1} parent=11 // pred_check
          %p403 = pneg %p156
        $region30: #{_arconv_head.1} parent=11 // pred_check_branch
          %405 = sbr.rel (%p403) target = $region32
        $region31: #{_arconv_head.1} parent=11 // pred_region
          _
        $region32: #{_arconv_head.1} parent=11 // pred_fallthru
          _
        // Predicated region
        $region33: #{_arconv_head.1} parent=11 // pred_check
          %p406 = pneg %p177
        $region34: #{_arconv_head.1} parent=11 // pred_check_branch
          %408 = sbr.rel (%p406) target = $region36
        $region35: #{_arconv_head.1} parent=11 // pred_region
          _
        $region36: #{_arconv_head.1} parent=11 // pred_fallthru
          _
        // Predicated region
        $region37: #{_arconv_head.1} parent=11 // pred_check
          %p409 = pneg %p198
        $region38: #{_arconv_head.1} parent=11 // pred_check_branch
          %411 = sbr.rel (%p409) target = $region40
        $region39: #{_arconv_head.1} parent=11 // pred_region
          _
        $region40: #{_arconv_head.1} parent=11 // pred_fallthru
          _
        // Predicated region
        $region41: #{_arconv_head.1} parent=11 // pred_check
          %p412 = pneg %p219
        $region42: #{_arconv_head.1} parent=11 // pred_check_branch
          %414 = sbr.rel (%p412) target = $region44
        $region43: #{_arconv_head.1} parent=11 // pred_region
          _
        $region44: #{_arconv_head.1} parent=11 // pred_fallthru
          _
        // Predicated region
        $region45: #{_arconv_head.1} parent=11 // pred_check
          %p415 = pneg %p240
        $region46: #{_arconv_head.1} parent=11 // pred_check_branch
          %417 = sbr.rel (%p415) target = $region48
        $region47: #{_arconv_head.1} parent=11 // pred_region
          _
        $region48: #{_arconv_head.1} parent=11 // pred_fallthru
          _
        // Predicated region
        $region49: #{_arconv_head.1} parent=11 // pred_check
          %p418 = pneg %p261
        $region50: #{_arconv_head.1} parent=11 // pred_check_branch
          %420 = sbr.rel (%p418) target = $region52
        $region51: #{_arconv_head.1} parent=11 // pred_region
          _
        $region52: #{_arconv_head.1} parent=11 // pred_fallthru
          _
        // Predicated region
        $region53: #{_arconv_head.1} parent=11 // pred_check
          %p421 = pneg %p282
        $region54: #{_arconv_head.1} parent=11 // pred_check_branch
          %423 = sbr.rel (%p421) target = $region56
        $region55: #{_arconv_head.1} parent=11 // pred_region
          _
        $region56: #{_arconv_head.1} parent=11 // pred_fallthru
          _
        // Predicated region
        $region57: #{_arconv_head.1} parent=11 // pred_check
          %p424 = pneg %p303
        $region58: #{_arconv_head.1} parent=11 // pred_check_branch
          %426 = sbr.rel (%p424) target = $region60
        $region59: #{_arconv_head.1} parent=11 // pred_region
          _
        $region60: #{_arconv_head.1} parent=11 // pred_fallthru
          _
        // Predicated region
        $region61: #{_arconv_head.1} parent=11 // pred_check
          %p427 = pneg %p324
        $region62: #{_arconv_head.1} parent=11 // pred_check_branch
          %429 = sbr.rel (%p427) target = $region64
        $region63: #{_arconv_head.1} parent=11 // pred_region
          _
        $region64: #{_arconv_head.1} parent=11 // pred_fallthru
          _
      $region12: #{_arconv_head.1} parent=5 // pred_fallthru
        _
      %p430 = scmp.lt.s32.totalorder %s25, 2
      // Predicated region
      $region65: #{_arconv_head.1} parent=5 // pred_check
        %p431 = pneg %p430
      $region66: #{_arconv_head.1} parent=5 // pred_check_branch
        %433 = sbr.rel (%p431) target = $region68
      $region67: #{_arconv_head.1} parent=5 // pred_region
        // Predicated region
        $region69: #{_arconv_head.1} parent=67 // pred_check
          %p434 = pneg %p45
        $region70: #{_arconv_head.1} parent=67 // pred_check_branch
          %436 = sbr.rel (%p434) target = $region72
        $region71: #{_arconv_head.1} parent=67 // pred_region
          %p437 = scmp.lt.s32.totalorder %s25, 1
          %s438 = scalar_select %p437, %s25, 1
          %s439 = smul.addr %s438, 4
          %s440 = smul.addr %s439, 8
          %s441 = scalar_lea.vmem %s0, %s440
        $region72: #{_arconv_head.1} parent=67 // pred_fallthru
          _
      $region68: #{_arconv_head.1} parent=5 // pred_fallthru
        _
      %p442 = scmp.le.s32.totalorder 1, %s25
      %p443 = scmp.lt.s32.totalorder %s25, 3
      %p444 = pnand %p442, %p443
      %p445 = pneg %p444
      // Predicated region
      $region73: #{_arconv_head.1} parent=5 // pred_check
        _
      $region74: #{_arconv_head.1} parent=5 // pred_check_branch
        %447 = sbr.rel (%p444) target = $region76
      $region75: #{_arconv_head.1} parent=5 // pred_region
        %s448 = ssub.s32 %s25, 1
        %p449 = scmp.lt.s32.totalorder %s30, 1
        %s450 = scalar_select %p449, %s30, 1
        %s451 = smul.addr %s450, 4
        %s452 = smul.addr %s451, 8
        %s453 = scalar_lea.vmem %s0, %s452
        %p454 = pneg %p51
        %p455 = pneg %p48
        %p456 = pneg %p72
        %p457 = pneg %p69
        %p458 = pneg %p93
        %p459 = pneg %p90
        %p460 = pneg %p114
        %p461 = pneg %p111
        %p462 = pneg %p135
        %p463 = pneg %p132
        %p464 = pneg %p156
        %p465 = pneg %p153
        %p466 = pneg %p177
        %p467 = pneg %p174
        %p468 = pneg %p198
        %p469 = pneg %p195
        %p470 = pneg %p219
        %p471 = pneg %p216
        %p472 = pneg %p240
        %p473 = pneg %p237
        %p474 = pneg %p261
        %p475 = pneg %p258
        %p476 = pneg %p282
        %p477 = pneg %p279
        %p478 = pneg %p303
        %p479 = pneg %p300
        %p480 = pneg %p324
        %p481 = pneg %p321
        %p482 = pneg %p350
        %p483 = pneg %p347
        %s484 = sand.u32 %s337, 1
        %s485 = scalar_lea.sflag [#allocation3], %s484
        %s486 = sand.u32 %s337, 1
        %s487 = smul.addr %s486, 48
        %s488 = scalar_lea.vmem [#allocation2], %s487
        %p489 = pneg %p376
        %p490 = pneg %p373
        %p491 = scmp.lt.s32.totalorder %s30, 1
        %s492 = scalar_select %p491, %s30, 1
        %s493 = smul.addr %s492, 3
        %s494 = smul.addr %s493, 8
        %s495 = scalar_lea.vmem %s15, %s494
        %p496 = scmp.lt.s32.totalorder %s30, 1
        %s497 = scalar_select %p496, %s30, 1
        %s498 = smul.addr %s497, 4
        %s499 = smul.addr %s498, 8
        %s500 = scalar_lea.vmem %s0, %s499
        %p501 = scmp.lt.s32.totalorder %s30, 1
        %s502 = scalar_select %p501, %s30, 1
        %s503 = smul.addr %s502, 3
        %s504 = smul.addr %s503, 8
        %s505 = scalar_lea.vmem %s15, %s504
        %v507 = vld [vmem:[%s1] sm:$0x7]
        %v508 = vld [vmem:[%s500] sm:$0xff]
        %v509 = vld [vmem:[%s500 + $0x8] sm:$0xff]
        %v510 = vld [vmem:[%s500 + $0x10] sm:$0xff]
        %v511 = vld [vmem:[%s500 + $0x18] sm:$0xff]
        %v512 = vld [vmem:[%s2] sm:$0xf]
        %v513 = vld [vmem:[%s2 + $0x4] sm:$0xf]
        %v514 = vld [vmem:[%s2 + $0x8] sm:$0xf]
        %519 = vrot.lane.b32.xlu0 %v508, 127
        %v520 = vpop.permute.xlu0 %519
        %521 = vrot.lane.b32.xlu0 %v509, 127
        %v522 = vpop.permute.xlu0 %521
        %523 = vrot.lane.b32.xlu0 %v510, 127
        %v524 = vpop.permute.xlu0 %523
        %525 = vrot.lane.b32.xlu0 %v511, 127
        %v526 = vpop.permute.xlu0 %525
        %vm527 = vcmask 1039360
        %v528 = vsel %vm527, %v520, %v522
        %v529 = vsel %vm527, %v522, %v524
        %v530 = vsel %vm527, %v524, %v526
        %535 = vrot.lane.b32.xlu0 %v508, 126
        %v536 = vpop.permute.xlu0 %535
        %537 = vrot.lane.b32.xlu0 %v509, 126
        %v538 = vpop.permute.xlu0 %537
        %539 = vrot.lane.b32.xlu0 %v510, 126
        %v540 = vpop.permute.xlu0 %539
        %541 = vrot.lane.b32.xlu0 %v511, 126
        %v542 = vpop.permute.xlu0 %541
        %vm543 = vcmask 1031168
        %v544 = vsel %vm543, %v536, %v538
        %v545 = vsel %vm543, %v538, %v540
        %v546 = vsel %vm543, %v540, %v542
        %551 = vrot.lane.b32.xlu0 %v508, 110
        %v552 = vpop.permute.xlu0 %551
        %553 = vrot.lane.b32.xlu0 %v509, 110
        %v554 = vpop.permute.xlu0 %553
        %555 = vrot.lane.b32.xlu0 %v510, 110
        %v556 = vpop.permute.xlu0 %555
        %557 = vrot.lane.b32.xlu0 %v511, 110
        %v558 = vpop.permute.xlu0 %557
        %vm559 = vcmask 900096
        %v560 = vsel %vm559, %v552, %v554
        %v561 = vsel %vm559, %v554, %v556
        %v562 = vsel %vm559, %v556, %v558
        %567 = vrot.lane.b32.xlu0 %v508, 109
        %v568 = vpop.permute.xlu0 %567
        %569 = vrot.lane.b32.xlu0 %v509, 109
        %v570 = vpop.permute.xlu0 %569
        %571 = vrot.lane.b32.xlu0 %v510, 109
        %v572 = vpop.permute.xlu0 %571
        %573 = vrot.lane.b32.xlu0 %v511, 109
        %v574 = vpop.permute.xlu0 %573
        %vm575 = vcmask 891904
        %v576 = vsel %vm575, %v568, %v570
        %v577 = vsel %vm575, %v570, %v572
        %v578 = vsel %vm575, %v572, %v574
        %583 = vrot.lane.b32.xlu0 %v508, 108
        %v584 = vpop.permute.xlu0 %583
        %585 = vrot.lane.b32.xlu0 %v509, 108
        %v586 = vpop.permute.xlu0 %585
        %587 = vrot.lane.b32.xlu0 %v510, 108
        %v588 = vpop.permute.xlu0 %587
        %589 = vrot.lane.b32.xlu0 %v511, 108
        %v590 = vpop.permute.xlu0 %589
        %vm591 = vcmask 883712
        %v592 = vsel %vm591, %v584, %v586
        %v593 = vsel %vm591, %v586, %v588
        %v594 = vsel %vm591, %v588, %v590
        %599 = vrot.lane.b32.xlu0 %v508, 92
        %v600 = vpop.permute.xlu0 %599
        %601 = vrot.lane.b32.xlu0 %v509, 92
        %v602 = vpop.permute.xlu0 %601
        %603 = vrot.lane.b32.xlu0 %v510, 92
        %v604 = vpop.permute.xlu0 %603
        %605 = vrot.lane.b32.xlu0 %v511, 92
        %v606 = vpop.permute.xlu0 %605
        %vm607 = vcmask 752640
        %v608 = vsel %vm607, %v600, %v602
        %v609 = vsel %vm607, %v602, %v604
        %v610 = vsel %vm607, %v604, %v606
        %615 = vrot.lane.b32.xlu0 %v508, 91
        %v616 = vpop.permute.xlu0 %615
        %617 = vrot.lane.b32.xlu0 %v509, 91
        %v618 = vpop.permute.xlu0 %617
        %619 = vrot.lane.b32.xlu0 %v510, 91
        %v620 = vpop.permute.xlu0 %619
        %621 = vrot.lane.b32.xlu0 %v511, 91
        %v622 = vpop.permute.xlu0 %621
        %vm623 = vcmask 744448
        %v624 = vsel %vm623, %v616, %v618
        %v625 = vsel %vm623, %v618, %v620
        %v626 = vsel %vm623, %v620, %v622
        %631 = vrot.lane.b32.xlu0 %v508, 90
        %v632 = vpop.permute.xlu0 %631
        %633 = vrot.lane.b32.xlu0 %v509, 90
        %v634 = vpop.permute.xlu0 %633
        %635 = vrot.lane.b32.xlu0 %v510, 90
        %v636 = vpop.permute.xlu0 %635
        %637 = vrot.lane.b32.xlu0 %v511, 90
        %v638 = vpop.permute.xlu0 %637
        %vm639 = vcmask 736256
        %v640 = vsel %vm639, %v632, %v634
        %v641 = vsel %vm639, %v634, %v636
        %v642 = vsel %vm639, %v636, %v638
        %v647 = vpack.c.bf16 %v528, %v508
        %v648 = vpack.c.bf16 %v529, %v509
        %v649 = vpack.c.bf16 %v530, %v510
        %v650 = vpack.c.bf16 %v526, %v511
        %v651 = vpack.c.bf16 %v560, %v544
        %v652 = vpack.c.bf16 %v561, %v545
        %v653 = vpack.c.bf16 %v562, %v546
        %v654 = vpack.c.bf16 %v558, %v542
        %v655 = vpack.c.bf16 %v592, %v576
        %v656 = vpack.c.bf16 %v593, %v577
        %v657 = vpack.c.bf16 %v594, %v578
        %v658 = vpack.c.bf16 %v590, %v574
        %v659 = vpack.c.bf16 %v624, %v608
        %v660 = vpack.c.bf16 %v625, %v609
        %v661 = vpack.c.bf16 %v626, %v610
        %v662 = vpack.c.bf16 %v622, %v606
        %v663 = vpack.c.bf16 %v640, %v640
        %v664 = vpack.c.bf16 %v641, %v641
        %v665 = vpack.c.bf16 %v642, %v642
        %v666 = vpack.c.bf16 %v638, %v638
        %v667 = vld [vmem:[%s3] sm:$0xff]
        %v668 = vld [vmem:[%s3 + $0x8] sm:$0xff]
        %v669 = vld [vmem:[%s3 + $0x10] sm:$0xff]
        %671 = vset.pattern.permute.xlu0 0
        %672 = vperm.xlu0 %671, %v667
        %v673 = vpop.permute.xlu0 %672
        %676 = vset.pattern.permute.xlu0 0
        %677 = vperm.xlu0 %676, %v668
        %v678 = vpop.permute.xlu0 %677
        %681 = vset.pattern.permute.xlu0 0
        %682 = vperm.xlu0 %681, %v669
        %v683 = vpop.permute.xlu0 %682
        %v688 = vunpack.c.l.b16 %v512
        %v689 = vunpack.c.l.b16 %v513
        %v690 = vunpack.c.l.b16 %v514
        %v691 = vpack.c.b16 %v689, %v688
        %v692 = vpack.c.b16 %v690, %v690
        %713 = vrot.lane.b32.xlu0 %v647, 109
        %v714 = vpop.permute.xlu0 %713
        %715 = vrot.lane.b32.xlu0 %v648, 109
        %v716 = vpop.permute.xlu0 %715
        %717 = vrot.lane.b32.xlu0 %v649, 109
        %v718 = vpop.permute.xlu0 %717
        %719 = vrot.lane.b32.xlu0 %v650, 109
        %v720 = vpop.permute.xlu0 %719
        %721 = vrot.lane.b32.xlu0 %v651, 109
        %v722 = vpop.permute.xlu0 %721
        %723 = vrot.lane.b32.xlu0 %v652, 109
        %v724 = vpop.permute.xlu0 %723
        %725 = vrot.lane.b32.xlu0 %v653, 109
        %v726 = vpop.permute.xlu0 %725
        %727 = vrot.lane.b32.xlu0 %v654, 109
        %v728 = vpop.permute.xlu0 %727
        %729 = vrot.lane.b32.xlu0 %v655, 109
        %v730 = vpop.permute.xlu0 %729
        %731 = vrot.lane.b32.xlu0 %v656, 109
        %v732 = vpop.permute.xlu0 %731
        %733 = vrot.lane.b32.xlu0 %v657, 109
        %v734 = vpop.permute.xlu0 %733
        %735 = vrot.lane.b32.xlu0 %v658, 109
        %v736 = vpop.permute.xlu0 %735
        %737 = vrot.lane.b32.xlu0 %v659, 109
        %v738 = vpop.permute.xlu0 %737
        %739 = vrot.lane.b32.xlu0 %v660, 109
        %v740 = vpop.permute.xlu0 %739
        %741 = vrot.lane.b32.xlu0 %v661, 109
        %v742 = vpop.permute.xlu0 %741
        %743 = vrot.lane.b32.xlu0 %v662, 109
        %v744 = vpop.permute.xlu0 %743
        %745 = vrot.lane.b32.xlu0 %v663, 109
        %v746 = vpop.permute.xlu0 %745
        %747 = vrot.lane.b32.xlu0 %v664, 109
        %v748 = vpop.permute.xlu0 %747
        %749 = vrot.lane.b32.xlu0 %v665, 109
        %v750 = vpop.permute.xlu0 %749
        %751 = vrot.lane.b32.xlu0 %v666, 109
        %v752 = vpop.permute.xlu0 %751
        %vm753 = vcmask 891904
        %v754 = vsel %vm753, %v714, %v716
        %v755 = vsel %vm753, %v716, %v718
        %v756 = vsel %vm753, %v718, %v720
        %v757 = vsel %vm753, %v722, %v724
        %v758 = vsel %vm753, %v724, %v726
        %v759 = vsel %vm753, %v726, %v728
        %v760 = vsel %vm753, %v730, %v732
        %v761 = vsel %vm753, %v732, %v734
        %v762 = vsel %vm753, %v734, %v736
        %v763 = vsel %vm753, %v738, %v740
        %v764 = vsel %vm753, %v740, %v742
        %v765 = vsel %vm753, %v742, %v744
        %v766 = vsel %vm753, %v746, %v748
        %v767 = vsel %vm753, %v748, %v750
        %v768 = vsel %vm753, %v750, %v752
        %vm781 = vcmask 588800
        %v783 = vsel %vm781, %v691, 0
        %v786 = vsel %vm781, %v692, 0
        %vm788 = vcmask 1043456
        %v790 = vsel %vm788, %v766, 0
        %v793 = vsel %vm788, %v767, 0
        %v796 = vsel %vm788, %v768, 0
        %798 = vmatprep.subr.bf16.mxu0 0
        %799 = vmatpush1.bf16.msra.mxu0 0
        %800 = vmatprep.subr.bf16.mxu0 0
        %801 = vmatpush1.bf16.msra.mxu0 0
        %802 = vmatprep.subr.bf16.mxu0 0
        %803 = vmatpush1.bf16.msra.mxu0 0
        %804 = vmatprep.subr.bf16.mxu0 %v793
        %805 = vmatpush1.bf16.msra.mxu0 %v790
        %806 = vmatprep.subr.bf16.mxu0 %v764
        %807 = vmatpush1.bf16.msra.mxu0 %v763
        %808 = vmatprep.subr.bf16.mxu0 %v761
        %809 = vmatpush1.bf16.msra.mxu0 %v760
        %810 = vmatprep.subr.bf16.mxu0 %v758
        %811 = vmatpush1.bf16.msra.mxu0 %v757
        %812 = vmatprep.subr.bf16.mxu0 %v755
        %813 = vmatpush1.bf16.msra.mxu0 %v754
        %814 = vmatprep.subr.bf16.mxu0 0
        %815 = vmatpush2.bf16.msra.mxu0 0
        %816 = vmatprep.subr.bf16.mxu0 0
        %817 = vmatpush2.bf16.msra.mxu0 0
        %818 = vmatprep.subr.bf16.mxu0 0
        %819 = vmatpush2.bf16.msra.mxu0 0
        %820 = vmatprep.subr.bf16.mxu0 0
        %821 = vmatpush2.bf16.msra.mxu0 0
        %822 = vmatprep.subr.bf16.mxu0 0
        %823 = vmatpush2.bf16.msra.mxu0 0
        %824 = vmatprep.subr.bf16.mxu0 0
        %825 = vmatpush2.bf16.msra.mxu0 0
        %826 = vmatprep.subr.bf16.mxu0 0
        %827 = vmatpush2.bf16.msra.mxu0 0
        %828 = vmatprep.subr.bf16.mxu0 0
        %829 = vmatpush2.bf16.msra.mxu0 0
        %830 = vmatprep.mubr.bf16.mxu0 0
        %831 = vmatmul.mubr.bf16.gmra.mxu0 %v783
        %v832 = vpop.f32.mrf.mxu0
        %v833 = vadd.f32 %v673, %v832
        %v834 = vpop.f32.mrf.mxu0
        %v835 = vadd.f32 %v673, %v834
        %v836 = vpop.f32.mrf.mxu0
        %v837 = vadd.f32 %v678, %v836
        %v838 = vpop.f32.mrf.mxu0
        %v839 = vadd.f32 %v678, %v838
        %840 = vmatprep.mubr.bf16.mxu0 0
        %841 = vmatmul.mubr.bf16.gmra.mxu0 %v786
        %v842 = vpop.f32.mrf.mxu0
        %v843 = vadd.f32 %v683, %v842
        %v844 = vpop.f32.mrf.mxu0
        %v845 = vadd.f32 %v683, %v844
        %v846 = vpop.f32.mrf.mxu0
        %v847 = vpop.f32.mrf.mxu0
        %848 = vdwg.mxu0
        %849 = vmatprep.subr.bf16.mxu0 0
        %850 = vmatpush1.bf16.msra.mxu0 0
        %851 = vmatprep.subr.bf16.mxu0 0
        %852 = vmatpush1.bf16.msra.mxu0 0
        %853 = vmatprep.subr.bf16.mxu0 0
        %854 = vmatpush1.bf16.msra.mxu0 0
        %855 = vmatprep.subr.bf16.mxu0 0
        %856 = vmatpush1.bf16.msra.mxu0 %v796
        %857 = vmatprep.subr.bf16.mxu0 0
        %858 = vmatpush1.bf16.msra.mxu0 %v765
        %859 = vmatprep.subr.bf16.mxu0 0
        %860 = vmatpush1.bf16.msra.mxu0 %v762
        %861 = vmatprep.subr.bf16.mxu0 0
        %862 = vmatpush1.bf16.msra.mxu0 %v759
        %863 = vmatprep.subr.bf16.mxu0 0
        %864 = vmatpush1.bf16.msra.mxu0 %v756
        %865 = vmatprep.subr.bf16.mxu0 0
        %866 = vmatpush2.bf16.msra.mxu0 0
        %867 = vmatprep.subr.bf16.mxu0 0
        %868 = vmatpush2.bf16.msra.mxu0 0
        %869 = vmatprep.subr.bf16.mxu0 0
        %870 = vmatpush2.bf16.msra.mxu0 0
        %871 = vmatprep.subr.bf16.mxu0 0
        %872 = vmatpush2.bf16.msra.mxu0 0
        %873 = vmatprep.subr.bf16.mxu0 0
        %874 = vmatpush2.bf16.msra.mxu0 0
        %875 = vmatprep.subr.bf16.mxu0 0
        %876 = vmatpush2.bf16.msra.mxu0 0
        %877 = vmatprep.subr.bf16.mxu0 0
        %878 = vmatpush2.bf16.msra.mxu0 0
        %879 = vmatprep.subr.bf16.mxu0 0
        %880 = vmatpush2.bf16.msra.mxu0 0
        %881 = vmatprep.mubr.bf16.mxu0 0
        %882 = vmatmul.mubr.bf16.gmra.mxu0 %v783
        %v883 = vpop.f32.mrf.mxu0
        %v884 = vadd.f32 %v673, %v883
        %v885 = vpop.f32.mrf.mxu0
        %v886 = vpop.f32.mrf.mxu0
        %v887 = vadd.f32 %v678, %v886
        %v888 = vpop.f32.mrf.mxu0
        %889 = vmatprep.mubr.bf16.mxu0 0
        %890 = vmatmul.mubr.bf16.gmra.mxu0 %v786
        %v891 = vpop.f32.mrf.mxu0
        %v892 = vadd.f32 %v683, %v891
        %v893 = vpop.f32.mrf.mxu0
        %v894 = vpop.f32.mrf.mxu0
        %v895 = vpop.f32.mrf.mxu0
        %896 = vdwg.mxu0
        %vm897 = vcmp.ge.f32.partialorder %v833, 0.0
        %vm898 = vcmp.ge.f32.partialorder %v835, 0.0
        %vm899 = vcmp.ge.f32.partialorder %v884, 0.0
        %vm900 = vcmp.ge.f32.partialorder %v837, 0.0
        %vm901 = vcmp.ge.f32.partialorder %v839, 0.0
        %vm902 = vcmp.ge.f32.partialorder %v887, 0.0
        %vm903 = vcmp.ge.f32.partialorder %v843, 0.0
        %vm904 = vcmp.ge.f32.partialorder %v845, 0.0
        %vm905 = vcmp.ge.f32.partialorder %v892, 0.0
        %v906 = vmul.f32 %v833, 0.01
        %v907 = vmul.f32 %v835, 0.01
        %v908 = vmul.f32 %v884, 0.01
        %v909 = vmul.f32 %v837, 0.01
        %v910 = vmul.f32 %v839, 0.01
        %v911 = vmul.f32 %v887, 0.01
        %v912 = vmul.f32 %v843, 0.01
        %v913 = vmul.f32 %v845, 0.01
        %v914 = vmul.f32 %v892, 0.01
        %v915 = vsel %vm897, %v833, %v906
        %v916 = vsel %vm898, %v835, %v907
        %v917 = vsel %vm899, %v884, %v908
        %v918 = vsel %vm900, %v837, %v909
        %v919 = vsel %vm901, %v839, %v910
        %v920 = vsel %vm902, %v887, %v911
        %v921 = vsel %vm903, %v843, %v912
        %v922 = vsel %vm904, %v845, %v913
        %v923 = vsel %vm905, %v892, %v914
        %v925 = vlaneseq
        %v926 = vshrl.u32 %v925, 7
        %v927 = vsub.s32 0, %v926
        %v928 = vrot.slane %v507, %v927
        %v929 = vlaneseq
        %v930 = vshrl.u32 %v929, 7
        %v931 = vsub.s32 1, %v930
        %v932 = vrot.slane %v507, %v931
        %v933 = vlaneseq
        %v934 = vshrl.u32 %v933, 7
        %v935 = vsub.s32 2, %v934
        %v936 = vrot.slane %v507, %v935
        %v940 = vmul.f32 %v915, %v928
        %v941 = vmul.f32 %v916, %v932
        %v942 = vmul.f32 %v917, %v936
        %v943 = vmul.f32 %v918, %v928
        %v944 = vmul.f32 %v919, %v932
        %v945 = vmul.f32 %v920, %v936
        %v946 = vmul.f32 %v921, %v928
        %v947 = vmul.f32 %v922, %v932
        %v948 = vmul.f32 %v923, %v936
        %v949 = vld [vmem:[%s4] sm:$0xff]
        %v950 = vld [vmem:[%s4 + $0x8] sm:$0xff]
        %957 = vrot.lane.b32.xlu0 %v940, 38
        %v958 = vpop.permute.xlu0 %957
        %959 = vrot.lane.b32.xlu0 %v941, 38
        %v960 = vpop.permute.xlu0 %959
        %961 = vrot.lane.b32.xlu0 %v942, 38
        %v962 = vpop.permute.xlu0 %961
        %963 = vrot.lane.b32.xlu0 %v943, 38
        %v964 = vpop.permute.xlu0 %963
        %965 = vrot.lane.b32.xlu0 %v944, 38
        %v966 = vpop.permute.xlu0 %965
        %967 = vrot.lane.b32.xlu0 %v945, 38
        %v968 = vpop.permute.xlu0 %967
        %vm969 = vcmask 310272
        %v970 = vsel %vm969, %v958, %v960
        %v971 = vsel %vm969, %v960, %v962
        %v972 = vsel %vm969, %v964, %v966
        %v973 = vsel %vm969, %v966, %v968
        %v982 = vsel %vm969, 0.0, %v958
        %v983 = vsel %vm969, 0.0, %v964
        %v984 = vsel %vm969, %v962, 0.0
        %v985 = vsel %vm969, %v968, 0.0
        %990 = vrot.lane.b32.xlu0 %v982, 127
        %v991 = vpop.permute.xlu0 %990
        %992 = vrot.lane.b32.xlu0 %v970, 127
        %v993 = vpop.permute.xlu0 %992
        %994 = vrot.lane.b32.xlu0 %v971, 127
        %v995 = vpop.permute.xlu0 %994
        %996 = vrot.lane.b32.xlu0 %v984, 127
        %v997 = vpop.permute.xlu0 %996
        %998 = vrot.lane.b32.xlu0 %v983, 127
        %v999 = vpop.permute.xlu0 %998
        %1000 = vrot.lane.b32.xlu0 %v972, 127
        %v1001 = vpop.permute.xlu0 %1000
        %1002 = vrot.lane.b32.xlu0 %v973, 127
        %v1003 = vpop.permute.xlu0 %1002
        %1004 = vrot.lane.b32.xlu0 %v985, 127
        %v1005 = vpop.permute.xlu0 %1004
        %v1006 = vsel %vm527, %v991, %v993
        %v1007 = vsel %vm527, %v993, %v995
        %v1008 = vsel %vm527, %v995, %v997
        %v1009 = vsel %vm527, %v999, %v1001
        %v1010 = vsel %vm527, %v1001, %v1003
        %v1011 = vsel %vm527, %v1003, %v1005
        %1020 = vrot.lane.b32.xlu0 %v982, 126
        %v1021 = vpop.permute.xlu0 %1020
        %1022 = vrot.lane.b32.xlu0 %v970, 126
        %v1023 = vpop.permute.xlu0 %1022
        %1024 = vrot.lane.b32.xlu0 %v971, 126
        %v1025 = vpop.permute.xlu0 %1024
        %1026 = vrot.lane.b32.xlu0 %v984, 126
        %v1027 = vpop.permute.xlu0 %1026
        %1028 = vrot.lane.b32.xlu0 %v983, 126
        %v1029 = vpop.permute.xlu0 %1028
        %1030 = vrot.lane.b32.xlu0 %v972, 126
        %v1031 = vpop.permute.xlu0 %1030
        %1032 = vrot.lane.b32.xlu0 %v973, 126
        %v1033 = vpop.permute.xlu0 %1032
        %1034 = vrot.lane.b32.xlu0 %v985, 126
        %v1035 = vpop.permute.xlu0 %1034
        %v1036 = vsel %vm543, %v1021, %v1023
        %v1037 = vsel %vm543, %v1023, %v1025
        %v1038 = vsel %vm543, %v1025, %v1027
        %v1039 = vsel %vm543, %v1029, %v1031
        %v1040 = vsel %vm543, %v1031, %v1033
        %v1041 = vsel %vm543, %v1033, %v1035
        %1050 = vrot.lane.b32.xlu0 %v982, 110
        %v1051 = vpop.permute.xlu0 %1050
        %1052 = vrot.lane.b32.xlu0 %v970, 110
        %v1053 = vpop.permute.xlu0 %1052
        %1054 = vrot.lane.b32.xlu0 %v971, 110
        %v1055 = vpop.permute.xlu0 %1054
        %1056 = vrot.lane.b32.xlu0 %v984, 110
        %v1057 = vpop.permute.xlu0 %1056
        %1058 = vrot.lane.b32.xlu0 %v983, 110
        %v1059 = vpop.permute.xlu0 %1058
        %1060 = vrot.lane.b32.xlu0 %v972, 110
        %v1061 = vpop.permute.xlu0 %1060
        %1062 = vrot.lane.b32.xlu0 %v973, 110
        %v1063 = vpop.permute.xlu0 %1062
        %1064 = vrot.lane.b32.xlu0 %v985, 110
        %v1065 = vpop.permute.xlu0 %1064
        %v1066 = vsel %vm559, %v1051, %v1053
        %v1067 = vsel %vm559, %v1053, %v1055
        %v1068 = vsel %vm559, %v1055, %v1057
        %v1069 = vsel %vm559, %v1059, %v1061
        %v1070 = vsel %vm559, %v1061, %v1063
        %v1071 = vsel %vm559, %v1063, %v1065
        %1080 = vrot.lane.b32.xlu0 %v982, 109
        %v1081 = vpop.permute.xlu0 %1080
        %1082 = vrot.lane.b32.xlu0 %v970, 109
        %v1083 = vpop.permute.xlu0 %1082
        %1084 = vrot.lane.b32.xlu0 %v971, 109
        %v1085 = vpop.permute.xlu0 %1084
        %1086 = vrot.lane.b32.xlu0 %v984, 109
        %v1087 = vpop.permute.xlu0 %1086
        %1088 = vrot.lane.b32.xlu0 %v983, 109
        %v1089 = vpop.permute.xlu0 %1088
        %1090 = vrot.lane.b32.xlu0 %v972, 109
        %v1091 = vpop.permute.xlu0 %1090
        %1092 = vrot.lane.b32.xlu0 %v973, 109
        %v1093 = vpop.permute.xlu0 %1092
        %1094 = vrot.lane.b32.xlu0 %v985, 109
        %v1095 = vpop.permute.xlu0 %1094
        %v1096 = vsel %vm575, %v1081, %v1083
        %v1097 = vsel %vm575, %v1083, %v1085
        %v1098 = vsel %vm575, %v1085, %v1087
        %v1099 = vsel %vm575, %v1089, %v1091
        %v1100 = vsel %vm575, %v1091, %v1093
        %v1101 = vsel %vm575, %v1093, %v1095
        %1110 = vrot.lane.b32.xlu0 %v982, 108
        %v1111 = vpop.permute.xlu0 %1110
        %1112 = vrot.lane.b32.xlu0 %v970, 108
        %v1113 = vpop.permute.xlu0 %1112
        %1114 = vrot.lane.b32.xlu0 %v971, 108
        %v1115 = vpop.permute.xlu0 %1114
        %1116 = vrot.lane.b32.xlu0 %v984, 108
        %v1117 = vpop.permute.xlu0 %1116
        %1118 = vrot.lane.b32.xlu0 %v983, 108
        %v1119 = vpop.permute.xlu0 %1118
        %1120 = vrot.lane.b32.xlu0 %v972, 108
        %v1121 = vpop.permute.xlu0 %1120
        %1122 = vrot.lane.b32.xlu0 %v973, 108
        %v1123 = vpop.permute.xlu0 %1122
        %1124 = vrot.lane.b32.xlu0 %v985, 108
        %v1125 = vpop.permute.xlu0 %1124
        %v1126 = vsel %vm591, %v1111, %v1113
        %v1127 = vsel %vm591, %v1113, %v1115
        %v1128 = vsel %vm591, %v1115, %v1117
        %v1129 = vsel %vm591, %v1119, %v1121
        %v1130 = vsel %vm591, %v1121, %v1123
        %v1131 = vsel %vm591, %v1123, %v1125
        %1140 = vrot.lane.b32.xlu0 %v982, 92
        %v1141 = vpop.permute.xlu0 %1140
        %1142 = vrot.lane.b32.xlu0 %v970, 92
        %v1143 = vpop.permute.xlu0 %1142
        %1144 = vrot.lane.b32.xlu0 %v971, 92
        %v1145 = vpop.permute.xlu0 %1144
        %1146 = vrot.lane.b32.xlu0 %v984, 92
        %v1147 = vpop.permute.xlu0 %1146
        %1148 = vrot.lane.b32.xlu0 %v983, 92
        %v1149 = vpop.permute.xlu0 %1148
        %1150 = vrot.lane.b32.xlu0 %v972, 92
        %v1151 = vpop.permute.xlu0 %1150
        %1152 = vrot.lane.b32.xlu0 %v973, 92
        %v1153 = vpop.permute.xlu0 %1152
        %1154 = vrot.lane.b32.xlu0 %v985, 92
        %v1155 = vpop.permute.xlu0 %1154
        %v1156 = vsel %vm607, %v1141, %v1143
        %v1157 = vsel %vm607, %v1143, %v1145
        %v1158 = vsel %vm607, %v1145, %v1147
        %v1159 = vsel %vm607, %v1149, %v1151
        %v1160 = vsel %vm607, %v1151, %v1153
        %v1161 = vsel %vm607, %v1153, %v1155
        %1170 = vrot.lane.b32.xlu0 %v982, 91
        %v1171 = vpop.permute.xlu0 %1170
        %1172 = vrot.lane.b32.xlu0 %v970, 91
        %v1173 = vpop.permute.xlu0 %1172
        %1174 = vrot.lane.b32.xlu0 %v971, 91
        %v1175 = vpop.permute.xlu0 %1174
        %1176 = vrot.lane.b32.xlu0 %v984, 91
        %v1177 = vpop.permute.xlu0 %1176
        %1178 = vrot.lane.b32.xlu0 %v983, 91
        %v1179 = vpop.permute.xlu0 %1178
        %1180 = vrot.lane.b32.xlu0 %v972, 91
        %v1181 = vpop.permute.xlu0 %1180
        %1182 = vrot.lane.b32.xlu0 %v973, 91
        %v1183 = vpop.permute.xlu0 %1182
        %1184 = vrot.lane.b32.xlu0 %v985, 91
        %v1185 = vpop.permute.xlu0 %1184
        %v1186 = vsel %vm623, %v1171, %v1173
        %v1187 = vsel %vm623, %v1173, %v1175
        %v1188 = vsel %vm623, %v1175, %v1177
        %v1189 = vsel %vm623, %v1179, %v1181
        %v1190 = vsel %vm623, %v1181, %v1183
        %v1191 = vsel %vm623, %v1183, %v1185
        %1200 = vrot.lane.b32.xlu0 %v982, 90
        %v1201 = vpop.permute.xlu0 %1200
        %1202 = vrot.lane.b32.xlu0 %v970, 90
        %v1203 = vpop.permute.xlu0 %1202
        %1204 = vrot.lane.b32.xlu0 %v971, 90
        %v1205 = vpop.permute.xlu0 %1204
        %1206 = vrot.lane.b32.xlu0 %v984, 90
        %v1207 = vpop.permute.xlu0 %1206
        %1208 = vrot.lane.b32.xlu0 %v983, 90
        %v1209 = vpop.permute.xlu0 %1208
        %1210 = vrot.lane.b32.xlu0 %v972, 90
        %v1211 = vpop.permute.xlu0 %1210
        %1212 = vrot.lane.b32.xlu0 %v973, 90
        %v1213 = vpop.permute.xlu0 %1212
        %1214 = vrot.lane.b32.xlu0 %v985, 90
        %v1215 = vpop.permute.xlu0 %1214
        %v1216 = vsel %vm639, %v1201, %v1203
        %v1217 = vsel %vm639, %v1203, %v1205
        %v1218 = vsel %vm639, %v1205, %v1207
        %v1219 = vsel %vm639, %v1209, %v1211
        %v1220 = vsel %vm639, %v1211, %v1213
        %v1221 = vsel %vm639, %v1213, %v1215
        %v1230 = vpack.c.bf16 %v983, %v982
        %v1231 = vpack.c.bf16 %v972, %v970
        %v1232 = vpack.c.bf16 %v973, %v971
        %v1233 = vpack.c.bf16 %v985, %v984
        %v1234 = vpack.c.bf16 %v1009, %v1006
        %v1235 = vpack.c.bf16 %v1010, %v1007
        %v1236 = vpack.c.bf16 %v1011, %v1008
        %v1237 = vpack.c.bf16 %v1005, %v997
        %v1238 = vpack.c.bf16 %v1039, %v1036
        %v1239 = vpack.c.bf16 %v1040, %v1037
        %v1240 = vpack.c.bf16 %v1041, %v1038
        %v1241 = vpack.c.bf16 %v1035, %v1027
        %v1242 = vpack.c.bf16 %v1069, %v1066
        %v1243 = vpack.c.bf16 %v1070, %v1067
        %v1244 = vpack.c.bf16 %v1071, %v1068
        %v1245 = vpack.c.bf16 %v1065, %v1057
        %v1246 = vpack.c.bf16 %v1099, %v1096
        %v1247 = vpack.c.bf16 %v1100, %v1097
        %v1248 = vpack.c.bf16 %v1101, %v1098
        %v1249 = vpack.c.bf16 %v1095, %v1087
        %v1250 = vpack.c.bf16 %v1129, %v1126
        %v1251 = vpack.c.bf16 %v1130, %v1127
        %v1252 = vpack.c.bf16 %v1131, %v1128
        %v1253 = vpack.c.bf16 %v1125, %v1117
        %v1254 = vpack.c.bf16 %v1159, %v1156
        %v1255 = vpack.c.bf16 %v1160, %v1157
        %v1256 = vpack.c.bf16 %v1161, %v1158
        %v1257 = vpack.c.bf16 %v1155, %v1147
        %v1258 = vpack.c.bf16 %v1189, %v1186
        %v1259 = vpack.c.bf16 %v1190, %v1187
        %v1260 = vpack.c.bf16 %v1191, %v1188
        %v1261 = vpack.c.bf16 %v1185, %v1177
        %v1262 = vpack.c.bf16 %v1219, %v1216
        %v1263 = vpack.c.bf16 %v1220, %v1217
        %v1264 = vpack.c.bf16 %v1221, %v1218
        %v1265 = vpack.c.bf16 %v1215, %v1207
        %v1266 = vld [vmem:[%s5] sm:$0xff]
        %v1267 = vld [vmem:[%s5 + $0x8] sm:$0xff]
        %1269 = vset.pattern.permute.xlu0 0
        %1270 = vperm.xlu0 %1269, %v1266
        %v1271 = vpop.permute.xlu0 %1270
        %1274 = vset.pattern.permute.xlu0 0
        %1275 = vperm.xlu0 %1274, %v1267
        %v1276 = vpop.permute.xlu0 %1275
        %v1280 = vunpack.c.l.b16 %v949
        %v1281 = vunpack.c.h.b16 %v949
        %v1282 = vunpack.c.l.b16 %v950
        %v1283 = vunpack.c.h.b16 %v950
        %v1284 = vpack.c.b16 %v1282, %v1280
        %v1285 = vpack.c.b16 %v1283, %v1281
        %1323 = vrot.lane.b32.xlu0 %v1230, 109
        %v1324 = vpop.permute.xlu0 %1323
        %1325 = vrot.lane.b32.xlu0 %v1231, 109
        %v1326 = vpop.permute.xlu0 %1325
        %1327 = vrot.lane.b32.xlu0 %v1232, 109
        %v1328 = vpop.permute.xlu0 %1327
        %1329 = vrot.lane.b32.xlu0 %v1233, 109
        %v1330 = vpop.permute.xlu0 %1329
        %1331 = vrot.lane.b32.xlu0 %v1234, 109
        %v1332 = vpop.permute.xlu0 %1331
        %1333 = vrot.lane.b32.xlu0 %v1235, 109
        %v1334 = vpop.permute.xlu0 %1333
        %1335 = vrot.lane.b32.xlu0 %v1236, 109
        %v1336 = vpop.permute.xlu0 %1335
        %1337 = vrot.lane.b32.xlu0 %v1237, 109
        %v1338 = vpop.permute.xlu0 %1337
        %1339 = vrot.lane.b32.xlu0 %v1238, 109
        %v1340 = vpop.permute.xlu0 %1339
        %1341 = vrot.lane.b32.xlu0 %v1239, 109
        %v1342 = vpop.permute.xlu0 %1341
        %1343 = vrot.lane.b32.xlu0 %v1240, 109
        %v1344 = vpop.permute.xlu0 %1343
        %1345 = vrot.lane.b32.xlu0 %v1241, 109
        %v1346 = vpop.permute.xlu0 %1345
        %1347 = vrot.lane.b32.xlu0 %v1242, 109
        %v1348 = vpop.permute.xlu0 %1347
        %1349 = vrot.lane.b32.xlu0 %v1243, 109
        %v1350 = vpop.permute.xlu0 %1349
        %1351 = vrot.lane.b32.xlu0 %v1244, 109
        %v1352 = vpop.permute.xlu0 %1351
        %1353 = vrot.lane.b32.xlu0 %v1245, 109
        %v1354 = vpop.permute.xlu0 %1353
        %1355 = vrot.lane.b32.xlu0 %v1246, 109
        %v1356 = vpop.permute.xlu0 %1355
        %1357 = vrot.lane.b32.xlu0 %v1247, 109
        %v1358 = vpop.permute.xlu0 %1357
        %1359 = vrot.lane.b32.xlu0 %v1248, 109
        %v1360 = vpop.permute.xlu0 %1359
        %1361 = vrot.lane.b32.xlu0 %v1249, 109
        %v1362 = vpop.permute.xlu0 %1361
        %1363 = vrot.lane.b32.xlu0 %v1250, 109
        %v1364 = vpop.permute.xlu0 %1363
        %1365 = vrot.lane.b32.xlu0 %v1251, 109
        %v1366 = vpop.permute.xlu0 %1365
        %1367 = vrot.lane.b32.xlu0 %v1252, 109
        %v1368 = vpop.permute.xlu0 %1367
        %1369 = vrot.lane.b32.xlu0 %v1253, 109
        %v1370 = vpop.permute.xlu0 %1369
        %1371 = vrot.lane.b32.xlu0 %v1254, 109
        %v1372 = vpop.permute.xlu0 %1371
        %1373 = vrot.lane.b32.xlu0 %v1255, 109
        %v1374 = vpop.permute.xlu0 %1373
        %1375 = vrot.lane.b32.xlu0 %v1256, 109
        %v1376 = vpop.permute.xlu0 %1375
        %1377 = vrot.lane.b32.xlu0 %v1257, 109
        %v1378 = vpop.permute.xlu0 %1377
        %1379 = vrot.lane.b32.xlu0 %v1258, 109
        %v1380 = vpop.permute.xlu0 %1379
        %1381 = vrot.lane.b32.xlu0 %v1259, 109
        %v1382 = vpop.permute.xlu0 %1381
        %1383 = vrot.lane.b32.xlu0 %v1260, 109
        %v1384 = vpop.permute.xlu0 %1383
        %1385 = vrot.lane.b32.xlu0 %v1261, 109
        %v1386 = vpop.permute.xlu0 %1385
        %1387 = vrot.lane.b32.xlu0 %v1262, 109
        %v1388 = vpop.permute.xlu0 %1387
        %1389 = vrot.lane.b32.xlu0 %v1263, 109
        %v1390 = vpop.permute.xlu0 %1389
        %1391 = vrot.lane.b32.xlu0 %v1264, 109
        %v1392 = vpop.permute.xlu0 %1391
        %1393 = vrot.lane.b32.xlu0 %v1265, 109
        %v1394 = vpop.permute.xlu0 %1393
        %v1395 = vsel %vm753, %v1324, %v1326
        %v1396 = vsel %vm753, %v1326, %v1328
        %v1397 = vsel %vm753, %v1328, %v1330
        %v1398 = vsel %vm753, %v1332, %v1334
        %v1399 = vsel %vm753, %v1334, %v1336
        %v1400 = vsel %vm753, %v1336, %v1338
        %v1401 = vsel %vm753, %v1340, %v1342
        %v1402 = vsel %vm753, %v1342, %v1344
        %v1403 = vsel %vm753, %v1344, %v1346
        %v1404 = vsel %vm753, %v1348, %v1350
        %v1405 = vsel %vm753, %v1350, %v1352
        %v1406 = vsel %vm753, %v1352, %v1354
        %v1407 = vsel %vm753, %v1356, %v1358
        %v1408 = vsel %vm753, %v1358, %v1360
        %v1409 = vsel %vm753, %v1360, %v1362
        %v1410 = vsel %vm753, %v1364, %v1366
        %v1411 = vsel %vm753, %v1366, %v1368
        %v1412 = vsel %vm753, %v1368, %v1370
        %v1413 = vsel %vm753, %v1372, %v1374
        %v1414 = vsel %vm753, %v1374, %v1376
        %v1415 = vsel %vm753, %v1376, %v1378
        %v1416 = vsel %vm753, %v1380, %v1382
        %v1417 = vsel %vm753, %v1382, %v1384
        %v1418 = vsel %vm753, %v1384, %v1386
        %v1419 = vsel %vm753, %v1388, %v1390
        %v1420 = vsel %vm753, %v1390, %v1392
        %v1421 = vsel %vm753, %v1392, %v1394
        %vm1449 = vcmask 130048
        %v1451 = vsel %vm1449, %v1285, 0
        %1453 = vmatprep.subr.bf16.mxu0 %v1417
        %1454 = vmatpush1.bf16.msra.mxu0 %v1416
        %1455 = vmatprep.subr.bf16.mxu0 %v1414
        %1456 = vmatpush1.bf16.msra.mxu0 %v1413
        %1457 = vmatprep.subr.bf16.mxu0 %v1411
        %1458 = vmatpush1.bf16.msra.mxu0 %v1410
        %1459 = vmatprep.subr.bf16.mxu0 %v1408
        %1460 = vmatpush1.bf16.msra.mxu0 %v1407
        %1461 = vmatprep.subr.bf16.mxu0 %v1405
        %1462 = vmatpush1.bf16.msra.mxu0 %v1404
        %1463 = vmatprep.subr.bf16.mxu0 %v1402
        %1464 = vmatpush1.bf16.msra.mxu0 %v1401
        %1465 = vmatprep.subr.bf16.mxu0 %v1399
        %1466 = vmatpush1.bf16.msra.mxu0 %v1398
        %1467 = vmatprep.subr.bf16.mxu0 %v1396
        %1468 = vmatpush1.bf16.msra.mxu0 %v1395
        %1469 = vmatprep.subr.bf16.mxu0 0
        %1470 = vmatpush2.bf16.msra.mxu0 0
        %1471 = vmatprep.subr.bf16.mxu0 0
        %1472 = vmatpush2.bf16.msra.mxu0 0
        %1473 = vmatprep.subr.bf16.mxu0 0
        %1474 = vmatpush2.bf16.msra.mxu0 0
        %1475 = vmatprep.subr.bf16.mxu0 0
        %1476 = vmatpush2.bf16.msra.mxu0 0
        %1477 = vmatprep.subr.bf16.mxu0 0
        %1478 = vmatpush2.bf16.msra.mxu0 0
        %1479 = vmatprep.subr.bf16.mxu0 0
        %1480 = vmatpush2.bf16.msra.mxu0 0
        %1481 = vmatprep.subr.bf16.mxu0 0
        %1482 = vmatpush2.bf16.msra.mxu0 0
        %1483 = vmatprep.subr.bf16.mxu0 %v1420
        %1484 = vmatpush2.bf16.msra.mxu0 %v1419
        %1485 = vmatprep.mubr.bf16.mxu0 %v1451
        %1486 = vmatmul.mubr.bf16.gmra.mxu0 %v1284
        %v1487 = vpop.f32.mrf.mxu0
        %v1488 = vadd.f32 %v1271, %v1487
        %v1489 = vpop.f32.mrf.mxu0
        %v1490 = vadd.f32 %v1271, %v1489
        %v1491 = vpop.f32.mrf.mxu0
        %v1492 = vadd.f32 %v1276, %v1491
        %v1493 = vpop.f32.mrf.mxu0
        %v1494 = vadd.f32 %v1276, %v1493
        %1495 = vdwg.mxu0
        %1496 = vmatprep.subr.bf16.mxu0 0
        %1497 = vmatpush1.bf16.msra.mxu0 %v1418
        %1498 = vmatprep.subr.bf16.mxu0 0
        %1499 = vmatpush1.bf16.msra.mxu0 %v1415
        %1500 = vmatprep.subr.bf16.mxu0 0
        %1501 = vmatpush1.bf16.msra.mxu0 %v1412
        %1502 = vmatprep.subr.bf16.mxu0 0
        %1503 = vmatpush1.bf16.msra.mxu0 %v1409
        %1504 = vmatprep.subr.bf16.mxu0 0
        %1505 = vmatpush1.bf16.msra.mxu0 %v1406
        %1506 = vmatprep.subr.bf16.mxu0 0
        %1507 = vmatpush1.bf16.msra.mxu0 %v1403
        %1508 = vmatprep.subr.bf16.mxu0 0
        %1509 = vmatpush1.bf16.msra.mxu0 %v1400
        %1510 = vmatprep.subr.bf16.mxu0 0
        %1511 = vmatpush1.bf16.msra.mxu0 %v1397
        %1512 = vmatprep.subr.bf16.mxu0 0
        %1513 = vmatpush2.bf16.msra.mxu0 0
        %1514 = vmatprep.subr.bf16.mxu0 0
        %1515 = vmatpush2.bf16.msra.mxu0 0
        %1516 = vmatprep.subr.bf16.mxu0 0
        %1517 = vmatpush2.bf16.msra.mxu0 0
        %1518 = vmatprep.subr.bf16.mxu0 0
        %1519 = vmatpush2.bf16.msra.mxu0 0
        %1520 = vmatprep.subr.bf16.mxu0 0
        %1521 = vmatpush2.bf16.msra.mxu0 0
        %1522 = vmatprep.subr.bf16.mxu0 0
        %1523 = vmatpush2.bf16.msra.mxu0 0
        %1524 = vmatprep.subr.bf16.mxu0 0
        %1525 = vmatpush2.bf16.msra.mxu0 0
        %1526 = vmatprep.subr.bf16.mxu0 0
        %1527 = vmatpush2.bf16.msra.mxu0 %v1421
        %1528 = vmatprep.mubr.bf16.mxu0 %v1451
        %1529 = vmatmul.mubr.bf16.gmra.mxu0 %v1284
        %v1530 = vpop.f32.mrf.mxu0
        %v1531 = vadd.f32 %v1271, %v1530
        %v1532 = vpop.f32.mrf.mxu0
        %v1533 = vpop.f32.mrf.mxu0
        %v1534 = vadd.f32 %v1276, %v1533
        %v1535 = vpop.f32.mrf.mxu0
        %1536 = vdwg.mxu0
        %vm1537 = vcmp.ge.f32.partialorder %v1488, 0.0
        %vm1538 = vcmp.ge.f32.partialorder %v1490, 0.0
        %vm1539 = vcmp.ge.f32.partialorder %v1531, 0.0
        %vm1540 = vcmp.ge.f32.partialorder %v1492, 0.0
        %vm1541 = vcmp.ge.f32.partialorder %v1494, 0.0
        %vm1542 = vcmp.ge.f32.partialorder %v1534, 0.0
        %v1543 = vmul.f32 %v1488, 0.01
        %v1544 = vmul.f32 %v1490, 0.01
        %v1545 = vmul.f32 %v1531, 0.01
        %v1546 = vmul.f32 %v1492, 0.01
        %v1547 = vmul.f32 %v1494, 0.01
        %v1548 = vmul.f32 %v1534, 0.01
        %v1549 = vsel %vm1537, %v1488, %v1543
        %v1550 = vsel %vm1538, %v1490, %v1544
        %v1551 = vsel %vm1539, %v1531, %v1545
        %v1552 = vsel %vm1540, %v1492, %v1546
        %v1553 = vsel %vm1541, %v1494, %v1547
        %v1554 = vsel %vm1542, %v1534, %v1548
        %v1555 = vmul.f32 %v1549, %v928
        %v1556 = vmul.f32 %v1550, %v932
        %v1557 = vmul.f32 %v1551, %v936
        %v1558 = vmul.f32 %v1552, %v928
        %v1559 = vmul.f32 %v1553, %v932
        %v1560 = vmul.f32 %v1554, %v936
        %v1561 = vld [vmem:[%s6] sm:$0xf]
        %1565 = vrot.lane.b32.xlu0 %v946, 38
        %v1566 = vpop.permute.xlu0 %1565
        %1567 = vrot.lane.b32.xlu0 %v947, 38
        %v1568 = vpop.permute.xlu0 %1567
        %1569 = vrot.lane.b32.xlu0 %v948, 38
        %v1570 = vpop.permute.xlu0 %1569
        %v1571 = vsel %vm969, %v1566, %v1568
        %v1572 = vsel %vm969, %v1568, %v1570
        %v1577 = vsel %vm969, 0.0, %v1566
        %v1578 = vsel %vm969, %v1570, 0.0
        %1581 = vrot.lane.b32.xlu0 %v1577, 127
        %v1582 = vpop.permute.xlu0 %1581
        %1583 = vrot.lane.b32.xlu0 %v1571, 127
        %v1584 = vpop.permute.xlu0 %1583
        %1585 = vrot.lane.b32.xlu0 %v1572, 127
        %v1586 = vpop.permute.xlu0 %1585
        %1587 = vrot.lane.b32.xlu0 %v1578, 127
        %v1588 = vpop.permute.xlu0 %1587
        %v1589 = vsel %vm527, %v1582, %v1584
        %v1590 = vsel %vm527, %v1584, %v1586
        %v1591 = vsel %vm527, %v1586, %v1588
        %1596 = vrot.lane.b32.xlu0 %v1577, 126
        %v1597 = vpop.permute.xlu0 %1596
        %1598 = vrot.lane.b32.xlu0 %v1571, 126
        %v1599 = vpop.permute.xlu0 %1598
        %1600 = vrot.lane.b32.xlu0 %v1572, 126
        %v1601 = vpop.permute.xlu0 %1600
        %1602 = vrot.lane.b32.xlu0 %v1578, 126
        %v1603 = vpop.permute.xlu0 %1602
        %v1604 = vsel %vm543, %v1597, %v1599
        %v1605 = vsel %vm543, %v1599, %v1601
        %v1606 = vsel %vm543, %v1601, %v1603
        %1611 = vrot.lane.b32.xlu0 %v1577, 110
        %v1612 = vpop.permute.xlu0 %1611
        %1613 = vrot.lane.b32.xlu0 %v1571, 110
        %v1614 = vpop.permute.xlu0 %1613
        %1615 = vrot.lane.b32.xlu0 %v1572, 110
        %v1616 = vpop.permute.xlu0 %1615
        %1617 = vrot.lane.b32.xlu0 %v1578, 110
        %v1618 = vpop.permute.xlu0 %1617
        %v1619 = vsel %vm559, %v1612, %v1614
        %v1620 = vsel %vm559, %v1614, %v1616
        %v1621 = vsel %vm559, %v1616, %v1618
        %1626 = vrot.lane.b32.xlu0 %v1577, 109
        %v1627 = vpop.permute.xlu0 %1626
        %1628 = vrot.lane.b32.xlu0 %v1571, 109
        %v1629 = vpop.permute.xlu0 %1628
        %1630 = vrot.lane.b32.xlu0 %v1572, 109
        %v1631 = vpop.permute.xlu0 %1630
        %1632 = vrot.lane.b32.xlu0 %v1578, 109
        %v1633 = vpop.permute.xlu0 %1632
        %v1634 = vsel %vm575, %v1627, %v1629
        %v1635 = vsel %vm575, %v1629, %v1631
        %v1636 = vsel %vm575, %v1631, %v1633
        %1641 = vrot.lane.b32.xlu0 %v1577, 108
        %v1642 = vpop.permute.xlu0 %1641
        %1643 = vrot.lane.b32.xlu0 %v1571, 108
        %v1644 = vpop.permute.xlu0 %1643
        %1645 = vrot.lane.b32.xlu0 %v1572, 108
        %v1646 = vpop.permute.xlu0 %1645
        %1647 = vrot.lane.b32.xlu0 %v1578, 108
        %v1648 = vpop.permute.xlu0 %1647
        %v1649 = vsel %vm591, %v1642, %v1644
        %v1650 = vsel %vm591, %v1644, %v1646
        %v1651 = vsel %vm591, %v1646, %v1648
        %1656 = vrot.lane.b32.xlu0 %v1577, 92
        %v1657 = vpop.permute.xlu0 %1656
        %1658 = vrot.lane.b32.xlu0 %v1571, 92
        %v1659 = vpop.permute.xlu0 %1658
        %1660 = vrot.lane.b32.xlu0 %v1572, 92
        %v1661 = vpop.permute.xlu0 %1660
        %1662 = vrot.lane.b32.xlu0 %v1578, 92
        %v1663 = vpop.permute.xlu0 %1662
        %v1664 = vsel %vm607, %v1657, %v1659
        %v1665 = vsel %vm607, %v1659, %v1661
        %v1666 = vsel %vm607, %v1661, %v1663
        %1671 = vrot.lane.b32.xlu0 %v1577, 91
        %v1672 = vpop.permute.xlu0 %1671
        %1673 = vrot.lane.b32.xlu0 %v1571, 91
        %v1674 = vpop.permute.xlu0 %1673
        %1675 = vrot.lane.b32.xlu0 %v1572, 91
        %v1676 = vpop.permute.xlu0 %1675
        %1677 = vrot.lane.b32.xlu0 %v1578, 91
        %v1678 = vpop.permute.xlu0 %1677
        %v1679 = vsel %vm623, %v1672, %v1674
        %v1680 = vsel %vm623, %v1674, %v1676
        %v1681 = vsel %vm623, %v1676, %v1678
        %1686 = vrot.lane.b32.xlu0 %v1577, 90
        %v1687 = vpop.permute.xlu0 %1686
        %1688 = vrot.lane.b32.xlu0 %v1571, 90
        %v1689 = vpop.permute.xlu0 %1688
        %1690 = vrot.lane.b32.xlu0 %v1572, 90
        %v1691 = vpop.permute.xlu0 %1690
        %1692 = vrot.lane.b32.xlu0 %v1578, 90
        %v1693 = vpop.permute.xlu0 %1692
        %v1694 = vsel %vm639, %v1687, %v1689
        %v1695 = vsel %vm639, %v1689, %v1691
        %v1696 = vsel %vm639, %v1691, %v1693
        %v1701 = vpack.c.bf16 %v1589, %v1577
        %v1702 = vpack.c.bf16 %v1590, %v1571
        %v1703 = vpack.c.bf16 %v1591, %v1572
        %v1704 = vpack.c.bf16 %v1588, %v1578
        %v1705 = vpack.c.bf16 %v1619, %v1604
        %v1706 = vpack.c.bf16 %v1620, %v1605
        %v1707 = vpack.c.bf16 %v1621, %v1606
        %v1708 = vpack.c.bf16 %v1618, %v1603
        %v1709 = vpack.c.bf16 %v1649, %v1634
        %v1710 = vpack.c.bf16 %v1650, %v1635
        %v1711 = vpack.c.bf16 %v1651, %v1636
        %v1712 = vpack.c.bf16 %v1648, %v1633
        %v1713 = vpack.c.bf16 %v1679, %v1664
        %v1714 = vpack.c.bf16 %v1680, %v1665
        %v1715 = vpack.c.bf16 %v1681, %v1666
        %v1716 = vpack.c.bf16 %v1678, %v1663
        %v1717 = vpack.c.bf16 %v1694, %v1694
        %v1718 = vpack.c.bf16 %v1695, %v1695
        %v1719 = vpack.c.bf16 %v1696, %v1696
        %v1720 = vpack.c.bf16 %v1693, %v1693
        %v1721 = vld [vmem:[%s7] sm:$0xff]
        %1723 = vset.pattern.permute.xlu0 0
        %1724 = vperm.xlu0 %1723, %v1721
        %v1725 = vpop.permute.xlu0 %1724
        %1747 = vrot.lane.b32.xlu0 %v1701, 109
        %v1748 = vpop.permute.xlu0 %1747
        %1749 = vrot.lane.b32.xlu0 %v1702, 109
        %v1750 = vpop.permute.xlu0 %1749
        %1751 = vrot.lane.b32.xlu0 %v1703, 109
        %v1752 = vpop.permute.xlu0 %1751
        %1753 = vrot.lane.b32.xlu0 %v1704, 109
        %v1754 = vpop.permute.xlu0 %1753
        %1755 = vrot.lane.b32.xlu0 %v1705, 109
        %v1756 = vpop.permute.xlu0 %1755
        %1757 = vrot.lane.b32.xlu0 %v1706, 109
        %v1758 = vpop.permute.xlu0 %1757
        %1759 = vrot.lane.b32.xlu0 %v1707, 109
        %v1760 = vpop.permute.xlu0 %1759
        %1761 = vrot.lane.b32.xlu0 %v1708, 109
        %v1762 = vpop.permute.xlu0 %1761
        %1763 = vrot.lane.b32.xlu0 %v1709, 109
        %v1764 = vpop.permute.xlu0 %1763
        %1765 = vrot.lane.b32.xlu0 %v1710, 109
        %v1766 = vpop.permute.xlu0 %1765
        %1767 = vrot.lane.b32.xlu0 %v1711, 109
        %v1768 = vpop.permute.xlu0 %1767
        %1769 = vrot.lane.b32.xlu0 %v1712, 109
        %v1770 = vpop.permute.xlu0 %1769
        %1771 = vrot.lane.b32.xlu0 %v1713, 109
        %v1772 = vpop.permute.xlu0 %1771
        %1773 = vrot.lane.b32.xlu0 %v1714, 109
        %v1774 = vpop.permute.xlu0 %1773
        %1775 = vrot.lane.b32.xlu0 %v1715, 109
        %v1776 = vpop.permute.xlu0 %1775
        %1777 = vrot.lane.b32.xlu0 %v1716, 109
        %v1778 = vpop.permute.xlu0 %1777
        %1779 = vrot.lane.b32.xlu0 %v1717, 109
        %v1780 = vpop.permute.xlu0 %1779
        %1781 = vrot.lane.b32.xlu0 %v1718, 109
        %v1782 = vpop.permute.xlu0 %1781
        %1783 = vrot.lane.b32.xlu0 %v1719, 109
        %v1784 = vpop.permute.xlu0 %1783
        %1785 = vrot.lane.b32.xlu0 %v1720, 109
        %v1786 = vpop.permute.xlu0 %1785
        %v1787 = vsel %vm753, %v1748, %v1750
        %v1788 = vsel %vm753, %v1750, %v1752
        %v1789 = vsel %vm753, %v1752, %v1754
        %v1790 = vsel %vm753, %v1756, %v1758
        %v1791 = vsel %vm753, %v1758, %v1760
        %v1792 = vsel %vm753, %v1760, %v1762
        %v1793 = vsel %vm753, %v1764, %v1766
        %v1794 = vsel %vm753, %v1766, %v1768
        %v1795 = vsel %vm753, %v1768, %v1770
        %v1796 = vsel %vm753, %v1772, %v1774
        %v1797 = vsel %vm753, %v1774, %v1776
        %v1798 = vsel %vm753, %v1776, %v1778
        %v1799 = vsel %vm753, %v1780, %v1782
        %v1800 = vsel %vm753, %v1782, %v1784
        %v1801 = vsel %vm753, %v1784, %v1786
        %v1815 = vsel %vm781, %v1561, 0
        %v1818 = vsel %vm788, %v1799, 0
        %v1821 = vsel %vm788, %v1800, 0
        %v1824 = vsel %vm788, %v1801, 0
        %1826 = vmatprep.subr.bf16.mxu0 0
        %1827 = vmatpush1.bf16.msra.mxu0 0
        %1828 = vmatprep.subr.bf16.mxu0 0
        %1829 = vmatpush1.bf16.msra.mxu0 0
        %1830 = vmatprep.subr.bf16.mxu0 0
        %1831 = vmatpush1.bf16.msra.mxu0 0
        %1832 = vmatprep.subr.bf16.mxu0 %v1821
        %1833 = vmatpush1.bf16.msra.mxu0 %v1818
        %1834 = vmatprep.subr.bf16.mxu0 %v1797
        %1835 = vmatpush1.bf16.msra.mxu0 %v1796
        %1836 = vmatprep.subr.bf16.mxu0 %v1794
        %1837 = vmatpush1.bf16.msra.mxu0 %v1793
        %1838 = vmatprep.subr.bf16.mxu0 %v1791
        %1839 = vmatpush1.bf16.msra.mxu0 %v1790
        %1840 = vmatprep.subr.bf16.mxu0 %v1788
        %1841 = vmatpush1.bf16.msra.mxu0 %v1787
        %1842 = vmatprep.subr.bf16.mxu0 0
        %1843 = vmatpush2.bf16.msra.mxu0 0
        %1844 = vmatprep.subr.bf16.mxu0 0
        %1845 = vmatpush2.bf16.msra.mxu0 0
        %1846 = vmatprep.subr.bf16.mxu0 0
        %1847 = vmatpush2.bf16.msra.mxu0 0
        %1848 = vmatprep.subr.bf16.mxu0 0
        %1849 = vmatpush2.bf16.msra.mxu0 0
        %1850 = vmatprep.subr.bf16.mxu0 0
        %1851 = vmatpush2.bf16.msra.mxu0 0
        %1852 = vmatprep.subr.bf16.mxu0 0
        %1853 = vmatpush2.bf16.msra.mxu0 0
        %1854 = vmatprep.subr.bf16.mxu0 0
        %1855 = vmatpush2.bf16.msra.mxu0 0
        %1856 = vmatprep.subr.bf16.mxu0 0
        %1857 = vmatpush2.bf16.msra.mxu0 0
        %1858 = vmatprep.mubr.bf16.mxu0 0
        %1859 = vmatmul.mubr.bf16.gmra.mxu0 %v1815
        %v1860 = vpop.f32.mrf.mxu0
        %v1861 = vadd.f32 %v1725, %v1860
        %v1862 = vpop.f32.mrf.mxu0
        %v1863 = vadd.f32 %v1725, %v1862
        %v1864 = vpop.f32.mrf.mxu0
        %v1865 = vpop.f32.mrf.mxu0
        %1866 = vdwg.mxu0
        %1867 = vmatprep.subr.bf16.mxu0 0
        %1868 = vmatpush1.bf16.msra.mxu0 0
        %1869 = vmatprep.subr.bf16.mxu0 0
        %1870 = vmatpush1.bf16.msra.mxu0 0
        %1871 = vmatprep.subr.bf16.mxu0 0
        %1872 = vmatpush1.bf16.msra.mxu0 0
        %1873 = vmatprep.subr.bf16.mxu0 0
        %1874 = vmatpush1.bf16.msra.mxu0 %v1824
        %1875 = vmatprep.subr.bf16.mxu0 0
        %1876 = vmatpush1.bf16.msra.mxu0 %v1798
        %1877 = vmatprep.subr.bf16.mxu0 0
        %1878 = vmatpush1.bf16.msra.mxu0 %v1795
        %1879 = vmatprep.subr.bf16.mxu0 0
        %1880 = vmatpush1.bf16.msra.mxu0 %v1792
        %1881 = vmatprep.subr.bf16.mxu0 0
        %1882 = vmatpush1.bf16.msra.mxu0 %v1789
        %1883 = vmatprep.subr.bf16.mxu0 0
        %1884 = vmatpush2.bf16.msra.mxu0 0
        %1885 = vmatprep.subr.bf16.mxu0 0
        %1886 = vmatpush2.bf16.msra.mxu0 0
        %1887 = vmatprep.subr.bf16.mxu0 0
        %1888 = vmatpush2.bf16.msra.mxu0 0
        %1889 = vmatprep.subr.bf16.mxu0 0
        %1890 = vmatpush2.bf16.msra.mxu0 0
        %1891 = vmatprep.subr.bf16.mxu0 0
        %1892 = vmatpush2.bf16.msra.mxu0 0
        %1893 = vmatprep.subr.bf16.mxu0 0
        %1894 = vmatpush2.bf16.msra.mxu0 0
        %1895 = vmatprep.subr.bf16.mxu0 0
        %1896 = vmatpush2.bf16.msra.mxu0 0
        %1897 = vmatprep.subr.bf16.mxu0 0
        %1898 = vmatpush2.bf16.msra.mxu0 0
        %1899 = vmatprep.mubr.bf16.mxu0 0
        %1900 = vmatmul.mubr.bf16.gmra.mxu0 %v1815
        %v1901 = vpop.f32.mrf.mxu0
        %v1902 = vadd.f32 %v1725, %v1901
        %v1903 = vpop.f32.mrf.mxu0
        %v1904 = vpop.f32.mrf.mxu0
        %v1905 = vpop.f32.mrf.mxu0
        %1906 = vdwg.mxu0
        %vm1907 = vcmp.ge.f32.partialorder %v1861, 0.0
        %vm1908 = vcmp.ge.f32.partialorder %v1863, 0.0
        %vm1909 = vcmp.ge.f32.partialorder %v1902, 0.0
        %v1910 = vmul.f32 %v1861, 0.01
        %v1911 = vmul.f32 %v1863, 0.01
        %v1912 = vmul.f32 %v1902, 0.01
        %v1913 = vsel %vm1907, %v1861, %v1910
        %v1914 = vsel %vm1908, %v1863, %v1911
        %v1915 = vsel %vm1909, %v1902, %v1912
        %v1916 = vmul.f32 %v1913, %v928
        %v1917 = vmul.f32 %v1914, %v932
        %v1918 = vmul.f32 %v1915, %v936
        %v1919 = vld [vmem:[%s8] sm:$0xff]
        %v1920 = vld [vmem:[%s8 + $0x8] sm:$0xff]
        %1927 = vrot.lane.b32.xlu0 %v1555, 38
        %v1928 = vpop.permute.xlu0 %1927
        %1929 = vrot.lane.b32.xlu0 %v1556, 38
        %v1930 = vpop.permute.xlu0 %1929
        %1931 = vrot.lane.b32.xlu0 %v1557, 38
        %v1932 = vpop.permute.xlu0 %1931
        %1933 = vrot.lane.b32.xlu0 %v1558, 38
        %v1934 = vpop.permute.xlu0 %1933
        %1935 = vrot.lane.b32.xlu0 %v1559, 38
        %v1936 = vpop.permute.xlu0 %1935
        %1937 = vrot.lane.b32.xlu0 %v1560, 38
        %v1938 = vpop.permute.xlu0 %1937
        %v1939 = vsel %vm969, %v1928, %v1930
        %v1940 = vsel %vm969, %v1930, %v1932
        %v1941 = vsel %vm969, %v1934, %v1936
        %v1942 = vsel %vm969, %v1936, %v1938
        %v1951 = vsel %vm969, 0.0, %v1928
        %v1952 = vsel %vm969, 0.0, %v1934
        %v1953 = vsel %vm969, %v1932, 0.0
        %v1954 = vsel %vm969, %v1938, 0.0
        %1959 = vrot.lane.b32.xlu0 %v1951, 127
        %v1960 = vpop.permute.xlu0 %1959
        %1961 = vrot.lane.b32.xlu0 %v1939, 127
        %v1962 = vpop.permute.xlu0 %1961
        %1963 = vrot.lane.b32.xlu0 %v1940, 127
        %v1964 = vpop.permute.xlu0 %1963
        %1965 = vrot.lane.b32.xlu0 %v1953, 127
        %v1966 = vpop.permute.xlu0 %1965
        %1967 = vrot.lane.b32.xlu0 %v1952, 127
        %v1968 = vpop.permute.xlu0 %1967
        %1969 = vrot.lane.b32.xlu0 %v1941, 127
        %v1970 = vpop.permute.xlu0 %1969
        %1971 = vrot.lane.b32.xlu0 %v1942, 127
        %v1972 = vpop.permute.xlu0 %1971
        %1973 = vrot.lane.b32.xlu0 %v1954, 127
        %v1974 = vpop.permute.xlu0 %1973
        %v1975 = vsel %vm527, %v1960, %v1962
        %v1976 = vsel %vm527, %v1962, %v1964
        %v1977 = vsel %vm527, %v1964, %v1966
        %v1978 = vsel %vm527, %v1968, %v1970
        %v1979 = vsel %vm527, %v1970, %v1972
        %v1980 = vsel %vm527, %v1972, %v1974
        %1989 = vrot.lane.b32.xlu0 %v1951, 126
        %v1990 = vpop.permute.xlu0 %1989
        %1991 = vrot.lane.b32.xlu0 %v1939, 126
        %v1992 = vpop.permute.xlu0 %1991
        %1993 = vrot.lane.b32.xlu0 %v1940, 126
        %v1994 = vpop.permute.xlu0 %1993
        %1995 = vrot.lane.b32.xlu0 %v1953, 126
        %v1996 = vpop.permute.xlu0 %1995
        %1997 = vrot.lane.b32.xlu0 %v1952, 126
        %v1998 = vpop.permute.xlu0 %1997
        %1999 = vrot.lane.b32.xlu0 %v1941, 126
        %v2000 = vpop.permute.xlu0 %1999
        %2001 = vrot.lane.b32.xlu0 %v1942, 126
        %v2002 = vpop.permute.xlu0 %2001
        %2003 = vrot.lane.b32.xlu0 %v1954, 126
        %v2004 = vpop.permute.xlu0 %2003
        %v2005 = vsel %vm543, %v1990, %v1992
        %v2006 = vsel %vm543, %v1992, %v1994
        %v2007 = vsel %vm543, %v1994, %v1996
        %v2008 = vsel %vm543, %v1998, %v2000
        %v2009 = vsel %vm543, %v2000, %v2002
        %v2010 = vsel %vm543, %v2002, %v2004
        %2019 = vrot.lane.b32.xlu0 %v1951, 110
        %v2020 = vpop.permute.xlu0 %2019
        %2021 = vrot.lane.b32.xlu0 %v1939, 110
        %v2022 = vpop.permute.xlu0 %2021
        %2023 = vrot.lane.b32.xlu0 %v1940, 110
        %v2024 = vpop.permute.xlu0 %2023
        %2025 = vrot.lane.b32.xlu0 %v1953, 110
        %v2026 = vpop.permute.xlu0 %2025
        %2027 = vrot.lane.b32.xlu0 %v1952, 110
        %v2028 = vpop.permute.xlu0 %2027
        %2029 = vrot.lane.b32.xlu0 %v1941, 110
        %v2030 = vpop.permute.xlu0 %2029
        %2031 = vrot.lane.b32.xlu0 %v1942, 110
        %v2032 = vpop.permute.xlu0 %2031
        %2033 = vrot.lane.b32.xlu0 %v1954, 110
        %v2034 = vpop.permute.xlu0 %2033
        %v2035 = vsel %vm559, %v2020, %v2022
        %v2036 = vsel %vm559, %v2022, %v2024
        %v2037 = vsel %vm559, %v2024, %v2026
        %v2038 = vsel %vm559, %v2028, %v2030
        %v2039 = vsel %vm559, %v2030, %v2032
        %v2040 = vsel %vm559, %v2032, %v2034
        %2049 = vrot.lane.b32.xlu0 %v1951, 109
        %v2050 = vpop.permute.xlu0 %2049
        %2051 = vrot.lane.b32.xlu0 %v1939, 109
        %v2052 = vpop.permute.xlu0 %2051
        %2053 = vrot.lane.b32.xlu0 %v1940, 109
        %v2054 = vpop.permute.xlu0 %2053
        %2055 = vrot.lane.b32.xlu0 %v1953, 109
        %v2056 = vpop.permute.xlu0 %2055
        %2057 = vrot.lane.b32.xlu0 %v1952, 109
        %v2058 = vpop.permute.xlu0 %2057
        %2059 = vrot.lane.b32.xlu0 %v1941, 109
        %v2060 = vpop.permute.xlu0 %2059
        %2061 = vrot.lane.b32.xlu0 %v1942, 109
        %v2062 = vpop.permute.xlu0 %2061
        %2063 = vrot.lane.b32.xlu0 %v1954, 109
        %v2064 = vpop.permute.xlu0 %2063
        %v2065 = vsel %vm575, %v2050, %v2052
        %v2066 = vsel %vm575, %v2052, %v2054
        %v2067 = vsel %vm575, %v2054, %v2056
        %v2068 = vsel %vm575, %v2058, %v2060
        %v2069 = vsel %vm575, %v2060, %v2062
        %v2070 = vsel %vm575, %v2062, %v2064
        %2079 = vrot.lane.b32.xlu0 %v1951, 108
        %v2080 = vpop.permute.xlu0 %2079
        %2081 = vrot.lane.b32.xlu0 %v1939, 108
        %v2082 = vpop.permute.xlu0 %2081
        %2083 = vrot.lane.b32.xlu0 %v1940, 108
        %v2084 = vpop.permute.xlu0 %2083
        %2085 = vrot.lane.b32.xlu0 %v1953, 108
        %v2086 = vpop.permute.xlu0 %2085
        %2087 = vrot.lane.b32.xlu0 %v1952, 108
        %v2088 = vpop.permute.xlu0 %2087
        %2089 = vrot.lane.b32.xlu0 %v1941, 108
        %v2090 = vpop.permute.xlu0 %2089
        %2091 = vrot.lane.b32.xlu0 %v1942, 108
        %v2092 = vpop.permute.xlu0 %2091
        %2093 = vrot.lane.b32.xlu0 %v1954, 108
        %v2094 = vpop.permute.xlu0 %2093
        %v2095 = vsel %vm591, %v2080, %v2082
        %v2096 = vsel %vm591, %v2082, %v2084
        %v2097 = vsel %vm591, %v2084, %v2086
        %v2098 = vsel %vm591, %v2088, %v2090
        %v2099 = vsel %vm591, %v2090, %v2092
        %v2100 = vsel %vm591, %v2092, %v2094
        %2109 = vrot.lane.b32.xlu0 %v1951, 92
        %v2110 = vpop.permute.xlu0 %2109
        %2111 = vrot.lane.b32.xlu0 %v1939, 92
        %v2112 = vpop.permute.xlu0 %2111
        %2113 = vrot.lane.b32.xlu0 %v1940, 92
        %v2114 = vpop.permute.xlu0 %2113
        %2115 = vrot.lane.b32.xlu0 %v1953, 92
        %v2116 = vpop.permute.xlu0 %2115
        %2117 = vrot.lane.b32.xlu0 %v1952, 92
        %v2118 = vpop.permute.xlu0 %2117
        %2119 = vrot.lane.b32.xlu0 %v1941, 92
        %v2120 = vpop.permute.xlu0 %2119
        %2121 = vrot.lane.b32.xlu0 %v1942, 92
        %v2122 = vpop.permute.xlu0 %2121
        %2123 = vrot.lane.b32.xlu0 %v1954, 92
        %v2124 = vpop.permute.xlu0 %2123
        %v2125 = vsel %vm607, %v2110, %v2112
        %v2126 = vsel %vm607, %v2112, %v2114
        %v2127 = vsel %vm607, %v2114, %v2116
        %v2128 = vsel %vm607, %v2118, %v2120
        %v2129 = vsel %vm607, %v2120, %v2122
        %v2130 = vsel %vm607, %v2122, %v2124
        %2139 = vrot.lane.b32.xlu0 %v1951, 91
        %v2140 = vpop.permute.xlu0 %2139
        %2141 = vrot.lane.b32.xlu0 %v1939, 91
        %v2142 = vpop.permute.xlu0 %2141
        %2143 = vrot.lane.b32.xlu0 %v1940, 91
        %v2144 = vpop.permute.xlu0 %2143
        %2145 = vrot.lane.b32.xlu0 %v1953, 91
        %v2146 = vpop.permute.xlu0 %2145
        %2147 = vrot.lane.b32.xlu0 %v1952, 91
        %v2148 = vpop.permute.xlu0 %2147
        %2149 = vrot.lane.b32.xlu0 %v1941, 91
        %v2150 = vpop.permute.xlu0 %2149
        %2151 = vrot.lane.b32.xlu0 %v1942, 91
        %v2152 = vpop.permute.xlu0 %2151
        %2153 = vrot.lane.b32.xlu0 %v1954, 91
        %v2154 = vpop.permute.xlu0 %2153
        %v2155 = vsel %vm623, %v2140, %v2142
        %v2156 = vsel %vm623, %v2142, %v2144
        %v2157 = vsel %vm623, %v2144, %v2146
        %v2158 = vsel %vm623, %v2148, %v2150
        %v2159 = vsel %vm623, %v2150, %v2152
        %v2160 = vsel %vm623, %v2152, %v2154
        %2169 = vrot.lane.b32.xlu0 %v1951, 90
        %v2170 = vpop.permute.xlu0 %2169
        %2171 = vrot.lane.b32.xlu0 %v1939, 90
        %v2172 = vpop.permute.xlu0 %2171
        %2173 = vrot.lane.b32.xlu0 %v1940, 90
        %v2174 = vpop.permute.xlu0 %2173
        %2175 = vrot.lane.b32.xlu0 %v1953, 90
        %v2176 = vpop.permute.xlu0 %2175
        %2177 = vrot.lane.b32.xlu0 %v1952, 90
        %v2178 = vpop.permute.xlu0 %2177
        %2179 = vrot.lane.b32.xlu0 %v1941, 90
        %v2180 = vpop.permute.xlu0 %2179
        %2181 = vrot.lane.b32.xlu0 %v1942, 90
        %v2182 = vpop.permute.xlu0 %2181
        %2183 = vrot.lane.b32.xlu0 %v1954, 90
        %v2184 = vpop.permute.xlu0 %2183
        %v2185 = vsel %vm639, %v2170, %v2172
        %v2186 = vsel %vm639, %v2172, %v2174
        %v2187 = vsel %vm639, %v2174, %v2176
        %v2188 = vsel %vm639, %v2178, %v2180
        %v2189 = vsel %vm639, %v2180, %v2182
        %v2190 = vsel %vm639, %v2182, %v2184
        %v2199 = vpack.c.bf16 %v1952, %v1951
        %v2200 = vpack.c.bf16 %v1941, %v1939
        %v2201 = vpack.c.bf16 %v1942, %v1940
        %v2202 = vpack.c.bf16 %v1954, %v1953
        %v2203 = vpack.c.bf16 %v1978, %v1975
        %v2204 = vpack.c.bf16 %v1979, %v1976
        %v2205 = vpack.c.bf16 %v1980, %v1977
        %v2206 = vpack.c.bf16 %v1974, %v1966
        %v2207 = vpack.c.bf16 %v2008, %v2005
        %v2208 = vpack.c.bf16 %v2009, %v2006
        %v2209 = vpack.c.bf16 %v2010, %v2007
        %v2210 = vpack.c.bf16 %v2004, %v1996
        %v2211 = vpack.c.bf16 %v2038, %v2035
        %v2212 = vpack.c.bf16 %v2039, %v2036
        %v2213 = vpack.c.bf16 %v2040, %v2037
        %v2214 = vpack.c.bf16 %v2034, %v2026
        %v2215 = vpack.c.bf16 %v2068, %v2065
        %v2216 = vpack.c.bf16 %v2069, %v2066
        %v2217 = vpack.c.bf16 %v2070, %v2067
        %v2218 = vpack.c.bf16 %v2064, %v2056
        %v2219 = vpack.c.bf16 %v2098, %v2095
        %v2220 = vpack.c.bf16 %v2099, %v2096
        %v2221 = vpack.c.bf16 %v2100, %v2097
        %v2222 = vpack.c.bf16 %v2094, %v2086
        %v2223 = vpack.c.bf16 %v2128, %v2125
        %v2224 = vpack.c.bf16 %v2129, %v2126
        %v2225 = vpack.c.bf16 %v2130, %v2127
        %v2226 = vpack.c.bf16 %v2124, %v2116
        %v2227 = vpack.c.bf16 %v2158, %v2155
        %v2228 = vpack.c.bf16 %v2159, %v2156
        %v2229 = vpack.c.bf16 %v2160, %v2157
        %v2230 = vpack.c.bf16 %v2154, %v2146
        %v2231 = vpack.c.bf16 %v2188, %v2185
        %v2232 = vpack.c.bf16 %v2189, %v2186
        %v2233 = vpack.c.bf16 %v2190, %v2187
        %v2234 = vpack.c.bf16 %v2184, %v2176
        %v2235 = vld [vmem:[%s9] sm:$0xff]
        %v2236 = vld [vmem:[%s9 + $0x8] sm:$0xff]
        %2238 = vset.pattern.permute.xlu0 0
        %2239 = vperm.xlu0 %2238, %v2235
        %v2240 = vpop.permute.xlu0 %2239
        %2243 = vset.pattern.permute.xlu0 0
        %2244 = vperm.xlu0 %2243, %v2236
        %v2245 = vpop.permute.xlu0 %2244
        %v2249 = vunpack.c.l.b16 %v1919
        %v2250 = vunpack.c.h.b16 %v1919
        %v2251 = vunpack.c.l.b16 %v1920
        %v2252 = vunpack.c.h.b16 %v1920
        %v2253 = vpack.c.b16 %v2251, %v2249
        %v2254 = vpack.c.b16 %v2252, %v2250
        %2292 = vrot.lane.b32.xlu0 %v2199, 109
        %v2293 = vpop.permute.xlu0 %2292
        %2294 = vrot.lane.b32.xlu0 %v2200, 109
        %v2295 = vpop.permute.xlu0 %2294
        %2296 = vrot.lane.b32.xlu0 %v2201, 109
        %v2297 = vpop.permute.xlu0 %2296
        %2298 = vrot.lane.b32.xlu0 %v2202, 109
        %v2299 = vpop.permute.xlu0 %2298
        %2300 = vrot.lane.b32.xlu0 %v2203, 109
        %v2301 = vpop.permute.xlu0 %2300
        %2302 = vrot.lane.b32.xlu0 %v2204, 109
        %v2303 = vpop.permute.xlu0 %2302
        %2304 = vrot.lane.b32.xlu0 %v2205, 109
        %v2305 = vpop.permute.xlu0 %2304
        %2306 = vrot.lane.b32.xlu0 %v2206, 109
        %v2307 = vpop.permute.xlu0 %2306
        %2308 = vrot.lane.b32.xlu0 %v2207, 109
        %v2309 = vpop.permute.xlu0 %2308
        %2310 = vrot.lane.b32.xlu0 %v2208, 109
        %v2311 = vpop.permute.xlu0 %2310
        %2312 = vrot.lane.b32.xlu0 %v2209, 109
        %v2313 = vpop.permute.xlu0 %2312
        %2314 = vrot.lane.b32.xlu0 %v2210, 109
        %v2315 = vpop.permute.xlu0 %2314
        %2316 = vrot.lane.b32.xlu0 %v2211, 109
        %v2317 = vpop.permute.xlu0 %2316
        %2318 = vrot.lane.b32.xlu0 %v2212, 109
        %v2319 = vpop.permute.xlu0 %2318
        %2320 = vrot.lane.b32.xlu0 %v2213, 109
        %v2321 = vpop.permute.xlu0 %2320
        %2322 = vrot.lane.b32.xlu0 %v2214, 109
        %v2323 = vpop.permute.xlu0 %2322
        %2324 = vrot.lane.b32.xlu0 %v2215, 109
        %v2325 = vpop.permute.xlu0 %2324
        %2326 = vrot.lane.b32.xlu0 %v2216, 109
        %v2327 = vpop.permute.xlu0 %2326
        %2328 = vrot.lane.b32.xlu0 %v2217, 109
        %v2329 = vpop.permute.xlu0 %2328
        %2330 = vrot.lane.b32.xlu0 %v2218, 109
        %v2331 = vpop.permute.xlu0 %2330
        %2332 = vrot.lane.b32.xlu0 %v2219, 109
        %v2333 = vpop.permute.xlu0 %2332
        %2334 = vrot.lane.b32.xlu0 %v2220, 109
        %v2335 = vpop.permute.xlu0 %2334
        %2336 = vrot.lane.b32.xlu0 %v2221, 109
        %v2337 = vpop.permute.xlu0 %2336
        %2338 = vrot.lane.b32.xlu0 %v2222, 109
        %v2339 = vpop.permute.xlu0 %2338
        %2340 = vrot.lane.b32.xlu0 %v2223, 109
        %v2341 = vpop.permute.xlu0 %2340
        %2342 = vrot.lane.b32.xlu0 %v2224, 109
        %v2343 = vpop.permute.xlu0 %2342
        %2344 = vrot.lane.b32.xlu0 %v2225, 109
        %v2345 = vpop.permute.xlu0 %2344
        %2346 = vrot.lane.b32.xlu0 %v2226, 109
        %v2347 = vpop.permute.xlu0 %2346
        %2348 = vrot.lane.b32.xlu0 %v2227, 109
        %v2349 = vpop.permute.xlu0 %2348
        %2350 = vrot.lane.b32.xlu0 %v2228, 109
        %v2351 = vpop.permute.xlu0 %2350
        %2352 = vrot.lane.b32.xlu0 %v2229, 109
        %v2353 = vpop.permute.xlu0 %2352
        %2354 = vrot.lane.b32.xlu0 %v2230, 109
        %v2355 = vpop.permute.xlu0 %2354
        %2356 = vrot.lane.b32.xlu0 %v2231, 109
        %v2357 = vpop.permute.xlu0 %2356
        %2358 = vrot.lane.b32.xlu0 %v2232, 109
        %v2359 = vpop.permute.xlu0 %2358
        %2360 = vrot.lane.b32.xlu0 %v2233, 109
        %v2361 = vpop.permute.xlu0 %2360
        %2362 = vrot.lane.b32.xlu0 %v2234, 109
        %v2363 = vpop.permute.xlu0 %2362
        %v2364 = vsel %vm753, %v2293, %v2295
        %v2365 = vsel %vm753, %v2295, %v2297
        %v2366 = vsel %vm753, %v2297, %v2299
        %v2367 = vsel %vm753, %v2301, %v2303
        %v2368 = vsel %vm753, %v2303, %v2305
        %v2369 = vsel %vm753, %v2305, %v2307
        %v2370 = vsel %vm753, %v2309, %v2311
        %v2371 = vsel %vm753, %v2311, %v2313
        %v2372 = vsel %vm753, %v2313, %v2315
        %v2373 = vsel %vm753, %v2317, %v2319
        %v2374 = vsel %vm753, %v2319, %v2321
        %v2375 = vsel %vm753, %v2321, %v2323
        %v2376 = vsel %vm753, %v2325, %v2327
        %v2377 = vsel %vm753, %v2327, %v2329
        %v2378 = vsel %vm753, %v2329, %v2331
        %v2379 = vsel %vm753, %v2333, %v2335
        %v2380 = vsel %vm753, %v2335, %v2337
        %v2381 = vsel %vm753, %v2337, %v2339
        %v2382 = vsel %vm753, %v2341, %v2343
        %v2383 = vsel %vm753, %v2343, %v2345
        %v2384 = vsel %vm753, %v2345, %v2347
        %v2385 = vsel %vm753, %v2349, %v2351
        %v2386 = vsel %vm753, %v2351, %v2353
        %v2387 = vsel %vm753, %v2353, %v2355
        %v2388 = vsel %vm753, %v2357, %v2359
        %v2389 = vsel %vm753, %v2359, %v2361
        %v2390 = vsel %vm753, %v2361, %v2363
        %v2419 = vsel %vm1449, %v2254, 0
        %2421 = vmatprep.subr.bf16.mxu0 %v2386
        %2422 = vmatpush1.bf16.msra.mxu0 %v2385
        %2423 = vmatprep.subr.bf16.mxu0 %v2383
        %2424 = vmatpush1.bf16.msra.mxu0 %v2382
        %2425 = vmatprep.subr.bf16.mxu0 %v2380
        %2426 = vmatpush1.bf16.msra.mxu0 %v2379
        %2427 = vmatprep.subr.bf16.mxu0 %v2377
        %2428 = vmatpush1.bf16.msra.mxu0 %v2376
        %2429 = vmatprep.subr.bf16.mxu0 %v2374
        %2430 = vmatpush1.bf16.msra.mxu0 %v2373
        %2431 = vmatprep.subr.bf16.mxu0 %v2371
        %2432 = vmatpush1.bf16.msra.mxu0 %v2370
        %2433 = vmatprep.subr.bf16.mxu0 %v2368
        %2434 = vmatpush1.bf16.msra.mxu0 %v2367
        %2435 = vmatprep.subr.bf16.mxu0 %v2365
        %2436 = vmatpush1.bf16.msra.mxu0 %v2364
        %2437 = vmatprep.subr.bf16.mxu0 0
        %2438 = vmatpush2.bf16.msra.mxu0 0
        %2439 = vmatprep.subr.bf16.mxu0 0
        %2440 = vmatpush2.bf16.msra.mxu0 0
        %2441 = vmatprep.subr.bf16.mxu0 0
        %2442 = vmatpush2.bf16.msra.mxu0 0
        %2443 = vmatprep.subr.bf16.mxu0 0
        %2444 = vmatpush2.bf16.msra.mxu0 0
        %2445 = vmatprep.subr.bf16.mxu0 0
        %2446 = vmatpush2.bf16.msra.mxu0 0
        %2447 = vmatprep.subr.bf16.mxu0 0
        %2448 = vmatpush2.bf16.msra.mxu0 0
        %2449 = vmatprep.subr.bf16.mxu0 0
        %2450 = vmatpush2.bf16.msra.mxu0 0
        %2451 = vmatprep.subr.bf16.mxu0 %v2389
        %2452 = vmatpush2.bf16.msra.mxu0 %v2388
        %2453 = vmatprep.mubr.bf16.mxu0 %v2419
        %2454 = vmatmul.mubr.bf16.gmra.mxu0 %v2253
        %v2455 = vpop.f32.mrf.mxu0
        %v2456 = vadd.f32 %v2240, %v2455
        %v2457 = vpop.f32.mrf.mxu0
        %v2458 = vadd.f32 %v2240, %v2457
        %v2459 = vpop.f32.mrf.mxu0
        %v2460 = vadd.f32 %v2245, %v2459
        %v2461 = vpop.f32.mrf.mxu0
        %v2462 = vadd.f32 %v2245, %v2461
        %2463 = vdwg.mxu0
        %2464 = vmatprep.subr.bf16.mxu0 0
        %2465 = vmatpush1.bf16.msra.mxu0 %v2387
        %2466 = vmatprep.subr.bf16.mxu0 0
        %2467 = vmatpush1.bf16.msra.mxu0 %v2384
        %2468 = vmatprep.subr.bf16.mxu0 0
        %2469 = vmatpush1.bf16.msra.mxu0 %v2381
        %2470 = vmatprep.subr.bf16.mxu0 0
        %2471 = vmatpush1.bf16.msra.mxu0 %v2378
        %2472 = vmatprep.subr.bf16.mxu0 0
        %2473 = vmatpush1.bf16.msra.mxu0 %v2375
        %2474 = vmatprep.subr.bf16.mxu0 0
        %2475 = vmatpush1.bf16.msra.mxu0 %v2372
        %2476 = vmatprep.subr.bf16.mxu0 0
        %2477 = vmatpush1.bf16.msra.mxu0 %v2369
        %2478 = vmatprep.subr.bf16.mxu0 0
        %2479 = vmatpush1.bf16.msra.mxu0 %v2366
        %2480 = vmatprep.subr.bf16.mxu0 0
        %2481 = vmatpush2.bf16.msra.mxu0 0
        %2482 = vmatprep.subr.bf16.mxu0 0
        %2483 = vmatpush2.bf16.msra.mxu0 0
        %2484 = vmatprep.subr.bf16.mxu0 0
        %2485 = vmatpush2.bf16.msra.mxu0 0
        %2486 = vmatprep.subr.bf16.mxu0 0
        %2487 = vmatpush2.bf16.msra.mxu0 0
        %2488 = vmatprep.subr.bf16.mxu0 0
        %2489 = vmatpush2.bf16.msra.mxu0 0
        %2490 = vmatprep.subr.bf16.mxu0 0
        %2491 = vmatpush2.bf16.msra.mxu0 0
        %2492 = vmatprep.subr.bf16.mxu0 0
        %2493 = vmatpush2.bf16.msra.mxu0 0
        %2494 = vmatprep.subr.bf16.mxu0 0
        %2495 = vmatpush2.bf16.msra.mxu0 %v2390
        %2496 = vmatprep.mubr.bf16.mxu0 %v2419
        %2497 = vmatmul.mubr.bf16.gmra.mxu0 %v2253
        %v2498 = vpop.f32.mrf.mxu0
        %v2499 = vadd.f32 %v2240, %v2498
        %v2500 = vpop.f32.mrf.mxu0
        %v2501 = vpop.f32.mrf.mxu0
        %v2502 = vadd.f32 %v2245, %v2501
        %v2503 = vpop.f32.mrf.mxu0
        %2504 = vdwg.mxu0
        %v2505 = vtanh.pop %v2456
        %v2506 = vtanh.pop %v2458
        %v2507 = vtanh.pop %v2499
        %2508 = vst [vmem:[%s488] sm:$0xff] %v2505
        %2509 = vst [vmem:[%s488 + $0x8] sm:$0xff] %v2506
        %2510 = vst [vmem:[%s488 + $0x10] sm:$0xff] %v2507
        %2511 = vst [vmem:[%s488 + $0x18] sm:$0xff] %v2460
        %2512 = vst [vmem:[%s488 + $0x20] sm:$0xff] %v2462
        %2513 = vst [vmem:[%s488 + $0x28] sm:$0xff] %v2502
        %v2514 = vld [vmem:[%s10] sm:$0xff]
        %2518 = vrot.lane.b32.xlu0 %v1916, 38
        %v2519 = vpop.permute.xlu0 %2518
        %2520 = vrot.lane.b32.xlu0 %v1917, 38
        %v2521 = vpop.permute.xlu0 %2520
        %2522 = vrot.lane.b32.xlu0 %v1918, 38
        %v2523 = vpop.permute.xlu0 %2522
        %v2524 = vsel %vm969, %v2519, %v2521
        %v2525 = vsel %vm969, %v2521, %v2523
        %v2530 = vsel %vm969, 0.0, %v2519
        %v2531 = vsel %vm969, %v2523, 0.0
        %2534 = vrot.lane.b32.xlu0 %v2530, 126
        %v2535 = vpop.permute.xlu0 %2534
        %2536 = vrot.lane.b32.xlu0 %v2524, 126
        %v2537 = vpop.permute.xlu0 %2536
        %2538 = vrot.lane.b32.xlu0 %v2525, 126
        %v2539 = vpop.permute.xlu0 %2538
        %2540 = vrot.lane.b32.xlu0 %v2531, 126
        %v2541 = vpop.permute.xlu0 %2540
        %v2542 = vsel %vm543, %v2535, %v2537
        %v2543 = vsel %vm543, %v2537, %v2539
        %v2544 = vsel %vm543, %v2539, %v2541
        %2548 = vrot.lane.b32.xlu0 %v2530, 124
        %v2549 = vpop.permute.xlu0 %2548
        %2550 = vrot.lane.b32.xlu0 %v2524, 124
        %v2551 = vpop.permute.xlu0 %2550
        %2552 = vrot.lane.b32.xlu0 %v2525, 124
        %v2553 = vpop.permute.xlu0 %2552
        %2554 = vrot.lane.b32.xlu0 %v2531, 124
        %v2555 = vpop.permute.xlu0 %2554
        %vm2556 = vcmask 1014784
        %v2557 = vsel %vm2556, %v2549, %v2551
        %v2558 = vsel %vm2556, %v2551, %v2553
        %v2559 = vsel %vm2556, %v2553, %v2555
        %2563 = vrot.lane.b32.xlu0 %v2530, 92
        %v2564 = vpop.permute.xlu0 %2563
        %2565 = vrot.lane.b32.xlu0 %v2524, 92
        %v2566 = vpop.permute.xlu0 %2565
        %2567 = vrot.lane.b32.xlu0 %v2525, 92
        %v2568 = vpop.permute.xlu0 %2567
        %2569 = vrot.lane.b32.xlu0 %v2531, 92
        %v2570 = vpop.permute.xlu0 %2569
        %v2571 = vsel %vm607, %v2564, %v2566
        %v2572 = vsel %vm607, %v2566, %v2568
        %v2573 = vsel %vm607, %v2568, %v2570
        %2577 = vrot.lane.b32.xlu0 %v2530, 90
        %v2578 = vpop.permute.xlu0 %2577
        %2579 = vrot.lane.b32.xlu0 %v2524, 90
        %v2580 = vpop.permute.xlu0 %2579
        %2581 = vrot.lane.b32.xlu0 %v2525, 90
        %v2582 = vpop.permute.xlu0 %2581
        %2583 = vrot.lane.b32.xlu0 %v2531, 90
        %v2584 = vpop.permute.xlu0 %2583
        %v2585 = vsel %vm639, %v2578, %v2580
        %v2586 = vsel %vm639, %v2580, %v2582
        %v2587 = vsel %vm639, %v2582, %v2584
        %2591 = vrot.lane.b32.xlu0 %v2530, 88
        %v2592 = vpop.permute.xlu0 %2591
        %2593 = vrot.lane.b32.xlu0 %v2524, 88
        %v2594 = vpop.permute.xlu0 %2593
        %2595 = vrot.lane.b32.xlu0 %v2525, 88
        %v2596 = vpop.permute.xlu0 %2595
        %2597 = vrot.lane.b32.xlu0 %v2531, 88
        %v2598 = vpop.permute.xlu0 %2597
        %vm2599 = vcmask 719872
        %v2600 = vsel %vm2599, %v2592, %v2594
        %v2601 = vsel %vm2599, %v2594, %v2596
        %v2602 = vsel %vm2599, %v2596, %v2598
        %2606 = vrot.lane.b32.xlu0 %v2530, 56
        %v2607 = vpop.permute.xlu0 %2606
        %2608 = vrot.lane.b32.xlu0 %v2524, 56
        %v2609 = vpop.permute.xlu0 %2608
        %2610 = vrot.lane.b32.xlu0 %v2525, 56
        %v2611 = vpop.permute.xlu0 %2610
        %2612 = vrot.lane.b32.xlu0 %v2531, 56
        %v2613 = vpop.permute.xlu0 %2612
        %vm2614 = vcmask 457728
        %v2615 = vsel %vm2614, %v2607, %v2609
        %v2616 = vsel %vm2614, %v2609, %v2611
        %v2617 = vsel %vm2614, %v2611, %v2613
        %2621 = vrot.lane.b32.xlu0 %v2530, 54
        %v2622 = vpop.permute.xlu0 %2621
        %2623 = vrot.lane.b32.xlu0 %v2524, 54
        %v2624 = vpop.permute.xlu0 %2623
        %2625 = vrot.lane.b32.xlu0 %v2525, 54
        %v2626 = vpop.permute.xlu0 %2625
        %2627 = vrot.lane.b32.xlu0 %v2531, 54
        %v2628 = vpop.permute.xlu0 %2627
        %vm2629 = vcmask 441344
        %v2630 = vsel %vm2629, %v2622, %v2624
        %v2631 = vsel %vm2629, %v2624, %v2626
        %v2632 = vsel %vm2629, %v2626, %v2628
        %2636 = vrot.lane.b32.xlu0 %v2530, 52
        %v2637 = vpop.permute.xlu0 %2636
        %2638 = vrot.lane.b32.xlu0 %v2524, 52
        %v2639 = vpop.permute.xlu0 %2638
        %2640 = vrot.lane.b32.xlu0 %v2525, 52
        %v2641 = vpop.permute.xlu0 %2640
        %2642 = vrot.lane.b32.xlu0 %v2531, 52
        %v2643 = vpop.permute.xlu0 %2642
        %vm2644 = vcmask 424960
        %v2645 = vsel %vm2644, %v2637, %v2639
        %v2646 = vsel %vm2644, %v2639, %v2641
        %v2647 = vsel %vm2644, %v2641, %v2643
        %v2651 = vld [vmem:[%s11] sm:$0xff]
        %2653 = vset.pattern.permute.xlu0 0
        %2654 = vperm.xlu0 %2653, %v2651
        %v2655 = vpop.permute.xlu0 %2654
        %v2658 = vsel %vm781, %v2514, 0
        %2660 = vmatprep.subr.mxu0 0.0
        %2661 = vmatpush1.msra.mxu0 0.0
        %2662 = vmatprep.subr.mxu0 0.0
        %2663 = vmatpush1.msra.mxu0 0.0
        %2664 = vmatprep.subr.mxu0 0.0
        %2665 = vmatpush1.msra.mxu0 0.0
        %2666 = vmatprep.subr.mxu0 0.0
        %2667 = vmatpush1.msra.mxu0 0.0
        %2668 = vmatprep.subr.mxu0 0.0
        %2669 = vmatpush1.msra.mxu0 0.0
        %2670 = vmatprep.subr.mxu0 0.0
        %2671 = vmatpush1.msra.mxu0 0.0
        %2672 = vmatprep.subr.mxu0 0.0
        %2673 = vmatpush1.msra.mxu0 0.0
        %2674 = vmatprep.subr.mxu0 %v2646
        %2675 = vmatpush1.msra.mxu0 %v2645
        %2676 = vmatprep.subr.mxu0 %v2631
        %2677 = vmatpush1.msra.mxu0 %v2630
        %2678 = vmatprep.subr.mxu0 %v2616
        %2679 = vmatpush1.msra.mxu0 %v2615
        %2680 = vmatprep.subr.mxu0 %v2601
        %2681 = vmatpush1.msra.mxu0 %v2600
        %2682 = vmatprep.subr.mxu0 %v2586
        %2683 = vmatpush1.msra.mxu0 %v2585
        %2684 = vmatprep.subr.mxu0 %v2572
        %2685 = vmatpush1.msra.mxu0 %v2571
        %2686 = vmatprep.subr.mxu0 %v2558
        %2687 = vmatpush1.msra.mxu0 %v2557
        %2688 = vmatprep.subr.mxu0 %v2543
        %2689 = vmatpush1.msra.mxu0 %v2542
        %2690 = vmatprep.subr.mxu0 %v2524
        %2691 = vmatpush1.msra.mxu0 %v2530
        %2692 = vmatprep.subr.mxu0 0.0
        %2693 = vmatpush2.msra.mxu0 0.0
        %2694 = vmatprep.subr.mxu0 0.0
        %2695 = vmatpush2.msra.mxu0 0.0
        %2696 = vmatprep.subr.mxu0 0.0
        %2697 = vmatpush2.msra.mxu0 0.0
        %2698 = vmatprep.subr.mxu0 0.0
        %2699 = vmatpush2.msra.mxu0 0.0
        %2700 = vmatprep.subr.mxu0 0.0
        %2701 = vmatpush2.msra.mxu0 0.0
        %2702 = vmatprep.subr.mxu0 0.0
        %2703 = vmatpush2.msra.mxu0 0.0
        %2704 = vmatprep.subr.mxu0 0.0
        %2705 = vmatpush2.msra.mxu0 0.0
        %2706 = vmatprep.subr.mxu0 0.0
        %2707 = vmatpush2.msra.mxu0 0.0
        %2708 = vmatprep.subr.mxu0 0.0
        %2709 = vmatpush2.msra.mxu0 0.0
        %2710 = vmatprep.subr.mxu0 0.0
        %2711 = vmatpush2.msra.mxu0 0.0
        %2712 = vmatprep.subr.mxu0 0.0
        %2713 = vmatpush2.msra.mxu0 0.0
        %2714 = vmatprep.subr.mxu0 0.0
        %2715 = vmatpush2.msra.mxu0 0.0
        %2716 = vmatprep.subr.mxu0 0.0
        %2717 = vmatpush2.msra.mxu0 0.0
        %2718 = vmatprep.subr.mxu0 0.0
        %2719 = vmatpush2.msra.mxu0 0.0
        %2720 = vmatprep.subr.mxu0 0.0
        %2721 = vmatpush2.msra.mxu0 0.0
        %2722 = vmatprep.subr.mxu0 0.0
        %2723 = vmatpush2.msra.mxu0 0.0
        %2724 = vmatprep.mubr.f32.mxu0 0.0
        %2725 = vmatmul.mubr.f32.gmra.mxu0 %v2658
        %v2726 = vpop.f32.mrf.mxu0
        %v2727 = vadd.f32 %v2655, %v2726
        %v2728 = vpop.f32.mrf.mxu0
        %v2729 = vadd.f32 %v2655, %v2728
        %2730 = vdwg.mxu0
        %2731 = vmatprep.subr.mxu0 0.0
        %2732 = vmatpush1.msra.mxu0 0.0
        %2733 = vmatprep.subr.mxu0 0.0
        %2734 = vmatpush1.msra.mxu0 0.0
        %2735 = vmatprep.subr.mxu0 0.0
        %2736 = vmatpush1.msra.mxu0 0.0
        %2737 = vmatprep.subr.mxu0 0.0
        %2738 = vmatpush1.msra.mxu0 0.0
        %2739 = vmatprep.subr.mxu0 0.0
        %2740 = vmatpush1.msra.mxu0 0.0
        %2741 = vmatprep.subr.mxu0 0.0
        %2742 = vmatpush1.msra.mxu0 0.0
        %2743 = vmatprep.subr.mxu0 0.0
        %2744 = vmatpush1.msra.mxu0 0.0
        %2745 = vmatprep.subr.mxu0 0.0
        %2746 = vmatpush1.msra.mxu0 %v2647
        %2747 = vmatprep.subr.mxu0 0.0
        %2748 = vmatpush1.msra.mxu0 %v2632
        %2749 = vmatprep.subr.mxu0 0.0
        %2750 = vmatpush1.msra.mxu0 %v2617
        %2751 = vmatprep.subr.mxu0 0.0
        %2752 = vmatpush1.msra.mxu0 %v2602
        %2753 = vmatprep.subr.mxu0 0.0
        %2754 = vmatpush1.msra.mxu0 %v2587
        %2755 = vmatprep.subr.mxu0 0.0
        %2756 = vmatpush1.msra.mxu0 %v2573
        %2757 = vmatprep.subr.mxu0 0.0
        %2758 = vmatpush1.msra.mxu0 %v2559
        %2759 = vmatprep.subr.mxu0 0.0
        %2760 = vmatpush1.msra.mxu0 %v2544
        %2761 = vmatprep.subr.mxu0 0.0
        %2762 = vmatpush1.msra.mxu0 %v2525
        %2763 = vmatprep.subr.mxu0 0.0
        %2764 = vmatpush2.msra.mxu0 0.0
        %2765 = vmatprep.subr.mxu0 0.0
        %2766 = vmatpush2.msra.mxu0 0.0
        %2767 = vmatprep.subr.mxu0 0.0
        %2768 = vmatpush2.msra.mxu0 0.0
        %2769 = vmatprep.subr.mxu0 0.0
        %2770 = vmatpush2.msra.mxu0 0.0
        %2771 = vmatprep.subr.mxu0 0.0
        %2772 = vmatpush2.msra.mxu0 0.0
        %2773 = vmatprep.subr.mxu0 0.0
        %2774 = vmatpush2.msra.mxu0 0.0
        %2775 = vmatprep.subr.mxu0 0.0
        %2776 = vmatpush2.msra.mxu0 0.0
        %2777 = vmatprep.subr.mxu0 0.0
        %2778 = vmatpush2.msra.mxu0 0.0
        %2779 = vmatprep.subr.mxu0 0.0
        %2780 = vmatpush2.msra.mxu0 0.0
        %2781 = vmatprep.subr.mxu0 0.0
        %2782 = vmatpush2.msra.mxu0 0.0
        %2783 = vmatprep.subr.mxu0 0.0
        %2784 = vmatpush2.msra.mxu0 0.0
        %2785 = vmatprep.subr.mxu0 0.0
        %2786 = vmatpush2.msra.mxu0 0.0
        %2787 = vmatprep.subr.mxu0 0.0
        %2788 = vmatpush2.msra.mxu0 0.0
        %2789 = vmatprep.subr.mxu0 0.0
        %2790 = vmatpush2.msra.mxu0 0.0
        %2791 = vmatprep.subr.mxu0 0.0
        %2792 = vmatpush2.msra.mxu0 0.0
        %2793 = vmatprep.subr.mxu0 0.0
        %2794 = vmatpush2.msra.mxu0 0.0
        %2795 = vmatprep.mubr.f32.mxu0 0.0
        %2796 = vmatmul.mubr.f32.gmra.mxu0 %v2658
        %v2797 = vpop.f32.mrf.mxu0
        %v2798 = vadd.f32 %v2655, %v2797
        %v2799 = vpop.f32.mrf.mxu0
        %2800 = vdwg.mxu0
        %vm2801 = vcmp.ge.f32.partialorder %v2727, 0.0
        %vm2802 = vcmp.ge.f32.partialorder %v2729, 0.0
        %vm2803 = vcmp.ge.f32.partialorder %v2798, 0.0
        %v2804 = vmul.f32 %v2727, 0.01
        %v2805 = vmul.f32 %v2729, 0.01
        %v2806 = vmul.f32 %v2798, 0.01
        %v2807 = vsel %vm2801, %v2727, %v2804
        %v2808 = vsel %vm2802, %v2729, %v2805
        %v2809 = vsel %vm2803, %v2798, %v2806
        %v2810 = vld [vmem:[%s12] sm:$0xff]
        %2812 = vset.pattern.permute.xlu0 0
        %2813 = vperm.xlu0 %2812, %v2810
        %v2814 = vpop.permute.xlu0 %2813
        %v2816 = vmul.f32 %v2807, %v2814
        %v2817 = vmul.f32 %v2808, %v2814
        %v2818 = vmul.f32 %v2809, %v2814
        %v2819 = vld [vmem:[%s13] sm:$0xff]
        %2821 = vset.pattern.permute.xlu0 0
        %2822 = vperm.xlu0 %2821, %v2819
        %v2823 = vpop.permute.xlu0 %2822
        %v2825 = vadd.f32 %v2816, %v2823
        %v2826 = vadd.f32 %v2817, %v2823
        %v2827 = vadd.f32 %v2818, %v2823
        %v2828 = vsub.f32 0.0, %v2825
        %v2829 = vsub.f32 0.0, %v2826
        %v2830 = vsub.f32 0.0, %v2827
        %v2831 = vmul.f32 %v2828, 1.442695
        %v2832 = vpow.pop %v2831
        %v2833 = vmul.f32 %v2829, 1.442695
        %v2834 = vpow.pop %v2833
        %v2835 = vmul.f32 %v2830, 1.442695
        %v2836 = vpow.pop %v2835
        %v2837 = vadd.f32 %v2832, 1.0
        %v2838 = vadd.f32 %v2834, 1.0
        %v2839 = vadd.f32 %v2836, 1.0
        %v2840 = vrcp.pop %v2837
        %v2841 = vmul.f32 1.0, %v2840
        %v2842 = vrcp.pop %v2838
        %v2843 = vmul.f32 1.0, %v2842
        %v2844 = vrcp.pop %v2839
        %v2845 = vmul.f32 1.0, %v2844
        %v2846 = vmul.f32 %v2841, 8.0
        %v2847 = vmul.f32 %v2843, 8.0
        %v2848 = vmul.f32 %v2845, 8.0
        %v2849 = vadd.f32 %v2846, 1.0
        %v2850 = vadd.f32 %v2847, 1.0
        %v2851 = vadd.f32 %v2848, 1.0
        %2852 = vst [vmem:[%s505] sm:$0xff] %v2849
        %2853 = vst [vmem:[%s505 + $0x8] sm:$0xff] %v2850
        %2854 = vst [vmem:[%s505 + $0x10] sm:$0xff] %v2851
        %s2855 = sand.u32 %s337, 1
        %s2856 = scalar_lea.sflag [#allocation3], %s2855
        %s2857 = sand.u32 %s337, 1
        %s2858 = smul.addr %s2857, 48
        %s2859 = scalar_lea.vmem [#allocation2], %s2858
        %p2860 = scmp.lt.s32.totalorder %s30, 1
        %s2861 = scalar_select %p2860, %s30, 1
        %s2862 = smul.addr %s2861, 3
        %s2863 = smul.addr %s2862, 8
        %s2864 = scalar_lea.vmem %s15, %s2863
        // Predicated region
        $region77: #{_arconv_head.1} parent=75 // pred_check
          %p2865 = pneg %p347
        $region78: #{_arconv_head.1} parent=75 // pred_check_branch
          %2867 = sbr.rel (%p2865) target = $region80
        $region79: #{_arconv_head.1} parent=75 // pred_region
          %s2869 = ssub.s32 768, 768
          %2870 = vsyncadd %s2856, %s2869
          %s2871 = smul.addr %s30, 6
          %s2872 = smul.addr %s2871, 128
          %s2873 = scalar_lea.hbm %s14, %s2872
          %s2874 = sshll.u32 %s2859, 4
          %s2875 = int_to_ptr.vmem [resolvable:$true] %s2874
          %2880 = dma.vmem_to_hbm [thread:$0]  %s2875, 768, %s2873, %s2856, 384, 384, 24
        $region80: #{_arconv_head.1} parent=75 // pred_fallthru
          _
        // Predicated region
        $region81: #{_arconv_head.1} parent=75 // pred_check
          %p2881 = pneg %p373
        $region82: #{_arconv_head.1} parent=75 // pred_check_branch
          %2883 = sbr.rel (%p2881) target = $region84
        $region83: #{_arconv_head.1} parent=75 // pred_region
          _
        $region84: #{_arconv_head.1} parent=75 // pred_fallthru
          _
      $region76: #{_arconv_head.1} parent=5 // pred_fallthru
        _
      %p2884 = scmp.le.s32.totalorder 2, %s25
      // Predicated region
      $region85: #{_arconv_head.1} parent=5 // pred_check
        %p2885 = pneg %p2884
      $region86: #{_arconv_head.1} parent=5 // pred_check_branch
        %2887 = sbr.rel (%p2885) target = $region88
      $region87: #{_arconv_head.1} parent=5 // pred_region
        %s2888 = ssub.s32 %s25, 2
        // Predicated region
        $region89: #{_arconv_head.1} parent=87 // pred_check
          %p2889 = pneg %p353
        $region90: #{_arconv_head.1} parent=87 // pred_check_branch
          %2891 = sbr.rel (%p2889) target = $region92
        $region91: #{_arconv_head.1} parent=87 // pred_region
          %s2892 = sand.u32 %s338, 1
          %s2893 = scalar_lea.sflag [#allocation3], %s2892
          %s2894 = sand.u32 %s338, 1
          %s2895 = smul.addr %s2894, 48
          %s2896 = scalar_lea.vmem [#allocation2], %s2895
          %2897 = dma.done %s2893, 768
        $region92: #{_arconv_head.1} parent=87 // pred_fallthru
          _
        // Predicated region
        $region93: #{_arconv_head.1} parent=87 // pred_check
          %p2898 = pneg %p379
        $region94: #{_arconv_head.1} parent=87 // pred_check_branch
          %2900 = sbr.rel (%p2898) target = $region96
        $region95: #{_arconv_head.1} parent=87 // pred_region
          %p2901 = scmp.lt.s32.totalorder %s31, 1
          %s2902 = scalar_select %p2901, %s31, 1
          %s2903 = smul.addr %s2902, 3
          %s2904 = smul.addr %s2903, 8
          %s2905 = scalar_lea.vmem %s15, %s2904
        $region96: #{_arconv_head.1} parent=87 // pred_fallthru
          _
      $region88: #{_arconv_head.1} parent=5 // pred_fallthru
        _
    $region6: #{_arconv_head.1} parent=1 // loop_footer
      %s29 = sadd.s32 1, %s25
    $region7: #{_arconv_head.1} parent=1 // loop_footer_branch
      %24 = sbr.rel target = $region3
    $region8: #{_arconv_head.1} parent=1 // loop_exit
      _
    %2906 = vsyncpa [#allocation3], 1
    %s2907 = scalar_lea.sflag [#allocation3], 1
    %2908 = vsyncpa %s2907, 1

</llo_original>
